<compile_context>
chip_gen: v7x
topology: tpu7x:2x2x1
jax: 0.10.0
libtpu: 0.0.40
codegen_flags: <defaults>
</compile_context>

<pallas_src>
import functools

import numpy as np
import jax
import jax.numpy as jnp
from jax import lax
from jax.experimental import pallas as pl
from jax.experimental.pallas import tpu as pltpu


_VMEM = pl.BlockSpec(memory_space=pltpu.MemorySpace.VMEM)


# ----------------------------------------------------------------------------
# Host-side weight builders (run once per call under jit, outside the kernel).
# ----------------------------------------------------------------------------
def _conv1_weight(w1):
    """w1 (6,1,5,5) torch layout -> (140, 144) shifted-matmul weight.

    Row  k = ki*28 + j                    (kernel row ki, input column j)
    Col  m = pe*72 + wp*6 + c             (output column w = 2*wp + pe)
    Entry  = w1[c, 0, ki, j - w]  when 0 <= j - w <= 4, else 0.
    """
    rows, cols, cs, kis, kjs = [], [], [], [], []
    for ki in range(5):
        for kj in range(5):
            for wp in range(12):
                for pe in range(2):
                    w = 2 * wp + pe
                    j = w + kj
                    for c in range(6):
                        rows.append(ki * 28 + j)
                        cols.append(pe * 72 + wp * 6 + c)
                        cs.append(c)
                        kis.append(ki)
                        kjs.append(kj)
    vals = w1[np.asarray(cs), 0, np.asarray(kis), np.asarray(kjs)]
    return (jnp.zeros((140, 144), jnp.float32)
            .at[np.asarray(rows), np.asarray(cols)].set(vals))


def _conv2_weight(w2):
    """w2 (16,6,5,5) -> (360, 128) shifted-matmul weight.

    Row  k = ki*72 + wp*6 + cin           (kernel row ki, pooled-1 lane)
    Col  m = qe*64 + w2p*16 + oc          (output column w2 = 2*w2p + qe)
    Entry  = w2[oc, cin, ki, wp - w2]  when 0 <= wp - w2 <= 4, else 0.
    """
    rows, cols, ocs, cins, kis, kjs = [], [], [], [], [], []
    for ki in range(5):
        for kj in range(5):
            for w2p in range(4):
                for qe in range(2):
                    w2o = 2 * w2p + qe
                    wp = w2o + kj
                    for cin in range(6):
                        for oc in range(16):
                            rows.append(ki * 72 + wp * 6 + cin)
                            cols.append(qe * 64 + w2p * 16 + oc)
                            ocs.append(oc)
                            cins.append(cin)
                            kis.append(ki)
                            kjs.append(kj)
    vals = w2[np.asarray(ocs), np.asarray(cins), np.asarray(kis), np.asarray(kjs)]
    return (jnp.zeros((360, 128), jnp.float32)
            .at[np.asarray(rows), np.asarray(cols)].set(vals))


# ----------------------------------------------------------------------------
# The fused kernel.
# ----------------------------------------------------------------------------
def _lenet_kernel(x_ref, w1t_ref, b1_ref, g1_ref, bt1_ref, s1_ref, s1t_ref,
                  w2t_ref, b2_ref, g2_ref, bt2_ref, s2_ref, s2t_ref,
                  w0_ref, b0_ref, w1f_ref, b1f_ref, w2f_ref, b2f_ref,
                  out_ref, *, n, eps=1e-5):
    f32 = jnp.float32
    dot = functools.partial(jnp.dot, preferred_element_type=f32)

    s1t = s1t_ref[...]                      # (6, 144) channel -> lane expander
    s2t = s2t_ref[...]                      # (16, 128)

    # Elementwise 2x2 maxpool: row-blocks a/b are the two h-parities, the two
    # lane halves are the two w-parities (baked into the layout).
    def hw_pool(a, b, half):
        return jnp.maximum(jnp.maximum(a[:, :half], a[:, half:]),
                           jnp.maximum(b[:, :half], b[:, half:]))

    # ------------------ conv1 (+ bias): MXU, 4 h-residue blocks --------------
    # Block r holds output rows h = 4t + r (t = 0..5), rows ordered (t, n);
    # lanes = pe*72 + wp*6 + c with output column w = 2*wp + pe.
    # x_ref rows are pre-grouped on the host: row s*7n + i*n + b = x[b, 4i+s].
    b1row = dot(b1_ref[...], s1t)                              # (1, 144)
    c1 = []
    sum1 = jnp.zeros((1, 144), f32)
    sq1 = jnp.zeros((1, 144), f32)
    for r in range(4):
        acc = None
        for ki in range(5):                                    # K-split over ki
            m = r + ki
            start = (m % 4) * 7 * n + (m // 4) * n
            xs = x_ref[start:start + 6 * n, :]                 # (6n, 28)
            d = dot(xs, w1t_ref[ki * 28:(ki + 1) * 28, :])     # (6n, 144)
            acc = d if acc is None else acc + d
        cb = acc + b1row
        c1.append(cb)
        sum1 = sum1 + jnp.sum(cb, axis=0, keepdims=True)       # one-pass BN stats
        sq1 = sq1 + jnp.sum(cb * cb, axis=0, keepdims=True)

    # ------------------ batchnorm1 (training mode) + ReLU --------------------
    cnt1 = float(n * 24 * 24)
    mean1 = dot(sum1, s1_ref[...]) / cnt1                      # (1, 6)
    var1 = dot(sq1, s1_ref[...]) / cnt1 - mean1 * mean1        # biased batch var
    scale1 = g1_ref[...] * lax.rsqrt(var1 + eps)
    shift1 = bt1_ref[...] - mean1 * scale1
    scale1_l = dot(scale1, s1t)                                # (1, 144)
    shift1_l = dot(shift1, s1t)
    y1 = [jnp.maximum(cb * scale1_l + shift1_l, 0.0) for cb in c1]

    # ------------------ maxpool1 (pure elementwise max) ----------------------
    p1 = (hw_pool(y1[0], y1[1], 72),     # hp = 2t     : rows (t, n), lanes wp*6+c
          hw_pool(y1[2], y1[3], 72))     # hp = 2t + 1

    # ------------------ conv2 (+ bias): MXU, 2 h-parity blocks ---------------
    # Block s holds output rows h2 = 2u + s (u = 0..3), rows ordered (u, n);
    # lanes = qe*64 + w2p*16 + oc with output column w2 = 2*w2p + qe.
    b2row = dot(b2_ref[...], s2t)                              # (1, 128)
    c2 = []
    sum2 = jnp.zeros((1, 128), f32)
    sq2 = jnp.zeros((1, 128), f32)
    for s in range(2):
        acc = None
        for ki in range(5):
            m = s + ki
            src = p1[m % 2]
            start = (m // 2) * n
            d = dot(src[start:start + 4 * n, :],               # (4n, 72)
                    w2t_ref[ki * 72:(ki + 1) * 72, :])         # -> (4n, 128)
            acc = d if acc is None else acc + d
        cb = acc + b2row
        c2.append(cb)
        sum2 = sum2 + jnp.sum(cb, axis=0, keepdims=True)
        sq2 = sq2 + jnp.sum(cb * cb, axis=0, keepdims=True)

    # ------------------ batchnorm2 + ReLU + maxpool2 --------------------------
    cnt2 = float(n * 8 * 8)
    mean2 = dot(sum2, s2_ref[...]) / cnt2                      # (1, 16)
    var2 = dot(sq2, s2_ref[...]) / cnt2 - mean2 * mean2
    scale2 = g2_ref[...] * lax.rsqrt(var2 + eps)
    shift2 = bt2_ref[...] - mean2 * scale2
    scale2_l = dot(scale2, s2t)
    shift2_l = dot(shift2, s2t)
    y2 = [jnp.maximum(cb * scale2_l + shift2_l, 0.0) for cb in c2]

    p2 = hw_pool(y2[0], y2[1], 64)       # (4n, 64): rows (h4, n), lanes w4*16+oc

    # ------------------ fc0 / fc1 / fc2 (torch flatten folded into w0) -------
    f0 = None
    for h in range(4):                   # 4 K=64 MXU dots == one K=256 matmul
        d = dot(p2[h * n:(h + 1) * n, :], w0_ref[h * 64:(h + 1) * 64, :])
        f0 = d if f0 is None else f0 + d
    f1 = jnp.maximum(f0 + b0_ref[...], 0.0)                    # (n, 120)
    f2 = jnp.maximum(dot(f1, w1f_ref[...]) + b1f_ref[...], 0.0)  # (n, 84)
    # ReLU on the final logits matches the reference forward(); output padded
    # to 128 lanes (zero weight/bias columns), sliced back to n_classes outside.
    out_ref[...] = jnp.maximum(dot(f2, w2f_ref[...]) + b2f_ref[...], 0.0)


# ----------------------------------------------------------------------------
# Wrapper: host-side layout prep + single pallas_call.
# ----------------------------------------------------------------------------
def lenet_forward(x, p):
    """x: (N, 1, 28, 28) float32 NCHW (PyTorch convention) -> (N, n_classes)."""
    N = x.shape[0]
    nc = p["fc2_w"].shape[0]
    f32 = jnp.float32

    # Input rows regrouped by (h mod 4) so every in-kernel access is a static
    # contiguous row slice:  x_all[s*7N + i*N + n, j] = x[n, 0, 4i + s, j].
    x_sq = x.reshape(N, 28, 28).astype(f32)
    x_all = (jnp.transpose(x_sq, (1, 0, 2))        # (28, N, 28), h-major
             .reshape(7, 4, N, 28)
             .transpose(1, 0, 2, 3)
             .reshape(4 * 7 * N, 28))

    w1t = _conv1_weight(p["w1"].astype(f32))                   # (140, 144)
    w2t = _conv2_weight(p["w2"].astype(f32))                   # (360, 128)
    # fc0: torch NCHW flatten (c*16 + h*4 + w) -> activation order (h, w, c).
    w0 = (p["fc0_w"].astype(f32).reshape(120, 16, 4, 4)
          .transpose(2, 3, 1, 0).reshape(256, 120))
    w1f = p["fc1_w"].astype(f32).T                             # (120, 84)
    # Lane-dense classifier: pad to 128 output lanes, slice after the call.
    w2f = jnp.zeros((84, 128), f32).at[:, :nc].set(p["fc2_w"].astype(f32).T)
    b2f = jnp.zeros((1, 128), f32).at[:, :nc].set(p["fc2_b"].astype(f32))

    # Channel selector matrices (lanes are contiguous groups of 6 / 16 channels).
    eye6 = jnp.eye(6, dtype=f32)
    eye16 = jnp.eye(16, dtype=f32)
    s1, s1t = jnp.tile(eye6, (24, 1)), jnp.tile(eye6, (1, 24))     # (144,6),(6,144)
    s2, s2t = jnp.tile(eye16, (8, 1)), jnp.tile(eye16, (1, 8))     # (128,16),(16,128)

    args = (
        x_all,
        w1t, p["b1"].reshape(1, 6).astype(f32), p["g1"].reshape(1, 6).astype(f32),
        p["bt1"].reshape(1, 6).astype(f32), s1, s1t,
        w2t, p["b2"].reshape(1, 16).astype(f32), p["g2"].reshape(1, 16).astype(f32),
        p["bt2"].reshape(1, 16).astype(f32), s2, s2t,
        w0, p["fc0_b"].reshape(1, 120).astype(f32),
        w1f, p["fc1_b"].reshape(1, 84).astype(f32),
        w2f, b2f,
    )

    out = pl.pallas_call(
        functools.partial(_lenet_kernel, n=N),
        out_shape=jax.ShapeDtypeStruct((N, 128), f32),
        in_specs=[_VMEM] * len(args),
        out_specs=_VMEM,
    )(*args)
    return out[:, :nc]


def init_params(key, n_classes=10):
    ks = jax.random.split(key, 12)
    f32 = jnp.float32
    return {
        "w1": 0.1 * jax.random.normal(ks[0], (6, 1, 5, 5), f32),
        "b1": 0.1 * jax.random.normal(ks[1], (6,), f32),
        "g1": 1.0 + 0.1 * jax.random.normal(ks[2], (6,), f32),
        "bt1": 0.1 * jax.random.normal(ks[3], (6,), f32),
        "w2": 0.1 * jax.random.normal(ks[4], (16, 6, 5, 5), f32),
        "b2": 0.1 * jax.random.normal(ks[5], (16,), f32),
        "g2": 1.0 + 0.1 * jax.random.normal(ks[6], (16,), f32),
        "bt2": 0.1 * jax.random.normal(ks[7], (16,), f32),
        "fc0_w": 0.1 * jax.random.normal(ks[8], (120, 16 * 4 * 4), f32),
        "fc0_b": jnp.zeros((120,), f32),
        "fc1_w": 0.1 * jax.random.normal(ks[9], (84, 120), f32),
        "fc1_b": jnp.zeros((84,), f32),
        "fc2_w": 0.1 * jax.random.normal(ks[10], (n_classes, 84), f32),
        "fc2_b": jnp.zeros((n_classes,), f32),
    }


if __name__ == "__main__":
    key = jax.random.PRNGKey(0)
    k_x, k_p = jax.random.split(key)
    # LeNet's fc0 (16*4*4) pins the spatial size to 28x28; keep the batch small.
    x = jax.random.normal(k_x, (2, 1, 28, 28), jnp.float32)
    params = init_params(k_p, n_classes=10)

    logits = jax.jit(lenet_forward)(x, params)
    jax.block_until_ready(logits)
    assert logits.shape == (2, 10) and logits.dtype == jnp.float32
    print("KERNEL_OK")
</pallas_src>

<mosaic_0001>
module attributes {stable_mosaic.version = 11 : i64} {
  func.func @_lenet_kernel(%arg0: memref<56x28xf32, #tpu.memory_space<vmem>>, %arg1: memref<140x144xf32, #tpu.memory_space<vmem>>, %arg2: memref<1x6xf32, #tpu.memory_space<vmem>>, %arg3: memref<1x6xf32, #tpu.memory_space<vmem>>, %arg4: memref<1x6xf32, #tpu.memory_space<vmem>>, %arg5: memref<144x6xf32, #tpu.memory_space<vmem>>, %arg6: memref<6x144xf32, #tpu.memory_space<vmem>>, %arg7: memref<360x128xf32, #tpu.memory_space<vmem>>, %arg8: memref<1x16xf32, #tpu.memory_space<vmem>>, %arg9: memref<1x16xf32, #tpu.memory_space<vmem>>, %arg10: memref<1x16xf32, #tpu.memory_space<vmem>>, %arg11: memref<128x16xf32, #tpu.memory_space<vmem>>, %arg12: memref<16x128xf32, #tpu.memory_space<vmem>>, %arg13: memref<256x120xf32, #tpu.memory_space<vmem>>, %arg14: memref<1x120xf32, #tpu.memory_space<vmem>>, %arg15: memref<120x84xf32, #tpu.memory_space<vmem>>, %arg16: memref<1x84xf32, #tpu.memory_space<vmem>>, %arg17: memref<84x128xf32, #tpu.memory_space<vmem>>, %arg18: memref<1x128xf32, #tpu.memory_space<vmem>>, %arg19: memref<2x128xf32, #tpu.memory_space<vmem>>) attributes {dimension_semantics = [], scalar_prefetch = 0 : i64, scratch_operands = 0 : i64, tpu.core_type = #tpu.core_type<tc>} {
    %c0 = arith.constant 0 : index
    %c0_0 = arith.constant 0 : index
    %0 = vector.load %arg6[%c0, %c0_0] : memref<6x144xf32, #tpu.memory_space<vmem>>, vector<6x144xf32>
    %c0_1 = arith.constant 0 : index
    %c0_2 = arith.constant 0 : index
    %1 = vector.load %arg12[%c0_1, %c0_2] : memref<16x128xf32, #tpu.memory_space<vmem>>, vector<16x128xf32>
    %c0_3 = arith.constant 0 : index
    %c0_4 = arith.constant 0 : index
    %2 = vector.load %arg2[%c0_3, %c0_4] : memref<1x6xf32, #tpu.memory_space<vmem>>, vector<1x6xf32>
    %cst = arith.constant dense<0.000000e+00> : vector<1x144xf32>
    %3 = tpu.matmul %2, %0, %cst {dimension_numbers = #tpu.dot_dimension_numbers<[1], [0], [0], [1], [0, 0, 1, 1], [], []>} : vector<1x6xf32>, vector<6x144xf32>, vector<1x144xf32> -> vector<1x144xf32>
    %cst_5 = arith.constant 0.000000e+00 : f32
    %4 = vector.broadcast %cst_5 : f32 to vector<1x144xf32>
    %cst_6 = arith.constant 0.000000e+00 : f32
    %5 = vector.broadcast %cst_6 : f32 to vector<1x144xf32>
    %c0_7 = arith.constant 0 : index
    %c0_8 = arith.constant 0 : index
    %6 = vector.load %arg0[%c0_7, %c0_8] : memref<56x28xf32, #tpu.memory_space<vmem>>, vector<12x28xf32>
    %c0_9 = arith.constant 0 : index
    %c0_10 = arith.constant 0 : index
    %7 = vector.load %arg1[%c0_9, %c0_10] : memref<140x144xf32, #tpu.memory_space<vmem>>, vector<28x144xf32>
    %cst_11 = arith.constant dense<0.000000e+00> : vector<12x144xf32>
    %8 = tpu.matmul %6, %7, %cst_11 {dimension_numbers = #tpu.dot_dimension_numbers<[1], [0], [0], [1], [0, 0, 1, 1], [], []>} : vector<12x28xf32>, vector<28x144xf32>, vector<12x144xf32> -> vector<12x144xf32>
    %c14 = arith.constant 14 : index
    %c0_12 = arith.constant 0 : index
    %9 = vector.load %arg0[%c14, %c0_12] : memref<56x28xf32, #tpu.memory_space<vmem>>, vector<12x28xf32>
    %c28 = arith.constant 28 : index
    %c0_13 = arith.constant 0 : index
    %10 = vector.load %arg1[%c28, %c0_13] : memref<140x144xf32, #tpu.memory_space<vmem>>, vector<28x144xf32>
    %cst_14 = arith.constant dense<0.000000e+00> : vector<12x144xf32>
    %11 = tpu.matmul %9, %10, %cst_14 {dimension_numbers = #tpu.dot_dimension_numbers<[1], [0], [0], [1], [0, 0, 1, 1], [], []>} : vector<12x28xf32>, vector<28x144xf32>, vector<12x144xf32> -> vector<12x144xf32>
    %12 = arith.addf %8, %11 : vector<12x144xf32>
    %c28_15 = arith.constant 28 : index
    %c0_16 = arith.constant 0 : index
    %13 = vector.load %arg0[%c28_15, %c0_16] : memref<56x28xf32, #tpu.memory_space<vmem>>, vector<12x28xf32>
    %c56 = arith.constant 56 : index
    %c0_17 = arith.constant 0 : index
    %14 = vector.load %arg1[%c56, %c0_17] : memref<140x144xf32, #tpu.memory_space<vmem>>, vector<28x144xf32>
    %cst_18 = arith.constant dense<0.000000e+00> : vector<12x144xf32>
    %15 = tpu.matmul %13, %14, %cst_18 {dimension_numbers = #tpu.dot_dimension_numbers<[1], [0], [0], [1], [0, 0, 1, 1], [], []>} : vector<12x28xf32>, vector<28x144xf32>, vector<12x144xf32> -> vector<12x144xf32>
    %16 = arith.addf %12, %15 : vector<12x144xf32>
    %c42 = arith.constant 42 : index
    %c0_19 = arith.constant 0 : index
    %17 = vector.load %arg0[%c42, %c0_19] : memref<56x28xf32, #tpu.memory_space<vmem>>, vector<12x28xf32>
    %c84 = arith.constant 84 : index
    %c0_20 = arith.constant 0 : index
    %18 = vector.load %arg1[%c84, %c0_20] : memref<140x144xf32, #tpu.memory_space<vmem>>, vector<28x144xf32>
    %cst_21 = arith.constant dense<0.000000e+00> : vector<12x144xf32>
    %19 = tpu.matmul %17, %18, %cst_21 {dimension_numbers = #tpu.dot_dimension_numbers<[1], [0], [0], [1], [0, 0, 1, 1], [], []>} : vector<12x28xf32>, vector<28x144xf32>, vector<12x144xf32> -> vector<12x144xf32>
    %20 = arith.addf %16, %19 : vector<12x144xf32>
    %c2 = arith.constant 2 : index
    %c0_22 = arith.constant 0 : index
    %21 = vector.load %arg0[%c2, %c0_22] : memref<56x28xf32, #tpu.memory_space<vmem>>, vector<12x28xf32>
    %c112 = arith.constant 112 : index
    %c0_23 = arith.constant 0 : index
    %22 = vector.load %arg1[%c112, %c0_23] : memref<140x144xf32, #tpu.memory_space<vmem>>, vector<28x144xf32>
    %cst_24 = arith.constant dense<0.000000e+00> : vector<12x144xf32>
    %23 = tpu.matmul %21, %22, %cst_24 {dimension_numbers = #tpu.dot_dimension_numbers<[1], [0], [0], [1], [0, 0, 1, 1], [], []>} : vector<12x28xf32>, vector<28x144xf32>, vector<12x144xf32> -> vector<12x144xf32>
    %24 = arith.addf %20, %23 : vector<12x144xf32>
    %25 = vector.broadcast %3 : vector<1x144xf32> to vector<12x144xf32>
    %26 = arith.addf %24, %25 : vector<12x144xf32>
    %cst_25 = arith.constant dense<0.000000e+00> : vector<144xf32>
    %27 = vector.multi_reduction <add>, %26, %cst_25 [0] : vector<12x144xf32> to vector<144xf32>
    %28 = vector.shape_cast %27 : vector<144xf32> to vector<1x144xf32>
    %29 = arith.addf %4, %28 : vector<1x144xf32>
    %30 = arith.mulf %26, %26 : vector<12x144xf32>
    %cst_26 = arith.constant dense<0.000000e+00> : vector<144xf32>
    %31 = vector.multi_reduction <add>, %30, %cst_26 [0] : vector<12x144xf32> to vector<144xf32>
    %32 = vector.shape_cast %31 : vector<144xf32> to vector<1x144xf32>
    %33 = arith.addf %5, %32 : vector<1x144xf32>
    %c14_27 = arith.constant 14 : index
    %c0_28 = arith.constant 0 : index
    %34 = vector.load %arg0[%c14_27, %c0_28] : memref<56x28xf32, #tpu.memory_space<vmem>>, vector<12x28xf32>
    %c0_29 = arith.constant 0 : index
    %c0_30 = arith.constant 0 : index
    %35 = vector.load %arg1[%c0_29, %c0_30] : memref<140x144xf32, #tpu.memory_space<vmem>>, vector<28x144xf32>
    %cst_31 = arith.constant dense<0.000000e+00> : vector<12x144xf32>
    %36 = tpu.matmul %34, %35, %cst_31 {dimension_numbers = #tpu.dot_dimension_numbers<[1], [0], [0], [1], [0, 0, 1, 1], [], []>} : vector<12x28xf32>, vector<28x144xf32>, vector<12x144xf32> -> vector<12x144xf32>
    %c28_32 = arith.constant 28 : index
    %c0_33 = arith.constant 0 : index
    %37 = vector.load %arg0[%c28_32, %c0_33] : memref<56x28xf32, #tpu.memory_space<vmem>>, vector<12x28xf32>
    %c28_34 = arith.constant 28 : index
    %c0_35 = arith.constant 0 : index
    %38 = vector.load %arg1[%c28_34, %c0_35] : memref<140x144xf32, #tpu.memory_space<vmem>>, vector<28x144xf32>
    %cst_36 = arith.constant dense<0.000000e+00> : vector<12x144xf32>
    %39 = tpu.matmul %37, %38, %cst_36 {dimension_numbers = #tpu.dot_dimension_numbers<[1], [0], [0], [1], [0, 0, 1, 1], [], []>} : vector<12x28xf32>, vector<28x144xf32>, vector<12x144xf32> -> vector<12x144xf32>
    %40 = arith.addf %36, %39 : vector<12x144xf32>
    %c42_37 = arith.constant 42 : index
    %c0_38 = arith.constant 0 : index
    %41 = vector.load %arg0[%c42_37, %c0_38] : memref<56x28xf32, #tpu.memory_space<vmem>>, vector<12x28xf32>
    %c56_39 = arith.constant 56 : index
    %c0_40 = arith.constant 0 : index
    %42 = vector.load %arg1[%c56_39, %c0_40] : memref<140x144xf32, #tpu.memory_space<vmem>>, vector<28x144xf32>
    %cst_41 = arith.constant dense<0.000000e+00> : vector<12x144xf32>
    %43 = tpu.matmul %41, %42, %cst_41 {dimension_numbers = #tpu.dot_dimension_numbers<[1], [0], [0], [1], [0, 0, 1, 1], [], []>} : vector<12x28xf32>, vector<28x144xf32>, vector<12x144xf32> -> vector<12x144xf32>
    %44 = arith.addf %40, %43 : vector<12x144xf32>
    %c2_42 = arith.constant 2 : index
    %c0_43 = arith.constant 0 : index
    %45 = vector.load %arg0[%c2_42, %c0_43] : memref<56x28xf32, #tpu.memory_space<vmem>>, vector<12x28xf32>
    %c84_44 = arith.constant 84 : index
    %c0_45 = arith.constant 0 : index
    %46 = vector.load %arg1[%c84_44, %c0_45] : memref<140x144xf32, #tpu.memory_space<vmem>>, vector<28x144xf32>
    %cst_46 = arith.constant dense<0.000000e+00> : vector<12x144xf32>
    %47 = tpu.matmul %45, %46, %cst_46 {dimension_numbers = #tpu.dot_dimension_numbers<[1], [0], [0], [1], [0, 0, 1, 1], [], []>} : vector<12x28xf32>, vector<28x144xf32>, vector<12x144xf32> -> vector<12x144xf32>
    %48 = arith.addf %44, %47 : vector<12x144xf32>
    %c16 = arith.constant 16 : index
    %c0_47 = arith.constant 0 : index
    %49 = vector.load %arg0[%c16, %c0_47] : memref<56x28xf32, #tpu.memory_space<vmem>>, vector<12x28xf32>
    %c112_48 = arith.constant 112 : index
    %c0_49 = arith.constant 0 : index
    %50 = vector.load %arg1[%c112_48, %c0_49] : memref<140x144xf32, #tpu.memory_space<vmem>>, vector<28x144xf32>
    %cst_50 = arith.constant dense<0.000000e+00> : vector<12x144xf32>
    %51 = tpu.matmul %49, %50, %cst_50 {dimension_numbers = #tpu.dot_dimension_numbers<[1], [0], [0], [1], [0, 0, 1, 1], [], []>} : vector<12x28xf32>, vector<28x144xf32>, vector<12x144xf32> -> vector<12x144xf32>
    %52 = arith.addf %48, %51 : vector<12x144xf32>
    %53 = vector.broadcast %3 : vector<1x144xf32> to vector<12x144xf32>
    %54 = arith.addf %52, %53 : vector<12x144xf32>
    %cst_51 = arith.constant dense<0.000000e+00> : vector<144xf32>
    %55 = vector.multi_reduction <add>, %54, %cst_51 [0] : vector<12x144xf32> to vector<144xf32>
    %56 = vector.shape_cast %55 : vector<144xf32> to vector<1x144xf32>
    %57 = arith.addf %29, %56 : vector<1x144xf32>
    %58 = arith.mulf %54, %54 : vector<12x144xf32>
    %cst_52 = arith.constant dense<0.000000e+00> : vector<144xf32>
    %59 = vector.multi_reduction <add>, %58, %cst_52 [0] : vector<12x144xf32> to vector<144xf32>
    %60 = vector.shape_cast %59 : vector<144xf32> to vector<1x144xf32>
    %61 = arith.addf %33, %60 : vector<1x144xf32>
    %c28_53 = arith.constant 28 : index
    %c0_54 = arith.constant 0 : index
    %62 = vector.load %arg0[%c28_53, %c0_54] : memref<56x28xf32, #tpu.memory_space<vmem>>, vector<12x28xf32>
    %c0_55 = arith.constant 0 : index
    %c0_56 = arith.constant 0 : index
    %63 = vector.load %arg1[%c0_55, %c0_56] : memref<140x144xf32, #tpu.memory_space<vmem>>, vector<28x144xf32>
    %cst_57 = arith.constant dense<0.000000e+00> : vector<12x144xf32>
    %64 = tpu.matmul %62, %63, %cst_57 {dimension_numbers = #tpu.dot_dimension_numbers<[1], [0], [0], [1], [0, 0, 1, 1], [], []>} : vector<12x28xf32>, vector<28x144xf32>, vector<12x144xf32> -> vector<12x144xf32>
    %c42_58 = arith.constant 42 : index
    %c0_59 = arith.constant 0 : index
    %65 = vector.load %arg0[%c42_58, %c0_59] : memref<56x28xf32, #tpu.memory_space<vmem>>, vector<12x28xf32>
    %c28_60 = arith.constant 28 : index
    %c0_61 = arith.constant 0 : index
    %66 = vector.load %arg1[%c28_60, %c0_61] : memref<140x144xf32, #tpu.memory_space<vmem>>, vector<28x144xf32>
    %cst_62 = arith.constant dense<0.000000e+00> : vector<12x144xf32>
    %67 = tpu.matmul %65, %66, %cst_62 {dimension_numbers = #tpu.dot_dimension_numbers<[1], [0], [0], [1], [0, 0, 1, 1], [], []>} : vector<12x28xf32>, vector<28x144xf32>, vector<12x144xf32> -> vector<12x144xf32>
    %68 = arith.addf %64, %67 : vector<12x144xf32>
    %c2_63 = arith.constant 2 : index
    %c0_64 = arith.constant 0 : index
    %69 = vector.load %arg0[%c2_63, %c0_64] : memref<56x28xf32, #tpu.memory_space<vmem>>, vector<12x28xf32>
    %c56_65 = arith.constant 56 : index
    %c0_66 = arith.constant 0 : index
    %70 = vector.load %arg1[%c56_65, %c0_66] : memref<140x144xf32, #tpu.memory_space<vmem>>, vector<28x144xf32>
    %cst_67 = arith.constant dense<0.000000e+00> : vector<12x144xf32>
    %71 = tpu.matmul %69, %70, %cst_67 {dimension_numbers = #tpu.dot_dimension_numbers<[1], [0], [0], [1], [0, 0, 1, 1], [], []>} : vector<12x28xf32>, vector<28x144xf32>, vector<12x144xf32> -> vector<12x144xf32>
    %72 = arith.addf %68, %71 : vector<12x144xf32>
    %c16_68 = arith.constant 16 : index
    %c0_69 = arith.constant 0 : index
    %73 = vector.load %arg0[%c16_68, %c0_69] : memref<56x28xf32, #tpu.memory_space<vmem>>, vector<12x28xf32>
    %c84_70 = arith.constant 84 : index
    %c0_71 = arith.constant 0 : index
    %74 = vector.load %arg1[%c84_70, %c0_71] : memref<140x144xf32, #tpu.memory_space<vmem>>, vector<28x144xf32>
    %cst_72 = arith.constant dense<0.000000e+00> : vector<12x144xf32>
    %75 = tpu.matmul %73, %74, %cst_72 {dimension_numbers = #tpu.dot_dimension_numbers<[1], [0], [0], [1], [0, 0, 1, 1], [], []>} : vector<12x28xf32>, vector<28x144xf32>, vector<12x144xf32> -> vector<12x144xf32>
    %76 = arith.addf %72, %75 : vector<12x144xf32>
    %c30 = arith.constant 30 : index
    %c0_73 = arith.constant 0 : index
    %77 = vector.load %arg0[%c30, %c0_73] : memref<56x28xf32, #tpu.memory_space<vmem>>, vector<12x28xf32>
    %c112_74 = arith.constant 112 : index
    %c0_75 = arith.constant 0 : index
    %78 = vector.load %arg1[%c112_74, %c0_75] : memref<140x144xf32, #tpu.memory_space<vmem>>, vector<28x144xf32>
    %cst_76 = arith.constant dense<0.000000e+00> : vector<12x144xf32>
    %79 = tpu.matmul %77, %78, %cst_76 {dimension_numbers = #tpu.dot_dimension_numbers<[1], [0], [0], [1], [0, 0, 1, 1], [], []>} : vector<12x28xf32>, vector<28x144xf32>, vector<12x144xf32> -> vector<12x144xf32>
    %80 = arith.addf %76, %79 : vector<12x144xf32>
    %81 = vector.broadcast %3 : vector<1x144xf32> to vector<12x144xf32>
    %82 = arith.addf %80, %81 : vector<12x144xf32>
    %cst_77 = arith.constant dense<0.000000e+00> : vector<144xf32>
    %83 = vector.multi_reduction <add>, %82, %cst_77 [0] : vector<12x144xf32> to vector<144xf32>
    %84 = vector.shape_cast %83 : vector<144xf32> to vector<1x144xf32>
    %85 = arith.addf %57, %84 : vector<1x144xf32>
    %86 = arith.mulf %82, %82 : vector<12x144xf32>
    %cst_78 = arith.constant dense<0.000000e+00> : vector<144xf32>
    %87 = vector.multi_reduction <add>, %86, %cst_78 [0] : vector<12x144xf32> to vector<144xf32>
    %88 = vector.shape_cast %87 : vector<144xf32> to vector<1x144xf32>
    %89 = arith.addf %61, %88 : vector<1x144xf32>
    %c42_79 = arith.constant 42 : index
    %c0_80 = arith.constant 0 : index
    %90 = vector.load %arg0[%c42_79, %c0_80] : memref<56x28xf32, #tpu.memory_space<vmem>>, vector<12x28xf32>
    %c0_81 = arith.constant 0 : index
    %c0_82 = arith.constant 0 : index
    %91 = vector.load %arg1[%c0_81, %c0_82] : memref<140x144xf32, #tpu.memory_space<vmem>>, vector<28x144xf32>
    %cst_83 = arith.constant dense<0.000000e+00> : vector<12x144xf32>
    %92 = tpu.matmul %90, %91, %cst_83 {dimension_numbers = #tpu.dot_dimension_numbers<[1], [0], [0], [1], [0, 0, 1, 1], [], []>} : vector<12x28xf32>, vector<28x144xf32>, vector<12x144xf32> -> vector<12x144xf32>
    %c2_84 = arith.constant 2 : index
    %c0_85 = arith.constant 0 : index
    %93 = vector.load %arg0[%c2_84, %c0_85] : memref<56x28xf32, #tpu.memory_space<vmem>>, vector<12x28xf32>
    %c28_86 = arith.constant 28 : index
    %c0_87 = arith.constant 0 : index
    %94 = vector.load %arg1[%c28_86, %c0_87] : memref<140x144xf32, #tpu.memory_space<vmem>>, vector<28x144xf32>
    %cst_88 = arith.constant dense<0.000000e+00> : vector<12x144xf32>
    %95 = tpu.matmul %93, %94, %cst_88 {dimension_numbers = #tpu.dot_dimension_numbers<[1], [0], [0], [1], [0, 0, 1, 1], [], []>} : vector<12x28xf32>, vector<28x144xf32>, vector<12x144xf32> -> vector<12x144xf32>
    %96 = arith.addf %92, %95 : vector<12x144xf32>
    %c16_89 = arith.constant 16 : index
    %c0_90 = arith.constant 0 : index
    %97 = vector.load %arg0[%c16_89, %c0_90] : memref<56x28xf32, #tpu.memory_space<vmem>>, vector<12x28xf32>
    %c56_91 = arith.constant 56 : index
    %c0_92 = arith.constant 0 : index
    %98 = vector.load %arg1[%c56_91, %c0_92] : memref<140x144xf32, #tpu.memory_space<vmem>>, vector<28x144xf32>
    %cst_93 = arith.constant dense<0.000000e+00> : vector<12x144xf32>
    %99 = tpu.matmul %97, %98, %cst_93 {dimension_numbers = #tpu.dot_dimension_numbers<[1], [0], [0], [1], [0, 0, 1, 1], [], []>} : vector<12x28xf32>, vector<28x144xf32>, vector<12x144xf32> -> vector<12x144xf32>
    %100 = arith.addf %96, %99 : vector<12x144xf32>
    %c30_94 = arith.constant 30 : index
    %c0_95 = arith.constant 0 : index
    %101 = vector.load %arg0[%c30_94, %c0_95] : memref<56x28xf32, #tpu.memory_space<vmem>>, vector<12x28xf32>
    %c84_96 = arith.constant 84 : index
    %c0_97 = arith.constant 0 : index
    %102 = vector.load %arg1[%c84_96, %c0_97] : memref<140x144xf32, #tpu.memory_space<vmem>>, vector<28x144xf32>
    %cst_98 = arith.constant dense<0.000000e+00> : vector<12x144xf32>
    %103 = tpu.matmul %101, %102, %cst_98 {dimension_numbers = #tpu.dot_dimension_numbers<[1], [0], [0], [1], [0, 0, 1, 1], [], []>} : vector<12x28xf32>, vector<28x144xf32>, vector<12x144xf32> -> vector<12x144xf32>
    %104 = arith.addf %100, %103 : vector<12x144xf32>
    %c44 = arith.constant 44 : index
    %c0_99 = arith.constant 0 : index
    %105 = vector.load %arg0[%c44, %c0_99] : memref<56x28xf32, #tpu.memory_space<vmem>>, vector<12x28xf32>
    %c112_100 = arith.constant 112 : index
    %c0_101 = arith.constant 0 : index
    %106 = vector.load %arg1[%c112_100, %c0_101] : memref<140x144xf32, #tpu.memory_space<vmem>>, vector<28x144xf32>
    %cst_102 = arith.constant dense<0.000000e+00> : vector<12x144xf32>
    %107 = tpu.matmul %105, %106, %cst_102 {dimension_numbers = #tpu.dot_dimension_numbers<[1], [0], [0], [1], [0, 0, 1, 1], [], []>} : vector<12x28xf32>, vector<28x144xf32>, vector<12x144xf32> -> vector<12x144xf32>
    %108 = arith.addf %104, %107 : vector<12x144xf32>
    %109 = vector.broadcast %3 : vector<1x144xf32> to vector<12x144xf32>
    %110 = arith.addf %108, %109 : vector<12x144xf32>
    %cst_103 = arith.constant dense<0.000000e+00> : vector<144xf32>
    %111 = vector.multi_reduction <add>, %110, %cst_103 [0] : vector<12x144xf32> to vector<144xf32>
    %112 = vector.shape_cast %111 : vector<144xf32> to vector<1x144xf32>
    %113 = arith.addf %85, %112 : vector<1x144xf32>
    %114 = arith.mulf %110, %110 : vector<12x144xf32>
    %cst_104 = arith.constant dense<0.000000e+00> : vector<144xf32>
    %115 = vector.multi_reduction <add>, %114, %cst_104 [0] : vector<12x144xf32> to vector<144xf32>
    %116 = vector.shape_cast %115 : vector<144xf32> to vector<1x144xf32>
    %117 = arith.addf %89, %116 : vector<1x144xf32>
    %c0_105 = arith.constant 0 : index
    %c0_106 = arith.constant 0 : index
    %118 = vector.load %arg5[%c0_105, %c0_106] : memref<144x6xf32, #tpu.memory_space<vmem>>, vector<144x6xf32>
    %cst_107 = arith.constant dense<0.000000e+00> : vector<1x6xf32>
    %119 = tpu.matmul %113, %118, %cst_107 {dimension_numbers = #tpu.dot_dimension_numbers<[1], [0], [0], [1], [0, 0, 1, 1], [], []>} : vector<1x144xf32>, vector<144x6xf32>, vector<1x6xf32> -> vector<1x6xf32>
    %cst_108 = arith.constant 1.152000e+03 : f32
    %120 = vector.broadcast %cst_108 : f32 to vector<1x6xf32>
    %121 = arith.divf %119, %120 : vector<1x6xf32>
    %c0_109 = arith.constant 0 : index
    %c0_110 = arith.constant 0 : index
    %122 = vector.load %arg5[%c0_109, %c0_110] : memref<144x6xf32, #tpu.memory_space<vmem>>, vector<144x6xf32>
    %cst_111 = arith.constant dense<0.000000e+00> : vector<1x6xf32>
    %123 = tpu.matmul %117, %122, %cst_111 {dimension_numbers = #tpu.dot_dimension_numbers<[1], [0], [0], [1], [0, 0, 1, 1], [], []>} : vector<1x144xf32>, vector<144x6xf32>, vector<1x6xf32> -> vector<1x6xf32>
    %cst_112 = arith.constant 1.152000e+03 : f32
    %124 = vector.broadcast %cst_112 : f32 to vector<1x6xf32>
    %125 = arith.divf %123, %124 : vector<1x6xf32>
    %126 = arith.mulf %121, %121 : vector<1x6xf32>
    %127 = arith.subf %125, %126 : vector<1x6xf32>
    %c0_113 = arith.constant 0 : index
    %c0_114 = arith.constant 0 : index
    %128 = vector.load %arg3[%c0_113, %c0_114] : memref<1x6xf32, #tpu.memory_space<vmem>>, vector<1x6xf32>
    %cst_115 = arith.constant 9.99999974E-6 : f32
    %129 = vector.broadcast %cst_115 : f32 to vector<1x6xf32>
    %130 = arith.addf %127, %129 : vector<1x6xf32>
    %131 = math.rsqrt %130 : vector<1x6xf32>
    %132 = arith.mulf %128, %131 : vector<1x6xf32>
    %c0_116 = arith.constant 0 : index
    %c0_117 = arith.constant 0 : index
    %133 = vector.load %arg4[%c0_116, %c0_117] : memref<1x6xf32, #tpu.memory_space<vmem>>, vector<1x6xf32>
    %134 = arith.mulf %121, %132 : vector<1x6xf32>
    %135 = arith.subf %133, %134 : vector<1x6xf32>
    %cst_118 = arith.constant dense<0.000000e+00> : vector<1x144xf32>
    %136 = tpu.matmul %132, %0, %cst_118 {dimension_numbers = #tpu.dot_dimension_numbers<[1], [0], [0], [1], [0, 0, 1, 1], [], []>} : vector<1x6xf32>, vector<6x144xf32>, vector<1x144xf32> -> vector<1x144xf32>
    %cst_119 = arith.constant dense<0.000000e+00> : vector<1x144xf32>
    %137 = tpu.matmul %135, %0, %cst_119 {dimension_numbers = #tpu.dot_dimension_numbers<[1], [0], [0], [1], [0, 0, 1, 1], [], []>} : vector<1x6xf32>, vector<6x144xf32>, vector<1x144xf32> -> vector<1x144xf32>
    %138 = vector.broadcast %136 : vector<1x144xf32> to vector<12x144xf32>
    %139 = arith.mulf %26, %138 : vector<12x144xf32>
    %140 = vector.broadcast %137 : vector<1x144xf32> to vector<12x144xf32>
    %141 = arith.addf %139, %140 : vector<12x144xf32>
    %cst_120 = arith.constant 0.000000e+00 : f32
    %142 = vector.broadcast %cst_120 : f32 to vector<12x144xf32>
    %143 = arith.maximumf %141, %142 : vector<12x144xf32>
    %144 = vector.broadcast %136 : vector<1x144xf32> to vector<12x144xf32>
    %145 = arith.mulf %54, %144 : vector<12x144xf32>
    %146 = vector.broadcast %137 : vector<1x144xf32> to vector<12x144xf32>
    %147 = arith.addf %145, %146 : vector<12x144xf32>
    %cst_121 = arith.constant 0.000000e+00 : f32
    %148 = vector.broadcast %cst_121 : f32 to vector<12x144xf32>
    %149 = arith.maximumf %147, %148 : vector<12x144xf32>
    %150 = vector.broadcast %136 : vector<1x144xf32> to vector<12x144xf32>
    %151 = arith.mulf %82, %150 : vector<12x144xf32>
    %152 = vector.broadcast %137 : vector<1x144xf32> to vector<12x144xf32>
    %153 = arith.addf %151, %152 : vector<12x144xf32>
    %cst_122 = arith.constant 0.000000e+00 : f32
    %154 = vector.broadcast %cst_122 : f32 to vector<12x144xf32>
    %155 = arith.maximumf %153, %154 : vector<12x144xf32>
    %156 = vector.broadcast %136 : vector<1x144xf32> to vector<12x144xf32>
    %157 = arith.mulf %110, %156 : vector<12x144xf32>
    %158 = vector.broadcast %137 : vector<1x144xf32> to vector<12x144xf32>
    %159 = arith.addf %157, %158 : vector<12x144xf32>
    %cst_123 = arith.constant 0.000000e+00 : f32
    %160 = vector.broadcast %cst_123 : f32 to vector<12x144xf32>
    %161 = arith.maximumf %159, %160 : vector<12x144xf32>
    %162 = vector.extract_strided_slice %143 {offsets = [0, 0], sizes = [12, 72], strides = [1, 1]} : vector<12x144xf32> to vector<12x72xf32>
    %163 = vector.extract_strided_slice %143 {offsets = [0, 72], sizes = [12, 72], strides = [1, 1]} : vector<12x144xf32> to vector<12x72xf32>
    %164 = arith.maximumf %162, %163 : vector<12x72xf32>
    %165 = vector.extract_strided_slice %149 {offsets = [0, 0], sizes = [12, 72], strides = [1, 1]} : vector<12x144xf32> to vector<12x72xf32>
    %166 = vector.extract_strided_slice %149 {offsets = [0, 72], sizes = [12, 72], strides = [1, 1]} : vector<12x144xf32> to vector<12x72xf32>
    %167 = arith.maximumf %165, %166 : vector<12x72xf32>
    %168 = arith.maximumf %164, %167 : vector<12x72xf32>
    %169 = vector.extract_strided_slice %155 {offsets = [0, 0], sizes = [12, 72], strides = [1, 1]} : vector<12x144xf32> to vector<12x72xf32>
    %170 = vector.extract_strided_slice %155 {offsets = [0, 72], sizes = [12, 72], strides = [1, 1]} : vector<12x144xf32> to vector<12x72xf32>
    %171 = arith.maximumf %169, %170 : vector<12x72xf32>
    %172 = vector.extract_strided_slice %161 {offsets = [0, 0], sizes = [12, 72], strides = [1, 1]} : vector<12x144xf32> to vector<12x72xf32>
    %173 = vector.extract_strided_slice %161 {offsets = [0, 72], sizes = [12, 72], strides = [1, 1]} : vector<12x144xf32> to vector<12x72xf32>
    %174 = arith.maximumf %172, %173 : vector<12x72xf32>
    %175 = arith.maximumf %171, %174 : vector<12x72xf32>
    %c0_124 = arith.constant 0 : index
    %c0_125 = arith.constant 0 : index
    %176 = vector.load %arg8[%c0_124, %c0_125] : memref<1x16xf32, #tpu.memory_space<vmem>>, vector<1x16xf32>
    %cst_126 = arith.constant dense<0.000000e+00> : vector<1x128xf32>
    %177 = tpu.matmul %176, %1, %cst_126 {dimension_numbers = #tpu.dot_dimension_numbers<[1], [0], [0], [1], [0, 0, 1, 1], [], []>} : vector<1x16xf32>, vector<16x128xf32>, vector<1x128xf32> -> vector<1x128xf32>
    %cst_127 = arith.constant 0.000000e+00 : f32
    %178 = vector.broadcast %cst_127 : f32 to vector<1x128xf32>
    %cst_128 = arith.constant 0.000000e+00 : f32
    %179 = vector.broadcast %cst_128 : f32 to vector<1x128xf32>
    %180 = vector.extract_strided_slice %168 {offsets = [0, 0], sizes = [8, 72], strides = [1, 1]} : vector<12x72xf32> to vector<8x72xf32>
    %c0_129 = arith.constant 0 : index
    %c0_130 = arith.constant 0 : index
    %181 = vector.load %arg7[%c0_129, %c0_130] : memref<360x128xf32, #tpu.memory_space<vmem>>, vector<72x128xf32>
    %cst_131 = arith.constant dense<0.000000e+00> : vector<8x128xf32>
    %182 = tpu.matmul %180, %181, %cst_131 {dimension_numbers = #tpu.dot_dimension_numbers<[1], [0], [0], [1], [0, 0, 1, 1], [], []>} : vector<8x72xf32>, vector<72x128xf32>, vector<8x128xf32> -> vector<8x128xf32>
    %183 = vector.extract_strided_slice %175 {offsets = [0, 0], sizes = [8, 72], strides = [1, 1]} : vector<12x72xf32> to vector<8x72xf32>
    %c72 = arith.constant 72 : index
    %c0_132 = arith.constant 0 : index
    %184 = vector.load %arg7[%c72, %c0_132] : memref<360x128xf32, #tpu.memory_space<vmem>>, vector<72x128xf32>
    %cst_133 = arith.constant dense<0.000000e+00> : vector<8x128xf32>
    %185 = tpu.matmul %183, %184, %cst_133 {dimension_numbers = #tpu.dot_dimension_numbers<[1], [0], [0], [1], [0, 0, 1, 1], [], []>} : vector<8x72xf32>, vector<72x128xf32>, vector<8x128xf32> -> vector<8x128xf32>
    %186 = arith.addf %182, %185 : vector<8x128xf32>
    %187 = vector.extract_strided_slice %168 {offsets = [2, 0], sizes = [8, 72], strides = [1, 1]} : vector<12x72xf32> to vector<8x72xf32>
    %c144 = arith.constant 144 : index
    %c0_134 = arith.constant 0 : index
    %188 = vector.load %arg7[%c144, %c0_134] : memref<360x128xf32, #tpu.memory_space<vmem>>, vector<72x128xf32>
    %cst_135 = arith.constant dense<0.000000e+00> : vector<8x128xf32>
    %189 = tpu.matmul %187, %188, %cst_135 {dimension_numbers = #tpu.dot_dimension_numbers<[1], [0], [0], [1], [0, 0, 1, 1], [], []>} : vector<8x72xf32>, vector<72x128xf32>, vector<8x128xf32> -> vector<8x128xf32>
    %190 = arith.addf %186, %189 : vector<8x128xf32>
    %191 = vector.extract_strided_slice %175 {offsets = [2, 0], sizes = [8, 72], strides = [1, 1]} : vector<12x72xf32> to vector<8x72xf32>
    %c216 = arith.constant 216 : index
    %c0_136 = arith.constant 0 : index
    %192 = vector.load %arg7[%c216, %c0_136] : memref<360x128xf32, #tpu.memory_space<vmem>>, vector<72x128xf32>
    %cst_137 = arith.constant dense<0.000000e+00> : vector<8x128xf32>
    %193 = tpu.matmul %191, %192, %cst_137 {dimension_numbers = #tpu.dot_dimension_numbers<[1], [0], [0], [1], [0, 0, 1, 1], [], []>} : vector<8x72xf32>, vector<72x128xf32>, vector<8x128xf32> -> vector<8x128xf32>
    %194 = arith.addf %190, %193 : vector<8x128xf32>
    %195 = vector.extract_strided_slice %168 {offsets = [4, 0], sizes = [8, 72], strides = [1, 1]} : vector<12x72xf32> to vector<8x72xf32>
    %c288 = arith.constant 288 : index
    %c0_138 = arith.constant 0 : index
    %196 = vector.load %arg7[%c288, %c0_138] : memref<360x128xf32, #tpu.memory_space<vmem>>, vector<72x128xf32>
    %cst_139 = arith.constant dense<0.000000e+00> : vector<8x128xf32>
    %197 = tpu.matmul %195, %196, %cst_139 {dimension_numbers = #tpu.dot_dimension_numbers<[1], [0], [0], [1], [0, 0, 1, 1], [], []>} : vector<8x72xf32>, vector<72x128xf32>, vector<8x128xf32> -> vector<8x128xf32>
    %198 = arith.addf %194, %197 : vector<8x128xf32>
    %199 = vector.broadcast %177 : vector<1x128xf32> to vector<8x128xf32>
    %200 = arith.addf %198, %199 : vector<8x128xf32>
    %cst_140 = arith.constant dense<0.000000e+00> : vector<128xf32>
    %201 = vector.multi_reduction <add>, %200, %cst_140 [0] : vector<8x128xf32> to vector<128xf32>
    %202 = vector.shape_cast %201 : vector<128xf32> to vector<1x128xf32>
    %203 = arith.addf %178, %202 : vector<1x128xf32>
    %204 = arith.mulf %200, %200 : vector<8x128xf32>
    %cst_141 = arith.constant dense<0.000000e+00> : vector<128xf32>
    %205 = vector.multi_reduction <add>, %204, %cst_141 [0] : vector<8x128xf32> to vector<128xf32>
    %206 = vector.shape_cast %205 : vector<128xf32> to vector<1x128xf32>
    %207 = arith.addf %179, %206 : vector<1x128xf32>
    %208 = vector.extract_strided_slice %175 {offsets = [0, 0], sizes = [8, 72], strides = [1, 1]} : vector<12x72xf32> to vector<8x72xf32>
    %c0_142 = arith.constant 0 : index
    %c0_143 = arith.constant 0 : index
    %209 = vector.load %arg7[%c0_142, %c0_143] : memref<360x128xf32, #tpu.memory_space<vmem>>, vector<72x128xf32>
    %cst_144 = arith.constant dense<0.000000e+00> : vector<8x128xf32>
    %210 = tpu.matmul %208, %209, %cst_144 {dimension_numbers = #tpu.dot_dimension_numbers<[1], [0], [0], [1], [0, 0, 1, 1], [], []>} : vector<8x72xf32>, vector<72x128xf32>, vector<8x128xf32> -> vector<8x128xf32>
    %211 = vector.extract_strided_slice %168 {offsets = [2, 0], sizes = [8, 72], strides = [1, 1]} : vector<12x72xf32> to vector<8x72xf32>
    %c72_145 = arith.constant 72 : index
    %c0_146 = arith.constant 0 : index
    %212 = vector.load %arg7[%c72_145, %c0_146] : memref<360x128xf32, #tpu.memory_space<vmem>>, vector<72x128xf32>
    %cst_147 = arith.constant dense<0.000000e+00> : vector<8x128xf32>
    %213 = tpu.matmul %211, %212, %cst_147 {dimension_numbers = #tpu.dot_dimension_numbers<[1], [0], [0], [1], [0, 0, 1, 1], [], []>} : vector<8x72xf32>, vector<72x128xf32>, vector<8x128xf32> -> vector<8x128xf32>
    %214 = arith.addf %210, %213 : vector<8x128xf32>
    %215 = vector.extract_strided_slice %175 {offsets = [2, 0], sizes = [8, 72], strides = [1, 1]} : vector<12x72xf32> to vector<8x72xf32>
    %c144_148 = arith.constant 144 : index
    %c0_149 = arith.constant 0 : index
    %216 = vector.load %arg7[%c144_148, %c0_149] : memref<360x128xf32, #tpu.memory_space<vmem>>, vector<72x128xf32>
    %cst_150 = arith.constant dense<0.000000e+00> : vector<8x128xf32>
    %217 = tpu.matmul %215, %216, %cst_150 {dimension_numbers = #tpu.dot_dimension_numbers<[1], [0], [0], [1], [0, 0, 1, 1], [], []>} : vector<8x72xf32>, vector<72x128xf32>, vector<8x128xf32> -> vector<8x128xf32>
    %218 = arith.addf %214, %217 : vector<8x128xf32>
    %219 = vector.extract_strided_slice %168 {offsets = [4, 0], sizes = [8, 72], strides = [1, 1]} : vector<12x72xf32> to vector<8x72xf32>
    %c216_151 = arith.constant 216 : index
    %c0_152 = arith.constant 0 : index
    %220 = vector.load %arg7[%c216_151, %c0_152] : memref<360x128xf32, #tpu.memory_space<vmem>>, vector<72x128xf32>
    %cst_153 = arith.constant dense<0.000000e+00> : vector<8x128xf32>
    %221 = tpu.matmul %219, %220, %cst_153 {dimension_numbers = #tpu.dot_dimension_numbers<[1], [0], [0], [1], [0, 0, 1, 1], [], []>} : vector<8x72xf32>, vector<72x128xf32>, vector<8x128xf32> -> vector<8x128xf32>
    %222 = arith.addf %218, %221 : vector<8x128xf32>
    %223 = vector.extract_strided_slice %175 {offsets = [4, 0], sizes = [8, 72], strides = [1, 1]} : vector<12x72xf32> to vector<8x72xf32>
    %c288_154 = arith.constant 288 : index
    %c0_155 = arith.constant 0 : index
    %224 = vector.load %arg7[%c288_154, %c0_155] : memref<360x128xf32, #tpu.memory_space<vmem>>, vector<72x128xf32>
    %cst_156 = arith.constant dense<0.000000e+00> : vector<8x128xf32>
    %225 = tpu.matmul %223, %224, %cst_156 {dimension_numbers = #tpu.dot_dimension_numbers<[1], [0], [0], [1], [0, 0, 1, 1], [], []>} : vector<8x72xf32>, vector<72x128xf32>, vector<8x128xf32> -> vector<8x128xf32>
    %226 = arith.addf %222, %225 : vector<8x128xf32>
    %227 = vector.broadcast %177 : vector<1x128xf32> to vector<8x128xf32>
    %228 = arith.addf %226, %227 : vector<8x128xf32>
    %cst_157 = arith.constant dense<0.000000e+00> : vector<128xf32>
    %229 = vector.multi_reduction <add>, %228, %cst_157 [0] : vector<8x128xf32> to vector<128xf32>
    %230 = vector.shape_cast %229 : vector<128xf32> to vector<1x128xf32>
    %231 = arith.addf %203, %230 : vector<1x128xf32>
    %232 = arith.mulf %228, %228 : vector<8x128xf32>
    %cst_158 = arith.constant dense<0.000000e+00> : vector<128xf32>
    %233 = vector.multi_reduction <add>, %232, %cst_158 [0] : vector<8x128xf32> to vector<128xf32>
    %234 = vector.shape_cast %233 : vector<128xf32> to vector<1x128xf32>
    %235 = arith.addf %207, %234 : vector<1x128xf32>
    %c0_159 = arith.constant 0 : index
    %c0_160 = arith.constant 0 : index
    %236 = vector.load %arg11[%c0_159, %c0_160] : memref<128x16xf32, #tpu.memory_space<vmem>>, vector<128x16xf32>
    %cst_161 = arith.constant dense<0.000000e+00> : vector<1x16xf32>
    %237 = tpu.matmul %231, %236, %cst_161 {dimension_numbers = #tpu.dot_dimension_numbers<[1], [0], [0], [1], [0, 0, 1, 1], [], []>} : vector<1x128xf32>, vector<128x16xf32>, vector<1x16xf32> -> vector<1x16xf32>
    %cst_162 = arith.constant 1.280000e+02 : f32
    %238 = vector.broadcast %cst_162 : f32 to vector<1x16xf32>
    %239 = arith.divf %237, %238 : vector<1x16xf32>
    %c0_163 = arith.constant 0 : index
    %c0_164 = arith.constant 0 : index
    %240 = vector.load %arg11[%c0_163, %c0_164] : memref<128x16xf32, #tpu.memory_space<vmem>>, vector<128x16xf32>
    %cst_165 = arith.constant dense<0.000000e+00> : vector<1x16xf32>
    %241 = tpu.matmul %235, %240, %cst_165 {dimension_numbers = #tpu.dot_dimension_numbers<[1], [0], [0], [1], [0, 0, 1, 1], [], []>} : vector<1x128xf32>, vector<128x16xf32>, vector<1x16xf32> -> vector<1x16xf32>
    %cst_166 = arith.constant 1.280000e+02 : f32
    %242 = vector.broadcast %cst_166 : f32 to vector<1x16xf32>
    %243 = arith.divf %241, %242 : vector<1x16xf32>
    %244 = arith.mulf %239, %239 : vector<1x16xf32>
    %245 = arith.subf %243, %244 : vector<1x16xf32>
    %c0_167 = arith.constant 0 : index
    %c0_168 = arith.constant 0 : index
    %246 = vector.load %arg9[%c0_167, %c0_168] : memref<1x16xf32, #tpu.memory_space<vmem>>, vector<1x16xf32>
    %cst_169 = arith.constant 9.99999974E-6 : f32
    %247 = vector.broadcast %cst_169 : f32 to vector<1x16xf32>
    %248 = arith.addf %245, %247 : vector<1x16xf32>
    %249 = math.rsqrt %248 : vector<1x16xf32>
    %250 = arith.mulf %246, %249 : vector<1x16xf32>
    %c0_170 = arith.constant 0 : index
    %c0_171 = arith.constant 0 : index
    %251 = vector.load %arg10[%c0_170, %c0_171] : memref<1x16xf32, #tpu.memory_space<vmem>>, vector<1x16xf32>
    %252 = arith.mulf %239, %250 : vector<1x16xf32>
    %253 = arith.subf %251, %252 : vector<1x16xf32>
    %cst_172 = arith.constant dense<0.000000e+00> : vector<1x128xf32>
    %254 = tpu.matmul %250, %1, %cst_172 {dimension_numbers = #tpu.dot_dimension_numbers<[1], [0], [0], [1], [0, 0, 1, 1], [], []>} : vector<1x16xf32>, vector<16x128xf32>, vector<1x128xf32> -> vector<1x128xf32>
    %cst_173 = arith.constant dense<0.000000e+00> : vector<1x128xf32>
    %255 = tpu.matmul %253, %1, %cst_173 {dimension_numbers = #tpu.dot_dimension_numbers<[1], [0], [0], [1], [0, 0, 1, 1], [], []>} : vector<1x16xf32>, vector<16x128xf32>, vector<1x128xf32> -> vector<1x128xf32>
    %256 = vector.broadcast %254 : vector<1x128xf32> to vector<8x128xf32>
    %257 = arith.mulf %200, %256 : vector<8x128xf32>
    %258 = vector.broadcast %255 : vector<1x128xf32> to vector<8x128xf32>
    %259 = arith.addf %257, %258 : vector<8x128xf32>
    %cst_174 = arith.constant 0.000000e+00 : f32
    %260 = vector.broadcast %cst_174 : f32 to vector<8x128xf32>
    %261 = arith.maximumf %259, %260 : vector<8x128xf32>
    %262 = vector.broadcast %254 : vector<1x128xf32> to vector<8x128xf32>
    %263 = arith.mulf %228, %262 : vector<8x128xf32>
    %264 = vector.broadcast %255 : vector<1x128xf32> to vector<8x128xf32>
    %265 = arith.addf %263, %264 : vector<8x128xf32>
    %cst_175 = arith.constant 0.000000e+00 : f32
    %266 = vector.broadcast %cst_175 : f32 to vector<8x128xf32>
    %267 = arith.maximumf %265, %266 : vector<8x128xf32>
    %268 = vector.extract_strided_slice %261 {offsets = [0, 0], sizes = [8, 64], strides = [1, 1]} : vector<8x128xf32> to vector<8x64xf32>
    %269 = vector.extract_strided_slice %261 {offsets = [0, 64], sizes = [8, 64], strides = [1, 1]} : vector<8x128xf32> to vector<8x64xf32>
    %270 = arith.maximumf %268, %269 : vector<8x64xf32>
    %271 = vector.extract_strided_slice %267 {offsets = [0, 0], sizes = [8, 64], strides = [1, 1]} : vector<8x128xf32> to vector<8x64xf32>
    %272 = vector.extract_strided_slice %267 {offsets = [0, 64], sizes = [8, 64], strides = [1, 1]} : vector<8x128xf32> to vector<8x64xf32>
    %273 = arith.maximumf %271, %272 : vector<8x64xf32>
    %274 = arith.maximumf %270, %273 : vector<8x64xf32>
    %275 = vector.extract_strided_slice %274 {offsets = [0, 0], sizes = [2, 64], strides = [1, 1]} : vector<8x64xf32> to vector<2x64xf32>
    %c0_176 = arith.constant 0 : index
    %c0_177 = arith.constant 0 : index
    %276 = vector.load %arg13[%c0_176, %c0_177] : memref<256x120xf32, #tpu.memory_space<vmem>>, vector<64x120xf32>
    %cst_178 = arith.constant dense<0.000000e+00> : vector<2x120xf32>
    %277 = tpu.matmul %275, %276, %cst_178 {dimension_numbers = #tpu.dot_dimension_numbers<[1], [0], [0], [1], [0, 0, 1, 1], [], []>} : vector<2x64xf32>, vector<64x120xf32>, vector<2x120xf32> -> vector<2x120xf32>
    %278 = vector.extract_strided_slice %274 {offsets = [2, 0], sizes = [2, 64], strides = [1, 1]} : vector<8x64xf32> to vector<2x64xf32>
    %c64 = arith.constant 64 : index
    %c0_179 = arith.constant 0 : index
    %279 = vector.load %arg13[%c64, %c0_179] : memref<256x120xf32, #tpu.memory_space<vmem>>, vector<64x120xf32>
    %cst_180 = arith.constant dense<0.000000e+00> : vector<2x120xf32>
    %280 = tpu.matmul %278, %279, %cst_180 {dimension_numbers = #tpu.dot_dimension_numbers<[1], [0], [0], [1], [0, 0, 1, 1], [], []>} : vector<2x64xf32>, vector<64x120xf32>, vector<2x120xf32> -> vector<2x120xf32>
    %281 = arith.addf %277, %280 : vector<2x120xf32>
    %282 = vector.extract_strided_slice %274 {offsets = [4, 0], sizes = [2, 64], strides = [1, 1]} : vector<8x64xf32> to vector<2x64xf32>
    %c128 = arith.constant 128 : index
    %c0_181 = arith.constant 0 : index
    %283 = vector.load %arg13[%c128, %c0_181] : memref<256x120xf32, #tpu.memory_space<vmem>>, vector<64x120xf32>
    %cst_182 = arith.constant dense<0.000000e+00> : vector<2x120xf32>
    %284 = tpu.matmul %282, %283, %cst_182 {dimension_numbers = #tpu.dot_dimension_numbers<[1], [0], [0], [1], [0, 0, 1, 1], [], []>} : vector<2x64xf32>, vector<64x120xf32>, vector<2x120xf32> -> vector<2x120xf32>
    %285 = arith.addf %281, %284 : vector<2x120xf32>
    %286 = vector.extract_strided_slice %274 {offsets = [6, 0], sizes = [2, 64], strides = [1, 1]} : vector<8x64xf32> to vector<2x64xf32>
    %c192 = arith.constant 192 : index
    %c0_183 = arith.constant 0 : index
    %287 = vector.load %arg13[%c192, %c0_183] : memref<256x120xf32, #tpu.memory_space<vmem>>, vector<64x120xf32>
    %cst_184 = arith.constant dense<0.000000e+00> : vector<2x120xf32>
    %288 = tpu.matmul %286, %287, %cst_184 {dimension_numbers = #tpu.dot_dimension_numbers<[1], [0], [0], [1], [0, 0, 1, 1], [], []>} : vector<2x64xf32>, vector<64x120xf32>, vector<2x120xf32> -> vector<2x120xf32>
    %289 = arith.addf %285, %288 : vector<2x120xf32>
    %c0_185 = arith.constant 0 : index
    %c0_186 = arith.constant 0 : index
    %290 = vector.load %arg14[%c0_185, %c0_186] : memref<1x120xf32, #tpu.memory_space<vmem>>, vector<1x120xf32>
    %291 = vector.broadcast %290 : vector<1x120xf32> to vector<2x120xf32>
    %292 = arith.addf %289, %291 : vector<2x120xf32>
    %cst_187 = arith.constant 0.000000e+00 : f32
    %293 = vector.broadcast %cst_187 : f32 to vector<2x120xf32>
    %294 = arith.maximumf %292, %293 : vector<2x120xf32>
    %c0_188 = arith.constant 0 : index
    %c0_189 = arith.constant 0 : index
    %295 = vector.load %arg15[%c0_188, %c0_189] : memref<120x84xf32, #tpu.memory_space<vmem>>, vector<120x84xf32>
    %cst_190 = arith.constant dense<0.000000e+00> : vector<2x84xf32>
    %296 = tpu.matmul %294, %295, %cst_190 {dimension_numbers = #tpu.dot_dimension_numbers<[1], [0], [0], [1], [0, 0, 1, 1], [], []>} : vector<2x120xf32>, vector<120x84xf32>, vector<2x84xf32> -> vector<2x84xf32>
    %c0_191 = arith.constant 0 : index
    %c0_192 = arith.constant 0 : index
    %297 = vector.load %arg16[%c0_191, %c0_192] : memref<1x84xf32, #tpu.memory_space<vmem>>, vector<1x84xf32>
    %298 = vector.broadcast %297 : vector<1x84xf32> to vector<2x84xf32>
    %299 = arith.addf %296, %298 : vector<2x84xf32>
    %cst_193 = arith.constant 0.000000e+00 : f32
    %300 = vector.broadcast %cst_193 : f32 to vector<2x84xf32>
    %301 = arith.maximumf %299, %300 : vector<2x84xf32>
    %c0_194 = arith.constant 0 : index
    %c0_195 = arith.constant 0 : index
    %302 = vector.load %arg17[%c0_194, %c0_195] : memref<84x128xf32, #tpu.memory_space<vmem>>, vector<84x128xf32>
    %cst_196 = arith.constant dense<0.000000e+00> : vector<2x128xf32>
    %303 = tpu.matmul %301, %302, %cst_196 {dimension_numbers = #tpu.dot_dimension_numbers<[1], [0], [0], [1], [0, 0, 1, 1], [], []>} : vector<2x84xf32>, vector<84x128xf32>, vector<2x128xf32> -> vector<2x128xf32>
    %c0_197 = arith.constant 0 : index
    %c0_198 = arith.constant 0 : index
    %304 = vector.load %arg18[%c0_197, %c0_198] : memref<1x128xf32, #tpu.memory_space<vmem>>, vector<1x128xf32>
    %305 = vector.broadcast %304 : vector<1x128xf32> to vector<2x128xf32>
    %306 = arith.addf %303, %305 : vector<2x128xf32>
    %cst_199 = arith.constant 0.000000e+00 : f32
    %307 = vector.broadcast %cst_199 : f32 to vector<2x128xf32>
    %308 = arith.maximumf %306, %307 : vector<2x128xf32>
    %c0_200 = arith.constant 0 : index
    %c0_201 = arith.constant 0 : index
    %309 = vector.load %arg19[%c0_200, %c0_201] : memref<2x128xf32, #tpu.memory_space<vmem>>, vector<2x128xf32>
    tpu.vector_store %arg19[%c0_200, %c0_201], %308 {strides = array<i32>} : memref<2x128xf32, #tpu.memory_space<vmem>>, vector<2x128xf32>,
    return
  }
}

</mosaic_0001>

<llo_original>
// kernel: tile.24
$region0: #{tile.24}
  %s0 = inlined_call_operand.vmem [shape: f32[24,6,6], index: 0, kind: input, shape index: {}]
  %s1 = inlined_call_operand.vmem [shape: f32[144,6], index: 1, kind: output, shape index: {}]
  %v2 = vld [vmem:[%s0] ss:$24 sm:$0xf]
  %s3 = smov 48
  %v4 = vld [vmem:[%s0] ss:$24 sm:%s3]
  %vm5 = vcmask 1045508
  %v6 = vsel %vm5, %v4, %v2
  %vm7 = vcmask 48128
  %8 = vst.msk [vmem:[%s1] sm:$0x3f] %vm7, %v6
  %s9 = scalar_lea.vmem %s0, 21
  %v10 = vld [vmem:[%s9] ss:$24 sm:$0xf]
  %s11 = scalar_lea.vmem %s0, 21
  %s12 = smov 48
  %v13 = vld [vmem:[%s11] ss:$24 sm:%s12]
  %vm14 = vcmask 1045508
  %v15 = vsel %vm14, %v13, %v10
  %s16 = scalar_lea.vmem %s0, 21
  %v17 = vld [vmem:[%s16] ss:$24 sm:$0xf]
  %s18 = scalar_lea.vmem %s0, 21
  %s19 = smov 48
  %v20 = vld [vmem:[%s18] ss:$24 sm:%s19]
  %vm21 = vcmask 1045508
  %v22 = vsel %vm21, %v20, %v17
  %vm23 = vcmask 15360
  %v24 = vsel %vm23, %v22, %v15
  %25 = vrot.lane.b32.xlu0 %v24, 126
  %v26 = vpop.permute.xlu0 %25
  %vm27 = vcmask 31744
  %s28 = scalar_lea.vmem %s1, 8
  %29 = vst.msk [vmem:[%s28] sm:$0x3f] %vm27, %v26
  %vm30 = vcmask 1048560
  %31 = vst.msk [vmem:[%s1] sm:$0x3f] %vm30, %v26
  %s32 = scalar_lea.vmem %s0, 20
  %v33 = vld [vmem:[%s32] ss:$24 sm:$0xf]
  %s34 = scalar_lea.vmem %s0, 20
  %s35 = smov 48
  %v36 = vld [vmem:[%s34] ss:$24 sm:%s35]
  %vm37 = vcmask 1045508
  %v38 = vsel %vm37, %v36, %v33
  %39 = vrot.lane.b32.xlu0 %v38, 120
  %v40 = vpop.permute.xlu0 %39
  %vm41 = vcmask 1032128
  %42 = vst.msk [vmem:[%s1] sm:$0x3f] %vm41, %v40
  %s43 = scalar_lea.vmem %s0, 19
  %v44 = vld [vmem:[%s43] ss:$24 sm:$0xf]
  %s45 = scalar_lea.vmem %s0, 19
  %s46 = smov 48
  %v47 = vld [vmem:[%s45] ss:$24 sm:%s46]
  %vm48 = vcmask 1045508
  %v49 = vsel %vm48, %v47, %v44
  %50 = vrot.lane.b32.xlu0 %v49, 114
  %v51 = vpop.permute.xlu0 %50
  %vm52 = vcmask 982928
  %53 = vst.msk [vmem:[%s1] sm:$0x3f] %vm52, %v51
  %s54 = scalar_lea.vmem %s0, 18
  %v55 = vld [vmem:[%s54] ss:$24 sm:$0xf]
  %s56 = scalar_lea.vmem %s0, 18
  %s57 = smov 48
  %v58 = vld [vmem:[%s56] ss:$24 sm:%s57]
  %vm59 = vcmask 1045508
  %v60 = vsel %vm59, %v58, %v55
  %61 = vrot.lane.b32.xlu0 %v60, 108
  %v62 = vpop.permute.xlu0 %61
  %vm63 = vcmask 933728
  %64 = vst.msk [vmem:[%s1] sm:$0x3f] %vm63, %v62
  %s65 = scalar_lea.vmem %s0, 17
  %v66 = vld [vmem:[%s65] ss:$24 sm:$0xf]
  %s67 = scalar_lea.vmem %s0, 17
  %s68 = smov 48
  %v69 = vld [vmem:[%s67] ss:$24 sm:%s68]
  %vm70 = vcmask 1045508
  %v71 = vsel %vm70, %v69, %v66
  %72 = vrot.lane.b32.xlu0 %v71, 102
  %v73 = vpop.permute.xlu0 %72
  %vm74 = vcmask 884528
  %75 = vst.msk [vmem:[%s1] sm:$0x3f] %vm74, %v73
  %s76 = scalar_lea.vmem %s0, 16
  %v77 = vld [vmem:[%s76] ss:$24 sm:$0xf]
  %s78 = scalar_lea.vmem %s0, 16
  %s79 = smov 48
  %v80 = vld [vmem:[%s78] ss:$24 sm:%s79]
  %vm81 = vcmask 1045508
  %v82 = vsel %vm81, %v80, %v77
  %83 = vrot.lane.b32.xlu0 %v82, 96
  %v84 = vpop.permute.xlu0 %83
  %vm85 = vcmask 835328
  %86 = vst.msk [vmem:[%s1] sm:$0x3f] %vm85, %v84
  %s87 = scalar_lea.vmem %s0, 15
  %v88 = vld [vmem:[%s87] ss:$24 sm:$0xf]
  %s89 = scalar_lea.vmem %s0, 15
  %s90 = smov 48
  %v91 = vld [vmem:[%s89] ss:$24 sm:%s90]
  %vm92 = vcmask 1045508
  %v93 = vsel %vm92, %v91, %v88
  %94 = vrot.lane.b32.xlu0 %v93, 90
  %v95 = vpop.permute.xlu0 %94
  %vm96 = vcmask 786128
  %97 = vst.msk [vmem:[%s1] sm:$0x3f] %vm96, %v95
  %s98 = scalar_lea.vmem %s0, 14
  %v99 = vld [vmem:[%s98] ss:$24 sm:$0xf]
  %s100 = scalar_lea.vmem %s0, 14
  %s101 = smov 48
  %v102 = vld [vmem:[%s100] ss:$24 sm:%s101]
  %vm103 = vcmask 1045508
  %v104 = vsel %vm103, %v102, %v99
  %105 = vrot.lane.b32.xlu0 %v104, 84
  %v106 = vpop.permute.xlu0 %105
  %vm107 = vcmask 736928
  %108 = vst.msk [vmem:[%s1] sm:$0x3f] %vm107, %v106
  %s109 = scalar_lea.vmem %s0, 13
  %v110 = vld [vmem:[%s109] ss:$24 sm:$0xf]
  %s111 = scalar_lea.vmem %s0, 13
  %s112 = smov 48
  %v113 = vld [vmem:[%s111] ss:$24 sm:%s112]
  %vm114 = vcmask 1045508
  %v115 = vsel %vm114, %v113, %v110
  %116 = vrot.lane.b32.xlu0 %v115, 78
  %v117 = vpop.permute.xlu0 %116
  %vm118 = vcmask 687728
  %119 = vst.msk [vmem:[%s1] sm:$0x3f] %vm118, %v117
  %s120 = scalar_lea.vmem %s0, 12
  %v121 = vld [vmem:[%s120] ss:$24 sm:$0xf]
  %s122 = scalar_lea.vmem %s0, 12
  %s123 = smov 48
  %v124 = vld [vmem:[%s122] ss:$24 sm:%s123]
  %vm125 = vcmask 1045508
  %v126 = vsel %vm125, %v124, %v121
  %127 = vrot.lane.b32.xlu0 %v126, 72
  %v128 = vpop.permute.xlu0 %127
  %vm129 = vcmask 638528
  %130 = vst.msk [vmem:[%s1] sm:$0x3f] %vm129, %v128
  %s131 = scalar_lea.vmem %s0, 11
  %v132 = vld [vmem:[%s131] ss:$24 sm:$0xf]
  %s133 = scalar_lea.vmem %s0, 11
  %s134 = smov 48
  %v135 = vld [vmem:[%s133] ss:$24 sm:%s134]
  %vm136 = vcmask 1045508
  %v137 = vsel %vm136, %v135, %v132
  %138 = vrot.lane.b32.xlu0 %v137, 66
  %v139 = vpop.permute.xlu0 %138
  %vm140 = vcmask 589328
  %141 = vst.msk [vmem:[%s1] sm:$0x3f] %vm140, %v139
  %s142 = scalar_lea.vmem %s0, 10
  %v143 = vld [vmem:[%s142] ss:$24 sm:$0xf]
  %s144 = scalar_lea.vmem %s0, 10
  %s145 = smov 48
  %v146 = vld [vmem:[%s144] ss:$24 sm:%s145]
  %vm147 = vcmask 1045508
  %v148 = vsel %vm147, %v146, %v143
  %149 = vrot.lane.b32.xlu0 %v148, 60
  %v150 = vpop.permute.xlu0 %149
  %vm151 = vcmask 540128
  %152 = vst.msk [vmem:[%s1] sm:$0x3f] %vm151, %v150
  %s153 = scalar_lea.vmem %s0, 9
  %v154 = vld [vmem:[%s153] ss:$24 sm:$0xf]
  %s155 = scalar_lea.vmem %s0, 9
  %s156 = smov 48
  %v157 = vld [vmem:[%s155] ss:$24 sm:%s156]
  %vm158 = vcmask 1045508
  %v159 = vsel %vm158, %v157, %v154
  %160 = vrot.lane.b32.xlu0 %v159, 54
  %v161 = vpop.permute.xlu0 %160
  %vm162 = vcmask 490928
  %163 = vst.msk [vmem:[%s1] sm:$0x3f] %vm162, %v161
  %s164 = scalar_lea.vmem %s0, 8
  %v165 = vld [vmem:[%s164] ss:$24 sm:$0xf]
  %s166 = scalar_lea.vmem %s0, 8
  %s167 = smov 48
  %v168 = vld [vmem:[%s166] ss:$24 sm:%s167]
  %vm169 = vcmask 1045508
  %v170 = vsel %vm169, %v168, %v165
  %171 = vrot.lane.b32.xlu0 %v170, 48
  %v172 = vpop.permute.xlu0 %171
  %vm173 = vcmask 441728
  %174 = vst.msk [vmem:[%s1] sm:$0x3f] %vm173, %v172
  %s175 = scalar_lea.vmem %s0, 7
  %v176 = vld [vmem:[%s175] ss:$24 sm:$0xf]
  %s177 = scalar_lea.vmem %s0, 7
  %s178 = smov 48
  %v179 = vld [vmem:[%s177] ss:$24 sm:%s178]
  %vm180 = vcmask 1045508
  %v181 = vsel %vm180, %v179, %v176
  %182 = vrot.lane.b32.xlu0 %v181, 42
  %v183 = vpop.permute.xlu0 %182
  %vm184 = vcmask 392528
  %185 = vst.msk [vmem:[%s1] sm:$0x3f] %vm184, %v183
  %s186 = scalar_lea.vmem %s0, 6
  %v187 = vld [vmem:[%s186] ss:$24 sm:$0xf]
  %s188 = scalar_lea.vmem %s0, 6
  %s189 = smov 48
  %v190 = vld [vmem:[%s188] ss:$24 sm:%s189]
  %vm191 = vcmask 1045508
  %v192 = vsel %vm191, %v190, %v187
  %193 = vrot.lane.b32.xlu0 %v192, 36
  %v194 = vpop.permute.xlu0 %193
  %vm195 = vcmask 343328
  %196 = vst.msk [vmem:[%s1] sm:$0x3f] %vm195, %v194
  %s197 = scalar_lea.vmem %s0, 5
  %v198 = vld [vmem:[%s197] ss:$24 sm:$0xf]
  %s199 = scalar_lea.vmem %s0, 5
  %s200 = smov 48
  %v201 = vld [vmem:[%s199] ss:$24 sm:%s200]
  %vm202 = vcmask 1045508
  %v203 = vsel %vm202, %v201, %v198
  %204 = vrot.lane.b32.xlu0 %v203, 30
  %v205 = vpop.permute.xlu0 %204
  %vm206 = vcmask 294128
  %207 = vst.msk [vmem:[%s1] sm:$0x3f] %vm206, %v205
  %s208 = scalar_lea.vmem %s0, 4
  %v209 = vld [vmem:[%s208] ss:$24 sm:$0xf]
  %s210 = scalar_lea.vmem %s0, 4
  %s211 = smov 48
  %v212 = vld [vmem:[%s210] ss:$24 sm:%s211]
  %vm213 = vcmask 1045508
  %v214 = vsel %vm213, %v212, %v209
  %215 = vrot.lane.b32.xlu0 %v214, 24
  %v216 = vpop.permute.xlu0 %215
  %vm217 = vcmask 244928
  %218 = vst.msk [vmem:[%s1] sm:$0x3f] %vm217, %v216
  %s219 = scalar_lea.vmem %s0, 3
  %v220 = vld [vmem:[%s219] ss:$24 sm:$0xf]
  %s221 = scalar_lea.vmem %s0, 3
  %s222 = smov 48
  %v223 = vld [vmem:[%s221] ss:$24 sm:%s222]
  %vm224 = vcmask 1045508
  %v225 = vsel %vm224, %v223, %v220
  %226 = vrot.lane.b32.xlu0 %v225, 18
  %v227 = vpop.permute.xlu0 %226
  %vm228 = vcmask 195728
  %229 = vst.msk [vmem:[%s1] sm:$0x3f] %vm228, %v227
  %s230 = scalar_lea.vmem %s0, 2
  %v231 = vld [vmem:[%s230] ss:$24 sm:$0xf]
  %s232 = scalar_lea.vmem %s0, 2
  %s233 = smov 48
  %v234 = vld [vmem:[%s232] ss:$24 sm:%s233]
  %vm235 = vcmask 1045508
  %v236 = vsel %vm235, %v234, %v231
  %237 = vrot.lane.b32.xlu0 %v236, 12
  %v238 = vpop.permute.xlu0 %237
  %vm239 = vcmask 146528
  %240 = vst.msk [vmem:[%s1] sm:$0x3f] %vm239, %v238
  %s241 = scalar_lea.vmem %s0, 23
  %v242 = vld [vmem:[%s241] ss:$24 sm:$0xf]
  %s243 = scalar_lea.vmem %s0, 23
  %s244 = smov 48
  %v245 = vld [vmem:[%s243] ss:$24 sm:%s244]
  %vm246 = vcmask 1045508
  %v247 = vsel %vm246, %v245, %v242
  %248 = vrot.lane.b32.xlu0 %v247, 10
  %v249 = vpop.permute.xlu0 %248
  %vm250 = vcmask 130128
  %s251 = scalar_lea.vmem %s1, 8
  %252 = vst.msk [vmem:[%s251] sm:$0x3f] %vm250, %v249
  %s253 = scalar_lea.vmem %s0, 1
  %v254 = vld [vmem:[%s253] ss:$24 sm:$0xf]
  %s255 = scalar_lea.vmem %s0, 1
  %s256 = smov 48
  %v257 = vld [vmem:[%s255] ss:$24 sm:%s256]
  %vm258 = vcmask 1045508
  %v259 = vsel %vm258, %v257, %v254
  %260 = vrot.lane.b32.xlu0 %v259, 6
  %v261 = vpop.permute.xlu0 %260
  %vm262 = vcmask 97328
  %263 = vst.msk [vmem:[%s1] sm:$0x3f] %vm262, %v261
  %s264 = scalar_lea.vmem %s0, 22
  %v265 = vld [vmem:[%s264] ss:$24 sm:$0xf]
  %s266 = scalar_lea.vmem %s0, 22
  %s267 = smov 48
  %v268 = vld [vmem:[%s266] ss:$24 sm:%s267]
  %vm269 = vcmask 1045508
  %v270 = vsel %vm269, %v268, %v265
  %271 = vrot.lane.b32.xlu0 %v270, 4
  %v272 = vpop.permute.xlu0 %271
  %vm273 = vcmask 80928
  %s274 = scalar_lea.vmem %s1, 8
  %275 = vst.msk [vmem:[%s274] sm:$0x3f] %vm273, %v272

// kernel: tile.29
$region0: #{tile.29}
  %s0 = inlined_call_operand.vmem [shape: f32[6,24,6], index: 0, kind: input, shape index: {}]
  %s1 = inlined_call_operand.vmem [shape: f32[6,144], index: 1, kind: output, shape index: {}]
  %v2 = vld [vmem:[%s0] ss:$24 sm:$0xf]
  %s3 = smov 48
  %v4 = vld [vmem:[%s0] ss:$24 sm:%s3]
  %vm5 = vcmask 1045508
  %v6 = vsel %vm5, %v4, %v2
  %vm7 = vcmask 48128
  %8 = vst.msk [vmem:[%s1] sm:$0x3f] %vm7, %v6
  %s9 = scalar_lea.vmem %s0, 21
  %v10 = vld [vmem:[%s9] ss:$24 sm:$0xf]
  %s11 = scalar_lea.vmem %s0, 21
  %s12 = smov 48
  %v13 = vld [vmem:[%s11] ss:$24 sm:%s12]
  %vm14 = vcmask 1045508
  %v15 = vsel %vm14, %v13, %v10
  %s16 = scalar_lea.vmem %s0, 21
  %v17 = vld [vmem:[%s16] ss:$24 sm:$0xf]
  %s18 = scalar_lea.vmem %s0, 21
  %s19 = smov 48
  %v20 = vld [vmem:[%s18] ss:$24 sm:%s19]
  %vm21 = vcmask 1045508
  %v22 = vsel %vm21, %v20, %v17
  %vm23 = vcmask 15360
  %v24 = vsel %vm23, %v22, %v15
  %25 = vrot.lane.b32.xlu0 %v24, 126
  %v26 = vpop.permute.xlu0 %25
  %vm27 = vcmask 31744
  %s28 = scalar_lea.vmem %s1, 8
  %29 = vst.msk [vmem:[%s28] sm:$0x3f] %vm27, %v26
  %vm30 = vcmask 1048560
  %31 = vst.msk [vmem:[%s1] sm:$0x3f] %vm30, %v26
  %s32 = scalar_lea.vmem %s0, 20
  %v33 = vld [vmem:[%s32] ss:$24 sm:$0xf]
  %s34 = scalar_lea.vmem %s0, 20
  %s35 = smov 48
  %v36 = vld [vmem:[%s34] ss:$24 sm:%s35]
  %vm37 = vcmask 1045508
  %v38 = vsel %vm37, %v36, %v33
  %39 = vrot.lane.b32.xlu0 %v38, 120
  %v40 = vpop.permute.xlu0 %39
  %vm41 = vcmask 1032128
  %42 = vst.msk [vmem:[%s1] sm:$0x3f] %vm41, %v40
  %s43 = scalar_lea.vmem %s0, 19
  %v44 = vld [vmem:[%s43] ss:$24 sm:$0xf]
  %s45 = scalar_lea.vmem %s0, 19
  %s46 = smov 48
  %v47 = vld [vmem:[%s45] ss:$24 sm:%s46]
  %vm48 = vcmask 1045508
  %v49 = vsel %vm48, %v47, %v44
  %50 = vrot.lane.b32.xlu0 %v49, 114
  %v51 = vpop.permute.xlu0 %50
  %vm52 = vcmask 982928
  %53 = vst.msk [vmem:[%s1] sm:$0x3f] %vm52, %v51
  %s54 = scalar_lea.vmem %s0, 18
  %v55 = vld [vmem:[%s54] ss:$24 sm:$0xf]
  %s56 = scalar_lea.vmem %s0, 18
  %s57 = smov 48
  %v58 = vld [vmem:[%s56] ss:$24 sm:%s57]
  %vm59 = vcmask 1045508
  %v60 = vsel %vm59, %v58, %v55
  %61 = vrot.lane.b32.xlu0 %v60, 108
  %v62 = vpop.permute.xlu0 %61
  %vm63 = vcmask 933728
  %64 = vst.msk [vmem:[%s1] sm:$0x3f] %vm63, %v62
  %s65 = scalar_lea.vmem %s0, 17
  %v66 = vld [vmem:[%s65] ss:$24 sm:$0xf]
  %s67 = scalar_lea.vmem %s0, 17
  %s68 = smov 48
  %v69 = vld [vmem:[%s67] ss:$24 sm:%s68]
  %vm70 = vcmask 1045508
  %v71 = vsel %vm70, %v69, %v66
  %72 = vrot.lane.b32.xlu0 %v71, 102
  %v73 = vpop.permute.xlu0 %72
  %vm74 = vcmask 884528
  %75 = vst.msk [vmem:[%s1] sm:$0x3f] %vm74, %v73
  %s76 = scalar_lea.vmem %s0, 16
  %v77 = vld [vmem:[%s76] ss:$24 sm:$0xf]
  %s78 = scalar_lea.vmem %s0, 16
  %s79 = smov 48
  %v80 = vld [vmem:[%s78] ss:$24 sm:%s79]
  %vm81 = vcmask 1045508
  %v82 = vsel %vm81, %v80, %v77
  %83 = vrot.lane.b32.xlu0 %v82, 96
  %v84 = vpop.permute.xlu0 %83
  %vm85 = vcmask 835328
  %86 = vst.msk [vmem:[%s1] sm:$0x3f] %vm85, %v84
  %s87 = scalar_lea.vmem %s0, 15
  %v88 = vld [vmem:[%s87] ss:$24 sm:$0xf]
  %s89 = scalar_lea.vmem %s0, 15
  %s90 = smov 48
  %v91 = vld [vmem:[%s89] ss:$24 sm:%s90]
  %vm92 = vcmask 1045508
  %v93 = vsel %vm92, %v91, %v88
  %94 = vrot.lane.b32.xlu0 %v93, 90
  %v95 = vpop.permute.xlu0 %94
  %vm96 = vcmask 786128
  %97 = vst.msk [vmem:[%s1] sm:$0x3f] %vm96, %v95
  %s98 = scalar_lea.vmem %s0, 14
  %v99 = vld [vmem:[%s98] ss:$24 sm:$0xf]
  %s100 = scalar_lea.vmem %s0, 14
  %s101 = smov 48
  %v102 = vld [vmem:[%s100] ss:$24 sm:%s101]
  %vm103 = vcmask 1045508
  %v104 = vsel %vm103, %v102, %v99
  %105 = vrot.lane.b32.xlu0 %v104, 84
  %v106 = vpop.permute.xlu0 %105
  %vm107 = vcmask 736928
  %108 = vst.msk [vmem:[%s1] sm:$0x3f] %vm107, %v106
  %s109 = scalar_lea.vmem %s0, 13
  %v110 = vld [vmem:[%s109] ss:$24 sm:$0xf]
  %s111 = scalar_lea.vmem %s0, 13
  %s112 = smov 48
  %v113 = vld [vmem:[%s111] ss:$24 sm:%s112]
  %vm114 = vcmask 1045508
  %v115 = vsel %vm114, %v113, %v110
  %116 = vrot.lane.b32.xlu0 %v115, 78
  %v117 = vpop.permute.xlu0 %116
  %vm118 = vcmask 687728
  %119 = vst.msk [vmem:[%s1] sm:$0x3f] %vm118, %v117
  %s120 = scalar_lea.vmem %s0, 12
  %v121 = vld [vmem:[%s120] ss:$24 sm:$0xf]
  %s122 = scalar_lea.vmem %s0, 12
  %s123 = smov 48
  %v124 = vld [vmem:[%s122] ss:$24 sm:%s123]
  %vm125 = vcmask 1045508
  %v126 = vsel %vm125, %v124, %v121
  %127 = vrot.lane.b32.xlu0 %v126, 72
  %v128 = vpop.permute.xlu0 %127
  %vm129 = vcmask 638528
  %130 = vst.msk [vmem:[%s1] sm:$0x3f] %vm129, %v128
  %s131 = scalar_lea.vmem %s0, 11
  %v132 = vld [vmem:[%s131] ss:$24 sm:$0xf]
  %s133 = scalar_lea.vmem %s0, 11
  %s134 = smov 48
  %v135 = vld [vmem:[%s133] ss:$24 sm:%s134]
  %vm136 = vcmask 1045508
  %v137 = vsel %vm136, %v135, %v132
  %138 = vrot.lane.b32.xlu0 %v137, 66
  %v139 = vpop.permute.xlu0 %138
  %vm140 = vcmask 589328
  %141 = vst.msk [vmem:[%s1] sm:$0x3f] %vm140, %v139
  %s142 = scalar_lea.vmem %s0, 10
  %v143 = vld [vmem:[%s142] ss:$24 sm:$0xf]
  %s144 = scalar_lea.vmem %s0, 10
  %s145 = smov 48
  %v146 = vld [vmem:[%s144] ss:$24 sm:%s145]
  %vm147 = vcmask 1045508
  %v148 = vsel %vm147, %v146, %v143
  %149 = vrot.lane.b32.xlu0 %v148, 60
  %v150 = vpop.permute.xlu0 %149
  %vm151 = vcmask 540128
  %152 = vst.msk [vmem:[%s1] sm:$0x3f] %vm151, %v150
  %s153 = scalar_lea.vmem %s0, 9
  %v154 = vld [vmem:[%s153] ss:$24 sm:$0xf]
  %s155 = scalar_lea.vmem %s0, 9
  %s156 = smov 48
  %v157 = vld [vmem:[%s155] ss:$24 sm:%s156]
  %vm158 = vcmask 1045508
  %v159 = vsel %vm158, %v157, %v154
  %160 = vrot.lane.b32.xlu0 %v159, 54
  %v161 = vpop.permute.xlu0 %160
  %vm162 = vcmask 490928
  %163 = vst.msk [vmem:[%s1] sm:$0x3f] %vm162, %v161
  %s164 = scalar_lea.vmem %s0, 8
  %v165 = vld [vmem:[%s164] ss:$24 sm:$0xf]
  %s166 = scalar_lea.vmem %s0, 8
  %s167 = smov 48
  %v168 = vld [vmem:[%s166] ss:$24 sm:%s167]
  %vm169 = vcmask 1045508
  %v170 = vsel %vm169, %v168, %v165
  %171 = vrot.lane.b32.xlu0 %v170, 48
  %v172 = vpop.permute.xlu0 %171
  %vm173 = vcmask 441728
  %174 = vst.msk [vmem:[%s1] sm:$0x3f] %vm173, %v172
  %s175 = scalar_lea.vmem %s0, 7
  %v176 = vld [vmem:[%s175] ss:$24 sm:$0xf]
  %s177 = scalar_lea.vmem %s0, 7
  %s178 = smov 48
  %v179 = vld [vmem:[%s177] ss:$24 sm:%s178]
  %vm180 = vcmask 1045508
  %v181 = vsel %vm180, %v179, %v176
  %182 = vrot.lane.b32.xlu0 %v181, 42
  %v183 = vpop.permute.xlu0 %182
  %vm184 = vcmask 392528
  %185 = vst.msk [vmem:[%s1] sm:$0x3f] %vm184, %v183
  %s186 = scalar_lea.vmem %s0, 6
  %v187 = vld [vmem:[%s186] ss:$24 sm:$0xf]
  %s188 = scalar_lea.vmem %s0, 6
  %s189 = smov 48
  %v190 = vld [vmem:[%s188] ss:$24 sm:%s189]
  %vm191 = vcmask 1045508
  %v192 = vsel %vm191, %v190, %v187
  %193 = vrot.lane.b32.xlu0 %v192, 36
  %v194 = vpop.permute.xlu0 %193
  %vm195 = vcmask 343328
  %196 = vst.msk [vmem:[%s1] sm:$0x3f] %vm195, %v194
  %s197 = scalar_lea.vmem %s0, 5
  %v198 = vld [vmem:[%s197] ss:$24 sm:$0xf]
  %s199 = scalar_lea.vmem %s0, 5
  %s200 = smov 48
  %v201 = vld [vmem:[%s199] ss:$24 sm:%s200]
  %vm202 = vcmask 1045508
  %v203 = vsel %vm202, %v201, %v198
  %204 = vrot.lane.b32.xlu0 %v203, 30
  %v205 = vpop.permute.xlu0 %204
  %vm206 = vcmask 294128
  %207 = vst.msk [vmem:[%s1] sm:$0x3f] %vm206, %v205
  %s208 = scalar_lea.vmem %s0, 4
  %v209 = vld [vmem:[%s208] ss:$24 sm:$0xf]
  %s210 = scalar_lea.vmem %s0, 4
  %s211 = smov 48
  %v212 = vld [vmem:[%s210] ss:$24 sm:%s211]
  %vm213 = vcmask 1045508
  %v214 = vsel %vm213, %v212, %v209
  %215 = vrot.lane.b32.xlu0 %v214, 24
  %v216 = vpop.permute.xlu0 %215
  %vm217 = vcmask 244928
  %218 = vst.msk [vmem:[%s1] sm:$0x3f] %vm217, %v216
  %s219 = scalar_lea.vmem %s0, 3
  %v220 = vld [vmem:[%s219] ss:$24 sm:$0xf]
  %s221 = scalar_lea.vmem %s0, 3
  %s222 = smov 48
  %v223 = vld [vmem:[%s221] ss:$24 sm:%s222]
  %vm224 = vcmask 1045508
  %v225 = vsel %vm224, %v223, %v220
  %226 = vrot.lane.b32.xlu0 %v225, 18
  %v227 = vpop.permute.xlu0 %226
  %vm228 = vcmask 195728
  %229 = vst.msk [vmem:[%s1] sm:$0x3f] %vm228, %v227
  %s230 = scalar_lea.vmem %s0, 2
  %v231 = vld [vmem:[%s230] ss:$24 sm:$0xf]
  %s232 = scalar_lea.vmem %s0, 2
  %s233 = smov 48
  %v234 = vld [vmem:[%s232] ss:$24 sm:%s233]
  %vm235 = vcmask 1045508
  %v236 = vsel %vm235, %v234, %v231
  %237 = vrot.lane.b32.xlu0 %v236, 12
  %v238 = vpop.permute.xlu0 %237
  %vm239 = vcmask 146528
  %240 = vst.msk [vmem:[%s1] sm:$0x3f] %vm239, %v238
  %s241 = scalar_lea.vmem %s0, 23
  %v242 = vld [vmem:[%s241] ss:$24 sm:$0xf]
  %s243 = scalar_lea.vmem %s0, 23
  %s244 = smov 48
  %v245 = vld [vmem:[%s243] ss:$24 sm:%s244]
  %vm246 = vcmask 1045508
  %v247 = vsel %vm246, %v245, %v242
  %248 = vrot.lane.b32.xlu0 %v247, 10
  %v249 = vpop.permute.xlu0 %248
  %vm250 = vcmask 130128
  %s251 = scalar_lea.vmem %s1, 8
  %252 = vst.msk [vmem:[%s251] sm:$0x3f] %vm250, %v249
  %s253 = scalar_lea.vmem %s0, 1
  %v254 = vld [vmem:[%s253] ss:$24 sm:$0xf]
  %s255 = scalar_lea.vmem %s0, 1
  %s256 = smov 48
  %v257 = vld [vmem:[%s255] ss:$24 sm:%s256]
  %vm258 = vcmask 1045508
  %v259 = vsel %vm258, %v257, %v254
  %260 = vrot.lane.b32.xlu0 %v259, 6
  %v261 = vpop.permute.xlu0 %260
  %vm262 = vcmask 97328
  %263 = vst.msk [vmem:[%s1] sm:$0x3f] %vm262, %v261
  %s264 = scalar_lea.vmem %s0, 22
  %v265 = vld [vmem:[%s264] ss:$24 sm:$0xf]
  %s266 = scalar_lea.vmem %s0, 22
  %s267 = smov 48
  %v268 = vld [vmem:[%s266] ss:$24 sm:%s267]
  %vm269 = vcmask 1045508
  %v270 = vsel %vm269, %v268, %v265
  %271 = vrot.lane.b32.xlu0 %v270, 4
  %v272 = vpop.permute.xlu0 %271
  %vm273 = vcmask 80928
  %s274 = scalar_lea.vmem %s1, 8
  %275 = vst.msk [vmem:[%s274] sm:$0x3f] %vm273, %v272

// kernel: tile.39
$region0: #{tile.39}
  %s0 = inlined_call_operand.vmem [shape: f32[16,8,16], index: 0, kind: input, shape index: {}]
  %s1 = inlined_call_operand.vmem [shape: f32[16,128], index: 1, kind: output, shape index: {}]
  %v2 = vld [vmem:[%s0] ss:$8 sm:$0xf]
  %v3 = vld [vmem:[%s0] ss:$8 sm:$0xf0]
  %vm4 = vcmask 1047556
  %v5 = vsel %vm4, %v3, %v2
  %vm6 = vcmask 130048
  %7 = vst.msk [vmem:[%s1] sm:$0xff] %vm6, %v5
  %s8 = scalar_lea.vmem %s0, 64
  %v9 = vld [vmem:[%s8] ss:$8 sm:$0xf]
  %s10 = scalar_lea.vmem %s0, 64
  %v11 = vld [vmem:[%s10] ss:$8 sm:$0xf0]
  %vm12 = vcmask 1047556
  %v13 = vsel %vm12, %v11, %v9
  %vm14 = vcmask 130048
  %s15 = scalar_lea.vmem %s1, 8
  %16 = vst.msk [vmem:[%s15] sm:$0xff] %vm14, %v13
  %s17 = scalar_lea.vmem %s0, 7
  %v18 = vld [vmem:[%s17] ss:$8 sm:$0xf]
  %s19 = scalar_lea.vmem %s0, 7
  %v20 = vld [vmem:[%s19] ss:$8 sm:$0xf0]
  %vm21 = vcmask 1047556
  %v22 = vsel %vm21, %v20, %v18
  %23 = vrot.lane.b32.xlu0 %v22, 112
  %v24 = vpop.permute.xlu0 %23
  %vm25 = vcmask 1048448
  %26 = vst.msk [vmem:[%s1] sm:$0xff] %vm25, %v24
  %s27 = scalar_lea.vmem %s0, 71
  %v28 = vld [vmem:[%s27] ss:$8 sm:$0xf]
  %s29 = scalar_lea.vmem %s0, 71
  %v30 = vld [vmem:[%s29] ss:$8 sm:$0xf0]
  %vm31 = vcmask 1047556
  %v32 = vsel %vm31, %v30, %v28
  %33 = vrot.lane.b32.xlu0 %v32, 112
  %v34 = vpop.permute.xlu0 %33
  %vm35 = vcmask 1048448
  %s36 = scalar_lea.vmem %s1, 8
  %37 = vst.msk [vmem:[%s36] sm:$0xff] %vm35, %v34
  %s38 = scalar_lea.vmem %s0, 6
  %v39 = vld [vmem:[%s38] ss:$8 sm:$0xf]
  %s40 = scalar_lea.vmem %s0, 6
  %v41 = vld [vmem:[%s40] ss:$8 sm:$0xf0]
  %vm42 = vcmask 1047556
  %v43 = vsel %vm42, %v41, %v39
  %44 = vrot.lane.b32.xlu0 %v43, 96
  %v45 = vpop.permute.xlu0 %44
  %vm46 = vcmask 917248
  %47 = vst.msk [vmem:[%s1] sm:$0xff] %vm46, %v45
  %s48 = scalar_lea.vmem %s0, 70
  %v49 = vld [vmem:[%s48] ss:$8 sm:$0xf]
  %s50 = scalar_lea.vmem %s0, 70
  %v51 = vld [vmem:[%s50] ss:$8 sm:$0xf0]
  %vm52 = vcmask 1047556
  %v53 = vsel %vm52, %v51, %v49
  %54 = vrot.lane.b32.xlu0 %v53, 96
  %v55 = vpop.permute.xlu0 %54
  %vm56 = vcmask 917248
  %s57 = scalar_lea.vmem %s1, 8
  %58 = vst.msk [vmem:[%s57] sm:$0xff] %vm56, %v55
  %s59 = scalar_lea.vmem %s0, 5
  %v60 = vld [vmem:[%s59] ss:$8 sm:$0xf]
  %s61 = scalar_lea.vmem %s0, 5
  %v62 = vld [vmem:[%s61] ss:$8 sm:$0xf0]
  %vm63 = vcmask 1047556
  %v64 = vsel %vm63, %v62, %v60
  %65 = vrot.lane.b32.xlu0 %v64, 80
  %v66 = vpop.permute.xlu0 %65
  %vm67 = vcmask 786048
  %68 = vst.msk [vmem:[%s1] sm:$0xff] %vm67, %v66
  %s69 = scalar_lea.vmem %s0, 69
  %v70 = vld [vmem:[%s69] ss:$8 sm:$0xf]
  %s71 = scalar_lea.vmem %s0, 69
  %v72 = vld [vmem:[%s71] ss:$8 sm:$0xf0]
  %vm73 = vcmask 1047556
  %v74 = vsel %vm73, %v72, %v70
  %75 = vrot.lane.b32.xlu0 %v74, 80
  %v76 = vpop.permute.xlu0 %75
  %vm77 = vcmask 786048
  %s78 = scalar_lea.vmem %s1, 8
  %79 = vst.msk [vmem:[%s78] sm:$0xff] %vm77, %v76
  %s80 = scalar_lea.vmem %s0, 4
  %v81 = vld [vmem:[%s80] ss:$8 sm:$0xf]
  %s82 = scalar_lea.vmem %s0, 4
  %v83 = vld [vmem:[%s82] ss:$8 sm:$0xf0]
  %vm84 = vcmask 1047556
  %v85 = vsel %vm84, %v83, %v81
  %86 = vrot.lane.b32.xlu0 %v85, 64
  %v87 = vpop.permute.xlu0 %86
  %vm88 = vcmask 654848
  %89 = vst.msk [vmem:[%s1] sm:$0xff] %vm88, %v87
  %s90 = scalar_lea.vmem %s0, 68
  %v91 = vld [vmem:[%s90] ss:$8 sm:$0xf]
  %s92 = scalar_lea.vmem %s0, 68
  %v93 = vld [vmem:[%s92] ss:$8 sm:$0xf0]
  %vm94 = vcmask 1047556
  %v95 = vsel %vm94, %v93, %v91
  %96 = vrot.lane.b32.xlu0 %v95, 64
  %v97 = vpop.permute.xlu0 %96
  %vm98 = vcmask 654848
  %s99 = scalar_lea.vmem %s1, 8
  %100 = vst.msk [vmem:[%s99] sm:$0xff] %vm98, %v97
  %s101 = scalar_lea.vmem %s0, 3
  %v102 = vld [vmem:[%s101] ss:$8 sm:$0xf]
  %s103 = scalar_lea.vmem %s0, 3
  %v104 = vld [vmem:[%s103] ss:$8 sm:$0xf0]
  %vm105 = vcmask 1047556
  %v106 = vsel %vm105, %v104, %v102
  %107 = vrot.lane.b32.xlu0 %v106, 48
  %v108 = vpop.permute.xlu0 %107
  %vm109 = vcmask 523648
  %110 = vst.msk [vmem:[%s1] sm:$0xff] %vm109, %v108
  %s111 = scalar_lea.vmem %s0, 67
  %v112 = vld [vmem:[%s111] ss:$8 sm:$0xf]
  %s113 = scalar_lea.vmem %s0, 67
  %v114 = vld [vmem:[%s113] ss:$8 sm:$0xf0]
  %vm115 = vcmask 1047556
  %v116 = vsel %vm115, %v114, %v112
  %117 = vrot.lane.b32.xlu0 %v116, 48
  %v118 = vpop.permute.xlu0 %117
  %vm119 = vcmask 523648
  %s120 = scalar_lea.vmem %s1, 8
  %121 = vst.msk [vmem:[%s120] sm:$0xff] %vm119, %v118
  %s122 = scalar_lea.vmem %s0, 2
  %v123 = vld [vmem:[%s122] ss:$8 sm:$0xf]
  %s124 = scalar_lea.vmem %s0, 2
  %v125 = vld [vmem:[%s124] ss:$8 sm:$0xf0]
  %vm126 = vcmask 1047556
  %v127 = vsel %vm126, %v125, %v123
  %128 = vrot.lane.b32.xlu0 %v127, 32
  %v129 = vpop.permute.xlu0 %128
  %vm130 = vcmask 392448
  %131 = vst.msk [vmem:[%s1] sm:$0xff] %vm130, %v129
  %s132 = scalar_lea.vmem %s0, 66
  %v133 = vld [vmem:[%s132] ss:$8 sm:$0xf]
  %s134 = scalar_lea.vmem %s0, 66
  %v135 = vld [vmem:[%s134] ss:$8 sm:$0xf0]
  %vm136 = vcmask 1047556
  %v137 = vsel %vm136, %v135, %v133
  %138 = vrot.lane.b32.xlu0 %v137, 32
  %v139 = vpop.permute.xlu0 %138
  %vm140 = vcmask 392448
  %s141 = scalar_lea.vmem %s1, 8
  %142 = vst.msk [vmem:[%s141] sm:$0xff] %vm140, %v139
  %s143 = scalar_lea.vmem %s0, 1
  %v144 = vld [vmem:[%s143] ss:$8 sm:$0xf]
  %s145 = scalar_lea.vmem %s0, 1
  %v146 = vld [vmem:[%s145] ss:$8 sm:$0xf0]
  %vm147 = vcmask 1047556
  %v148 = vsel %vm147, %v146, %v144
  %149 = vrot.lane.b32.xlu0 %v148, 16
  %v150 = vpop.permute.xlu0 %149
  %vm151 = vcmask 261248
  %152 = vst.msk [vmem:[%s1] sm:$0xff] %vm151, %v150
  %s153 = scalar_lea.vmem %s0, 65
  %v154 = vld [vmem:[%s153] ss:$8 sm:$0xf]
  %s155 = scalar_lea.vmem %s0, 65
  %v156 = vld [vmem:[%s155] ss:$8 sm:$0xf0]
  %vm157 = vcmask 1047556
  %v158 = vsel %vm157, %v156, %v154
  %159 = vrot.lane.b32.xlu0 %v158, 16
  %v160 = vpop.permute.xlu0 %159
  %vm161 = vcmask 261248
  %s162 = scalar_lea.vmem %s1, 8
  %163 = vst.msk [vmem:[%s162] sm:$0xff] %vm161, %v160

// kernel: lenet_forward.1
$region0: #{lenet_forward.1}
  #allocation0 [shape = 'u32[]', space=smem, size = 0x4, offset = 0x4, fixed_abs, tag = 'smem constant byte address 0x4 - core index']
  #allocation1 [shape = 'u32[144,128]{1,0:T(1,128)}', space=vmem, size = 0x12000, scoped, tag = 'internal scratch']
  %s0 = inlined_call_operand.vmem [shape: f32[56,28], index: 0, kind: input, shape index: {}]
  %s1 = inlined_call_operand.vmem [shape: f32[140,144], index: 1, kind: input, shape index: {}]
  %s2 = inlined_call_operand.vmem [shape: f32[1,6], index: 2, kind: input, shape index: {}]
  %s3 = inlined_call_operand.vmem [shape: f32[1,6], index: 3, kind: input, shape index: {}]
  %s4 = inlined_call_operand.vmem [shape: f32[1,6], index: 4, kind: input, shape index: {}]
  %s5 = inlined_call_operand.vmem [shape: f32[144,6], index: 5, kind: input, shape index: {}]
  %s6 = inlined_call_operand.vmem [shape: f32[6,144], index: 6, kind: input, shape index: {}]
  %s7 = inlined_call_operand.vmem [shape: f32[360,128], index: 7, kind: input, shape index: {}]
  %s8 = inlined_call_operand.vmem [shape: f32[1,16], index: 8, kind: input, shape index: {}]
  %s9 = inlined_call_operand.vmem [shape: f32[1,16], index: 9, kind: input, shape index: {}]
  %s10 = inlined_call_operand.vmem [shape: f32[1,16], index: 10, kind: input, shape index: {}]
  %s11 = inlined_call_operand.vmem [shape: f32[128,16], index: 11, kind: input, shape index: {}]
  %s12 = inlined_call_operand.vmem [shape: f32[16,128], index: 12, kind: input, shape index: {}]
  %s13 = inlined_call_operand.vmem [shape: f32[256,120], index: 13, kind: input, shape index: {}]
  %s14 = inlined_call_operand.vmem [shape: f32[1,120], index: 14, kind: input, shape index: {}]
  %s15 = inlined_call_operand.vmem [shape: f32[120,84], index: 15, kind: input, shape index: {}]
  %s16 = inlined_call_operand.vmem [shape: f32[1,84], index: 16, kind: input, shape index: {}]
  %s17 = inlined_call_operand.vmem [shape: f32[84,128], index: 17, kind: input, shape index: {}]
  %s18 = inlined_call_operand.vmem [shape: f32[1,128], index: 18, kind: input, shape index: {}]
  %s19 = inlined_call_operand.hbm [shape: f32[2,128], index: 19, kind: output, shape index: {}]
  %s20 = sld [smem:[#allocation0]]
  $region86: #{lenet_forward.1} parent=0
    _
  %s22 = ssub.s32 1, %s20
  %s23 = scalar_select 0, %s22, %s20
  $region1: #{lenet_forward.1} parent=0
    #allocation2 [shape = 'u8[1024]{0}', space=vmem, size = 0x400, scoped, tag = 'output window, operand 0, single buffered']
    #allocation3 [shape = 's32[1]{0}', space=sflag, size = 0x4, scoped, tag = 'scoped memory for lenet_forward.1']
    %24 = vsyncpa [#allocation3], 0
    // Predicated region
    $region2: #{lenet_forward.1} parent=1 // pred_check
      _
    $region3: #{lenet_forward.1} parent=1 // pred_check_branch
      %26 = sbr.rel (0) target = $region5
    $region4: #{lenet_forward.1} parent=1 // pred_region
      _
    $region5: #{lenet_forward.1} parent=1 // pred_fallthru
      _
    // Predicated region
    $region6: #{lenet_forward.1} parent=1 // pred_check
      _
    $region7: #{lenet_forward.1} parent=1 // pred_check_branch
      %28 = sbr.rel (0) target = $region9
    $region8: #{lenet_forward.1} parent=1 // pred_region
      _
    $region9: #{lenet_forward.1} parent=1 // pred_fallthru
      _
    // Predicated region
    $region10: #{lenet_forward.1} parent=1 // pred_check
      _
    $region11: #{lenet_forward.1} parent=1 // pred_check_branch
      %30 = sbr.rel (0) target = $region13
    $region12: #{lenet_forward.1} parent=1 // pred_region
      _
    $region13: #{lenet_forward.1} parent=1 // pred_fallthru
      _
    // Predicated region
    $region14: #{lenet_forward.1} parent=1 // pred_check
      _
    $region15: #{lenet_forward.1} parent=1 // pred_check_branch
      %32 = sbr.rel (0) target = $region17
    $region16: #{lenet_forward.1} parent=1 // pred_region
      _
    $region17: #{lenet_forward.1} parent=1 // pred_fallthru
      _
    // Predicated region
    $region18: #{lenet_forward.1} parent=1 // pred_check
      _
    $region19: #{lenet_forward.1} parent=1 // pred_check_branch
      %34 = sbr.rel (0) target = $region21
    $region20: #{lenet_forward.1} parent=1 // pred_region
      _
    $region21: #{lenet_forward.1} parent=1 // pred_fallthru
      _
    // Predicated region
    $region22: #{lenet_forward.1} parent=1 // pred_check
      _
    $region23: #{lenet_forward.1} parent=1 // pred_check_branch
      %36 = sbr.rel (0) target = $region25
    $region24: #{lenet_forward.1} parent=1 // pred_region
      _
    $region25: #{lenet_forward.1} parent=1 // pred_fallthru
      _
    // Predicated region
    $region26: #{lenet_forward.1} parent=1 // pred_check
      _
    $region27: #{lenet_forward.1} parent=1 // pred_check_branch
      %38 = sbr.rel (0) target = $region29
    $region28: #{lenet_forward.1} parent=1 // pred_region
      _
    $region29: #{lenet_forward.1} parent=1 // pred_fallthru
      _
    // Predicated region
    $region30: #{lenet_forward.1} parent=1 // pred_check
      _
    $region31: #{lenet_forward.1} parent=1 // pred_check_branch
      %40 = sbr.rel (0) target = $region33
    $region32: #{lenet_forward.1} parent=1 // pred_region
      _
    $region33: #{lenet_forward.1} parent=1 // pred_fallthru
      _
    // Predicated region
    $region34: #{lenet_forward.1} parent=1 // pred_check
      _
    $region35: #{lenet_forward.1} parent=1 // pred_check_branch
      %42 = sbr.rel (0) target = $region37
    $region36: #{lenet_forward.1} parent=1 // pred_region
      _
    $region37: #{lenet_forward.1} parent=1 // pred_fallthru
      _
    // Predicated region
    $region38: #{lenet_forward.1} parent=1 // pred_check
      _
    $region39: #{lenet_forward.1} parent=1 // pred_check_branch
      %44 = sbr.rel (0) target = $region41
    $region40: #{lenet_forward.1} parent=1 // pred_region
      _
    $region41: #{lenet_forward.1} parent=1 // pred_fallthru
      _
    // Predicated region
    $region42: #{lenet_forward.1} parent=1 // pred_check
      _
    $region43: #{lenet_forward.1} parent=1 // pred_check_branch
      %46 = sbr.rel (0) target = $region45
    $region44: #{lenet_forward.1} parent=1 // pred_region
      _
    $region45: #{lenet_forward.1} parent=1 // pred_fallthru
      _
    // Predicated region
    $region46: #{lenet_forward.1} parent=1 // pred_check
      _
    $region47: #{lenet_forward.1} parent=1 // pred_check_branch
      %48 = sbr.rel (0) target = $region49
    $region48: #{lenet_forward.1} parent=1 // pred_region
      _
    $region49: #{lenet_forward.1} parent=1 // pred_fallthru
      _
    // Predicated region
    $region50: #{lenet_forward.1} parent=1 // pred_check
      _
    $region51: #{lenet_forward.1} parent=1 // pred_check_branch
      %50 = sbr.rel (0) target = $region53
    $region52: #{lenet_forward.1} parent=1 // pred_region
      _
    $region53: #{lenet_forward.1} parent=1 // pred_fallthru
      _
    // Predicated region
    $region54: #{lenet_forward.1} parent=1 // pred_check
      _
    $region55: #{lenet_forward.1} parent=1 // pred_check_branch
      %52 = sbr.rel (0) target = $region57
    $region56: #{lenet_forward.1} parent=1 // pred_region
      _
    $region57: #{lenet_forward.1} parent=1 // pred_fallthru
      _
    // Predicated region
    $region58: #{lenet_forward.1} parent=1 // pred_check
      _
    $region59: #{lenet_forward.1} parent=1 // pred_check_branch
      %54 = sbr.rel (0) target = $region61
    $region60: #{lenet_forward.1} parent=1 // pred_region
      _
    $region61: #{lenet_forward.1} parent=1 // pred_fallthru
      _
    // Predicated region
    $region62: #{lenet_forward.1} parent=1 // pred_check
      _
    $region63: #{lenet_forward.1} parent=1 // pred_check_branch
      %56 = sbr.rel (0) target = $region65
    $region64: #{lenet_forward.1} parent=1 // pred_region
      _
    $region65: #{lenet_forward.1} parent=1 // pred_fallthru
      _
    // Predicated region
    $region66: #{lenet_forward.1} parent=1 // pred_check
      _
    $region67: #{lenet_forward.1} parent=1 // pred_check_branch
      %58 = sbr.rel (0) target = $region69
    $region68: #{lenet_forward.1} parent=1 // pred_region
      _
    $region69: #{lenet_forward.1} parent=1 // pred_fallthru
      _
    // Predicated region
    $region70: #{lenet_forward.1} parent=1 // pred_check
      _
    $region71: #{lenet_forward.1} parent=1 // pred_check_branch
      %60 = sbr.rel (0) target = $region73
    $region72: #{lenet_forward.1} parent=1 // pred_region
      _
    $region73: #{lenet_forward.1} parent=1 // pred_fallthru
      _
    // Predicated region
    $region74: #{lenet_forward.1} parent=1 // pred_check
      _
    $region75: #{lenet_forward.1} parent=1 // pred_check_branch
      %62 = sbr.rel (0) target = $region77
    $region76: #{lenet_forward.1} parent=1 // pred_region
      _
    $region77: #{lenet_forward.1} parent=1 // pred_fallthru
      _
    %v63 = vld [vmem:[%s6] sm:$0x3f]
    %v64 = vld [vmem:[%s6 + $0x8] sm:$0x3f]
    %v65 = vld [vmem:[%s12] sm:$0xff]
    %v66 = vld [vmem:[%s12 + $0x8] sm:$0xff]
    %v67 = vld [vmem:[%s2] sm:$0x1]
    %vm68 = vcmask 48128
    %v70 = vsel %vm68, %v67, 0
    %vm72 = vcmask 1045504
    %v74 = vsel %vm72, %v63, 0
    %v77 = vsel %vm72, %v64, 0
    %79 = vmatprep.subr.mxu0 %v77
    %80 = vmatpush1.msra.mxu0 %v74
    %81 = vmatprep.subr.mxu0 0.0
    %82 = vmatpush1.msra.mxu0 0.0
    %83 = vmatprep.subr.mxu0 0.0
    %84 = vmatpush1.msra.mxu0 0.0
    %85 = vmatprep.subr.mxu0 0.0
    %86 = vmatpush1.msra.mxu0 0.0
    %87 = vmatprep.subr.mxu0 0.0
    %88 = vmatpush1.msra.mxu0 0.0
    %89 = vmatprep.subr.mxu0 0.0
    %90 = vmatpush1.msra.mxu0 0.0
    %91 = vmatprep.subr.mxu0 0.0
    %92 = vmatpush1.msra.mxu0 0.0
    %93 = vmatprep.subr.mxu0 0.0
    %94 = vmatpush1.msra.mxu0 0.0
    %95 = vmatprep.subr.mxu0 0.0
    %96 = vmatpush1.msra.mxu0 0.0
    %97 = vmatprep.subr.mxu0 0.0
    %98 = vmatpush1.msra.mxu0 0.0
    %99 = vmatprep.subr.mxu0 0.0
    %100 = vmatpush1.msra.mxu0 0.0
    %101 = vmatprep.subr.mxu0 0.0
    %102 = vmatpush1.msra.mxu0 0.0
    %103 = vmatprep.subr.mxu0 0.0
    %104 = vmatpush1.msra.mxu0 0.0
    %105 = vmatprep.subr.mxu0 0.0
    %106 = vmatpush1.msra.mxu0 0.0
    %107 = vmatprep.subr.mxu0 0.0
    %108 = vmatpush1.msra.mxu0 0.0
    %109 = vmatprep.subr.mxu0 0.0
    %110 = vmatpush1.msra.mxu0 0.0
    %111 = vmatprep.subr.mxu0 0.0
    %112 = vmatpush1.msra.mxu0 0.0
    %113 = vmatprep.subr.mxu0 0.0
    %114 = vmatpush1.msra.mxu0 0.0
    %115 = vmatprep.subr.mxu0 0.0
    %116 = vmatpush1.msra.mxu0 0.0
    %117 = vmatprep.subr.mxu0 0.0
    %118 = vmatpush1.msra.mxu0 0.0
    %119 = vmatprep.subr.mxu0 0.0
    %120 = vmatpush1.msra.mxu0 0.0
    %121 = vmatprep.subr.mxu0 0.0
    %122 = vmatpush1.msra.mxu0 0.0
    %123 = vmatprep.subr.mxu0 0.0
    %124 = vmatpush1.msra.mxu0 0.0
    %125 = vmatprep.subr.mxu0 0.0
    %126 = vmatpush1.msra.mxu0 0.0
    %127 = vmatprep.subr.mxu0 0.0
    %128 = vmatpush1.msra.mxu0 0.0
    %129 = vmatprep.subr.mxu0 0.0
    %130 = vmatpush1.msra.mxu0 0.0
    %131 = vmatprep.subr.mxu0 0.0
    %132 = vmatpush1.msra.mxu0 0.0
    %133 = vmatprep.subr.mxu0 0.0
    %134 = vmatpush1.msra.mxu0 0.0
    %135 = vmatprep.subr.mxu0 0.0
    %136 = vmatpush1.msra.mxu0 0.0
    %137 = vmatprep.subr.mxu0 0.0
    %138 = vmatpush1.msra.mxu0 0.0
    %139 = vmatprep.subr.mxu0 0.0
    %140 = vmatpush1.msra.mxu0 0.0
    %141 = vmatprep.subr.mxu0 0.0
    %142 = vmatpush1.msra.mxu0 0.0
    %143 = vmatprep.mubr.f32.mxu0 0.0
    %144 = vmatmul.mubr.f32.gmra.mrb[0].mxu0 %v70
    %v145 = vpop.f32.mrb[0].mxu0
    %v146 = vadd.f32 0.0, %v145
    %v147 = vpop.f32.mrb[0].mxu0
    %v148 = vadd.f32 0.0, %v147
    %149 = vdwg.mxu0
    %v150 = vld [vmem:[%s0] sm:$0xff]
    %v151 = vld [vmem:[%s0 + $0x8] sm:$0xf]
    %v152 = vld [vmem:[%s1] sm:$0xff]
    %v153 = vld [vmem:[%s1 + $0x8] sm:$0xff]
    %v154 = vld [vmem:[%s1 + $0x10] sm:$0xff]
    %v155 = vld [vmem:[%s1 + $0x18] sm:$0xff]
    %v156 = vld [vmem:[%s1 + $0x20] sm:$0xff]
    %v157 = vld [vmem:[%s1 + $0x28] sm:$0xff]
    %v158 = vld [vmem:[%s1 + $0x30] sm:$0xf]
    %v159 = vld [vmem:[%s1 + $0x38] sm:$0xf]
    %v160 = vld [vmem:[%s0 + $0xe] sm:$0xff]
    %v161 = vld [vmem:[%s0 + $0x16] sm:$0xf]
    %v162 = vld [vmem:[%s1 + $0x30] sm:$0xf0]
    %v163 = vld [vmem:[%s1 + $0x38] sm:$0xf0]
    %v164 = vld [vmem:[%s1 + $0x40] sm:$0xff]
    %v165 = vld [vmem:[%s1 + $0x48] sm:$0xff]
    %v166 = vld [vmem:[%s1 + $0x50] sm:$0xff]
    %v167 = vld [vmem:[%s1 + $0x58] sm:$0xff]
    %v168 = vld [vmem:[%s1 + $0x60] sm:$0xff]
    %v169 = vld [vmem:[%s1 + $0x68] sm:$0xff]
    %vm178 = vcmask 1043456
    %v179 = vrot.slane %v162, 4
    %v180 = vrot.slane %v164, 4
    %v181 = vsel %vm178, %v179, %v180
    %v182 = vrot.slane %v163, 4
    %v183 = vrot.slane %v165, 4
    %v184 = vsel %vm178, %v182, %v183
    %v185 = vrot.slane %v166, 4
    %v186 = vsel %vm178, %v180, %v185
    %v187 = vrot.slane %v167, 4
    %v188 = vsel %vm178, %v183, %v187
    %v189 = vrot.slane %v168, 4
    %v190 = vsel %vm178, %v185, %v189
    %v191 = vrot.slane %v169, 4
    %v192 = vsel %vm178, %v187, %v191
    %vm199 = vcmask 228352
    %v201 = vsel %vm199, %v160, 0
    %v204 = vsel %vm199, %v161, 0
    %v206 = vsel %vm178, %v189, 0
    %v208 = vsel %vm178, %v191, 0
    %210 = vmatprep.subr.mxu0 %v184
    %211 = vmatpush1.msra.mxu0 %v181
    %212 = vmatprep.subr.mxu0 %v188
    %213 = vmatpush1.msra.mxu0 %v186
    %214 = vmatprep.subr.mxu0 %v192
    %215 = vmatpush1.msra.mxu0 %v190
    %216 = vmatprep.subr.mxu0 %v208
    %217 = vmatpush1.msra.mxu0 %v206
    %218 = vmatprep.subr.mxu0 0.0
    %219 = vmatpush1.msra.mxu0 0.0
    %220 = vmatprep.subr.mxu0 0.0
    %221 = vmatpush1.msra.mxu0 0.0
    %222 = vmatprep.subr.mxu0 0.0
    %223 = vmatpush1.msra.mxu0 0.0
    %224 = vmatprep.subr.mxu0 0.0
    %225 = vmatpush1.msra.mxu0 0.0
    %226 = vmatprep.subr.mxu0 0.0
    %227 = vmatpush1.msra.mxu0 0.0
    %228 = vmatprep.subr.mxu0 0.0
    %229 = vmatpush1.msra.mxu0 0.0
    %230 = vmatprep.subr.mxu0 0.0
    %231 = vmatpush1.msra.mxu0 0.0
    %232 = vmatprep.subr.mxu0 0.0
    %233 = vmatpush1.msra.mxu0 0.0
    %234 = vmatprep.subr.mxu0 0.0
    %235 = vmatpush1.msra.mxu0 0.0
    %236 = vmatprep.subr.mxu0 0.0
    %237 = vmatpush1.msra.mxu0 0.0
    %238 = vmatprep.subr.mxu0 0.0
    %239 = vmatpush1.msra.mxu0 0.0
    %240 = vmatprep.subr.mxu0 0.0
    %241 = vmatpush1.msra.mxu0 0.0
    %242 = vmatprep.subr.mxu0 0.0
    %243 = vmatpush1.msra.mxu0 0.0
    %244 = vmatprep.subr.mxu0 0.0
    %245 = vmatpush1.msra.mxu0 0.0
    %246 = vmatprep.subr.mxu0 0.0
    %247 = vmatpush1.msra.mxu0 0.0
    %248 = vmatprep.subr.mxu0 0.0
    %249 = vmatpush1.msra.mxu0 0.0
    %250 = vmatprep.subr.mxu0 0.0
    %251 = vmatpush1.msra.mxu0 0.0
    %252 = vmatprep.subr.mxu0 0.0
    %253 = vmatpush1.msra.mxu0 0.0
    %254 = vmatprep.subr.mxu0 0.0
    %255 = vmatpush1.msra.mxu0 0.0
    %256 = vmatprep.subr.mxu0 0.0
    %257 = vmatpush1.msra.mxu0 0.0
    %258 = vmatprep.subr.mxu0 0.0
    %259 = vmatpush1.msra.mxu0 0.0
    %260 = vmatprep.subr.mxu0 0.0
    %261 = vmatpush1.msra.mxu0 0.0
    %262 = vmatprep.subr.mxu0 0.0
    %263 = vmatpush1.msra.mxu0 0.0
    %264 = vmatprep.subr.mxu0 0.0
    %265 = vmatpush1.msra.mxu0 0.0
    %266 = vmatprep.subr.mxu0 0.0
    %267 = vmatpush1.msra.mxu0 0.0
    %268 = vmatprep.subr.mxu0 0.0
    %269 = vmatpush1.msra.mxu0 0.0
    %270 = vmatprep.subr.mxu0 0.0
    %271 = vmatpush1.msra.mxu0 0.0
    %272 = vmatprep.subr.mxu0 0.0
    %273 = vmatpush1.msra.mxu0 0.0
    %274 = vmatprep.mubr.f32.mxu0 0.0
    %275 = vmatmul.mubr.f32.gmra.mrb[0].mxu0 %v201
    %v276 = vpop.f32.mrb[0].mxu0
    %v277 = vadd.f32 0.0, %v276
    %v278 = vpop.f32.mrb[0].mxu0
    %v279 = vadd.f32 0.0, %v278
    %280 = vmatprep.mubr.f32.mxu0 0.0
    %281 = vmatmul.mubr.f32.gmra.mrb[0].mxu0 %v204
    %v282 = vpop.f32.mrb[0].mxu0
    %v283 = vadd.f32 0.0, %v282
    %v284 = vpop.f32.mrb[0].mxu0
    %v285 = vadd.f32 0.0, %v284
    %286 = vdwg.mxu0
    %v288 = vsel %vm199, %v150, 0
    %v291 = vsel %vm199, %v151, 0
    %v294 = vsel %vm178, %v158, 0
    %v297 = vsel %vm178, %v159, 0
    %299 = vmatprep.subr.mxu0 %v153
    %300 = vmatpush1.msra.mxu0 %v152
    %301 = vmatprep.subr.mxu0 %v155
    %302 = vmatpush1.msra.mxu0 %v154
    %303 = vmatprep.subr.mxu0 %v157
    %304 = vmatpush1.msra.mxu0 %v156
    %305 = vmatprep.subr.mxu0 %v297
    %306 = vmatpush1.msra.mxu0 %v294
    %307 = vmatprep.subr.mxu0 0.0
    %308 = vmatpush1.msra.mxu0 0.0
    %309 = vmatprep.subr.mxu0 0.0
    %310 = vmatpush1.msra.mxu0 0.0
    %311 = vmatprep.subr.mxu0 0.0
    %312 = vmatpush1.msra.mxu0 0.0
    %313 = vmatprep.subr.mxu0 0.0
    %314 = vmatpush1.msra.mxu0 0.0
    %315 = vmatprep.subr.mxu0 0.0
    %316 = vmatpush1.msra.mxu0 0.0
    %317 = vmatprep.subr.mxu0 0.0
    %318 = vmatpush1.msra.mxu0 0.0
    %319 = vmatprep.subr.mxu0 0.0
    %320 = vmatpush1.msra.mxu0 0.0
    %321 = vmatprep.subr.mxu0 0.0
    %322 = vmatpush1.msra.mxu0 0.0
    %323 = vmatprep.subr.mxu0 0.0
    %324 = vmatpush1.msra.mxu0 0.0
    %325 = vmatprep.subr.mxu0 0.0
    %326 = vmatpush1.msra.mxu0 0.0
    %327 = vmatprep.subr.mxu0 0.0
    %328 = vmatpush1.msra.mxu0 0.0
    %329 = vmatprep.subr.mxu0 0.0
    %330 = vmatpush1.msra.mxu0 0.0
    %331 = vmatprep.subr.mxu0 0.0
    %332 = vmatpush1.msra.mxu0 0.0
    %333 = vmatprep.subr.mxu0 0.0
    %334 = vmatpush1.msra.mxu0 0.0
    %335 = vmatprep.subr.mxu0 0.0
    %336 = vmatpush1.msra.mxu0 0.0
    %337 = vmatprep.subr.mxu0 0.0
    %338 = vmatpush1.msra.mxu0 0.0
    %339 = vmatprep.subr.mxu0 0.0
    %340 = vmatpush1.msra.mxu0 0.0
    %341 = vmatprep.subr.mxu0 0.0
    %342 = vmatpush1.msra.mxu0 0.0
    %343 = vmatprep.subr.mxu0 0.0
    %344 = vmatpush1.msra.mxu0 0.0
    %345 = vmatprep.subr.mxu0 0.0
    %346 = vmatpush1.msra.mxu0 0.0
    %347 = vmatprep.subr.mxu0 0.0
    %348 = vmatpush1.msra.mxu0 0.0
    %349 = vmatprep.subr.mxu0 0.0
    %350 = vmatpush1.msra.mxu0 0.0
    %351 = vmatprep.subr.mxu0 0.0
    %352 = vmatpush1.msra.mxu0 0.0
    %353 = vmatprep.subr.mxu0 0.0
    %354 = vmatpush1.msra.mxu0 0.0
    %355 = vmatprep.subr.mxu0 0.0
    %356 = vmatpush1.msra.mxu0 0.0
    %357 = vmatprep.subr.mxu0 0.0
    %358 = vmatpush1.msra.mxu0 0.0
    %359 = vmatprep.subr.mxu0 0.0
    %360 = vmatpush1.msra.mxu0 0.0
    %361 = vmatprep.subr.mxu0 0.0
    %362 = vmatpush1.msra.mxu0 0.0
    %363 = vmatprep.mubr.f32.mxu0 0.0
    %364 = vmatmul.mubr.f32.gmra.mrb[0].mxu0 %v288
    %v365 = vpop.f32.mrb[0].mxu0
    %v366 = vadd.f32 %v277, %v365
    %v367 = vpop.f32.mrb[0].mxu0
    %v368 = vadd.f32 %v279, %v367
    %369 = vmatprep.mubr.f32.mxu0 0.0
    %370 = vmatmul.mubr.f32.gmra.mrb[0].mxu0 %v291
    %v371 = vpop.f32.mrb[0].mxu0
    %v372 = vadd.f32 %v283, %v371
    %v373 = vpop.f32.mrb[0].mxu0
    %v374 = vadd.f32 %v285, %v373
    %375 = vdwg.mxu0
    %v376 = vld [vmem:[%s0 + $0x1c] sm:$0xff]
    %v377 = vld [vmem:[%s0 + $0x24] sm:$0xf]
    %v378 = vld [vmem:[%s1 + $0x70] sm:$0xff]
    %v379 = vld [vmem:[%s1 + $0x78] sm:$0xff]
    %v380 = vld [vmem:[%s1 + $0x80] sm:$0xff]
    %v381 = vld [vmem:[%s1 + $0x88] sm:$0xff]
    %v382 = vld [vmem:[%s1 + $0x90] sm:$0xff]
    %v383 = vld [vmem:[%s1 + $0x98] sm:$0xff]
    %v384 = vld [vmem:[%s1 + $0xa0] sm:$0xf]
    %v385 = vld [vmem:[%s1 + $0xa8] sm:$0xf]
    %v387 = vsel %vm199, %v376, 0
    %v390 = vsel %vm199, %v377, 0
    %v393 = vsel %vm178, %v384, 0
    %v396 = vsel %vm178, %v385, 0
    %398 = vmatprep.subr.mxu0 %v379
    %399 = vmatpush1.msra.mxu0 %v378
    %400 = vmatprep.subr.mxu0 %v381
    %401 = vmatpush1.msra.mxu0 %v380
    %402 = vmatprep.subr.mxu0 %v383
    %403 = vmatpush1.msra.mxu0 %v382
    %404 = vmatprep.subr.mxu0 %v396
    %405 = vmatpush1.msra.mxu0 %v393
    %406 = vmatprep.subr.mxu0 0.0
    %407 = vmatpush1.msra.mxu0 0.0
    %408 = vmatprep.subr.mxu0 0.0
    %409 = vmatpush1.msra.mxu0 0.0
    %410 = vmatprep.subr.mxu0 0.0
    %411 = vmatpush1.msra.mxu0 0.0
    %412 = vmatprep.subr.mxu0 0.0
    %413 = vmatpush1.msra.mxu0 0.0
    %414 = vmatprep.subr.mxu0 0.0
    %415 = vmatpush1.msra.mxu0 0.0
    %416 = vmatprep.subr.mxu0 0.0
    %417 = vmatpush1.msra.mxu0 0.0
    %418 = vmatprep.subr.mxu0 0.0
    %419 = vmatpush1.msra.mxu0 0.0
    %420 = vmatprep.subr.mxu0 0.0
    %421 = vmatpush1.msra.mxu0 0.0
    %422 = vmatprep.subr.mxu0 0.0
    %423 = vmatpush1.msra.mxu0 0.0
    %424 = vmatprep.subr.mxu0 0.0
    %425 = vmatpush1.msra.mxu0 0.0
    %426 = vmatprep.subr.mxu0 0.0
    %427 = vmatpush1.msra.mxu0 0.0
    %428 = vmatprep.subr.mxu0 0.0
    %429 = vmatpush1.msra.mxu0 0.0
    %430 = vmatprep.subr.mxu0 0.0
    %431 = vmatpush1.msra.mxu0 0.0
    %432 = vmatprep.subr.mxu0 0.0
    %433 = vmatpush1.msra.mxu0 0.0
    %434 = vmatprep.subr.mxu0 0.0
    %435 = vmatpush1.msra.mxu0 0.0
    %436 = vmatprep.subr.mxu0 0.0
    %437 = vmatpush1.msra.mxu0 0.0
    %438 = vmatprep.subr.mxu0 0.0
    %439 = vmatpush1.msra.mxu0 0.0
    %440 = vmatprep.subr.mxu0 0.0
    %441 = vmatpush1.msra.mxu0 0.0
    %442 = vmatprep.subr.mxu0 0.0
    %443 = vmatpush1.msra.mxu0 0.0
    %444 = vmatprep.subr.mxu0 0.0
    %445 = vmatpush1.msra.mxu0 0.0
    %446 = vmatprep.subr.mxu0 0.0
    %447 = vmatpush1.msra.mxu0 0.0
    %448 = vmatprep.subr.mxu0 0.0
    %449 = vmatpush1.msra.mxu0 0.0
    %450 = vmatprep.subr.mxu0 0.0
    %451 = vmatpush1.msra.mxu0 0.0
    %452 = vmatprep.subr.mxu0 0.0
    %453 = vmatpush1.msra.mxu0 0.0
    %454 = vmatprep.subr.mxu0 0.0
    %455 = vmatpush1.msra.mxu0 0.0
    %456 = vmatprep.subr.mxu0 0.0
    %457 = vmatpush1.msra.mxu0 0.0
    %458 = vmatprep.subr.mxu0 0.0
    %459 = vmatpush1.msra.mxu0 0.0
    %460 = vmatprep.subr.mxu0 0.0
    %461 = vmatpush1.msra.mxu0 0.0
    %462 = vmatprep.mubr.f32.mxu0 0.0
    %463 = vmatmul.mubr.f32.gmra.mrb[0].mxu0 %v387
    %v464 = vpop.f32.mrb[0].mxu0
    %v465 = vadd.f32 0.0, %v464
    %v466 = vpop.f32.mrb[0].mxu0
    %v467 = vadd.f32 0.0, %v466
    %468 = vmatprep.mubr.f32.mxu0 0.0
    %469 = vmatmul.mubr.f32.gmra.mrb[0].mxu0 %v390
    %v470 = vpop.f32.mrb[0].mxu0
    %v471 = vadd.f32 0.0, %v470
    %v472 = vpop.f32.mrb[0].mxu0
    %v473 = vadd.f32 0.0, %v472
    %474 = vdwg.mxu0
    %v475 = vadd.f32 %v366, %v465
    %v476 = vadd.f32 %v368, %v467
    %v477 = vadd.f32 %v372, %v471
    %v478 = vadd.f32 %v374, %v473
    %v479 = vld [vmem:[%s0 + $0x2a] sm:$0xff]
    %v480 = vld [vmem:[%s0 + $0x32] sm:$0xf]
    %v481 = vld [vmem:[%s1 + $0xa0] sm:$0xf0]
    %v482 = vld [vmem:[%s1 + $0xa8] sm:$0xf0]
    %v483 = vld [vmem:[%s1 + $0xb0] sm:$0xff]
    %v484 = vld [vmem:[%s1 + $0xb8] sm:$0xff]
    %v485 = vld [vmem:[%s1 + $0xc0] sm:$0xff]
    %v486 = vld [vmem:[%s1 + $0xc8] sm:$0xff]
    %v487 = vld [vmem:[%s1 + $0xd0] sm:$0xff]
    %v488 = vld [vmem:[%s1 + $0xd8] sm:$0xff]
    %v497 = vrot.slane %v481, 4
    %v498 = vrot.slane %v483, 4
    %v499 = vsel %vm178, %v497, %v498
    %v500 = vrot.slane %v482, 4
    %v501 = vrot.slane %v484, 4
    %v502 = vsel %vm178, %v500, %v501
    %v503 = vrot.slane %v485, 4
    %v504 = vsel %vm178, %v498, %v503
    %v505 = vrot.slane %v486, 4
    %v506 = vsel %vm178, %v501, %v505
    %v507 = vrot.slane %v487, 4
    %v508 = vsel %vm178, %v503, %v507
    %v509 = vrot.slane %v488, 4
    %v510 = vsel %vm178, %v505, %v509
    %v518 = vsel %vm199, %v479, 0
    %v521 = vsel %vm199, %v480, 0
    %v523 = vsel %vm178, %v507, 0
    %v525 = vsel %vm178, %v509, 0
    %527 = vmatprep.subr.mxu0 %v502
    %528 = vmatpush1.msra.mxu0 %v499
    %529 = vmatprep.subr.mxu0 %v506
    %530 = vmatpush1.msra.mxu0 %v504
    %531 = vmatprep.subr.mxu0 %v510
    %532 = vmatpush1.msra.mxu0 %v508
    %533 = vmatprep.subr.mxu0 %v525
    %534 = vmatpush1.msra.mxu0 %v523
    %535 = vmatprep.subr.mxu0 0.0
    %536 = vmatpush1.msra.mxu0 0.0
    %537 = vmatprep.subr.mxu0 0.0
    %538 = vmatpush1.msra.mxu0 0.0
    %539 = vmatprep.subr.mxu0 0.0
    %540 = vmatpush1.msra.mxu0 0.0
    %541 = vmatprep.subr.mxu0 0.0
    %542 = vmatpush1.msra.mxu0 0.0
    %543 = vmatprep.subr.mxu0 0.0
    %544 = vmatpush1.msra.mxu0 0.0
    %545 = vmatprep.subr.mxu0 0.0
    %546 = vmatpush1.msra.mxu0 0.0
    %547 = vmatprep.subr.mxu0 0.0
    %548 = vmatpush1.msra.mxu0 0.0
    %549 = vmatprep.subr.mxu0 0.0
    %550 = vmatpush1.msra.mxu0 0.0
    %551 = vmatprep.subr.mxu0 0.0
    %552 = vmatpush1.msra.mxu0 0.0
    %553 = vmatprep.subr.mxu0 0.0
    %554 = vmatpush1.msra.mxu0 0.0
    %555 = vmatprep.subr.mxu0 0.0
    %556 = vmatpush1.msra.mxu0 0.0
    %557 = vmatprep.subr.mxu0 0.0
    %558 = vmatpush1.msra.mxu0 0.0
    %559 = vmatprep.subr.mxu0 0.0
    %560 = vmatpush1.msra.mxu0 0.0
    %561 = vmatprep.subr.mxu0 0.0
    %562 = vmatpush1.msra.mxu0 0.0
    %563 = vmatprep.subr.mxu0 0.0
    %564 = vmatpush1.msra.mxu0 0.0
    %565 = vmatprep.subr.mxu0 0.0
    %566 = vmatpush1.msra.mxu0 0.0
    %567 = vmatprep.subr.mxu0 0.0
    %568 = vmatpush1.msra.mxu0 0.0
    %569 = vmatprep.subr.mxu0 0.0
    %570 = vmatpush1.msra.mxu0 0.0
    %571 = vmatprep.subr.mxu0 0.0
    %572 = vmatpush1.msra.mxu0 0.0
    %573 = vmatprep.subr.mxu0 0.0
    %574 = vmatpush1.msra.mxu0 0.0
    %575 = vmatprep.subr.mxu0 0.0
    %576 = vmatpush1.msra.mxu0 0.0
    %577 = vmatprep.subr.mxu0 0.0
    %578 = vmatpush1.msra.mxu0 0.0
    %579 = vmatprep.subr.mxu0 0.0
    %580 = vmatpush1.msra.mxu0 0.0
    %581 = vmatprep.subr.mxu0 0.0
    %582 = vmatpush1.msra.mxu0 0.0
    %583 = vmatprep.subr.mxu0 0.0
    %584 = vmatpush1.msra.mxu0 0.0
    %585 = vmatprep.subr.mxu0 0.0
    %586 = vmatpush1.msra.mxu0 0.0
    %587 = vmatprep.subr.mxu0 0.0
    %588 = vmatpush1.msra.mxu0 0.0
    %589 = vmatprep.subr.mxu0 0.0
    %590 = vmatpush1.msra.mxu0 0.0
    %591 = vmatprep.mubr.f32.mxu0 0.0
    %592 = vmatmul.mubr.f32.gmra.mrb[0].mxu0 %v518
    %v593 = vpop.f32.mrb[0].mxu0
    %v594 = vadd.f32 0.0, %v593
    %v595 = vpop.f32.mrb[0].mxu0
    %v596 = vadd.f32 0.0, %v595
    %597 = vmatprep.mubr.f32.mxu0 0.0
    %598 = vmatmul.mubr.f32.gmra.mrb[0].mxu0 %v521
    %v599 = vpop.f32.mrb[0].mxu0
    %v600 = vadd.f32 0.0, %v599
    %v601 = vpop.f32.mrb[0].mxu0
    %v602 = vadd.f32 0.0, %v601
    %603 = vdwg.mxu0
    %v604 = vadd.f32 %v475, %v594
    %v605 = vadd.f32 %v476, %v596
    %v606 = vadd.f32 %v477, %v600
    %v607 = vadd.f32 %v478, %v602
    %v608 = vld [vmem:[%s0 + $0x2] sm:$0xff]
    %v609 = vld [vmem:[%s0 + $0xa] sm:$0xf]
    %v610 = vld [vmem:[%s1 + $0xe0] sm:$0xff]
    %v611 = vld [vmem:[%s1 + $0xe8] sm:$0xff]
    %v612 = vld [vmem:[%s1 + $0xf0] sm:$0xff]
    %v613 = vld [vmem:[%s1 + $0xf8] sm:$0xff]
    %v614 = vld [vmem:[%s1 + $0x100] sm:$0xff]
    %v615 = vld [vmem:[%s1 + $0x108] sm:$0xff]
    %v616 = vld [vmem:[%s1 + $0x110] sm:$0xf]
    %v617 = vld [vmem:[%s1 + $0x118] sm:$0xf]
    %v619 = vsel %vm199, %v608, 0
    %v622 = vsel %vm199, %v609, 0
    %v625 = vsel %vm178, %v616, 0
    %v628 = vsel %vm178, %v617, 0
    %630 = vmatprep.subr.mxu0 %v611
    %631 = vmatpush1.msra.mxu0 %v610
    %632 = vmatprep.subr.mxu0 %v613
    %633 = vmatpush1.msra.mxu0 %v612
    %634 = vmatprep.subr.mxu0 %v615
    %635 = vmatpush1.msra.mxu0 %v614
    %636 = vmatprep.subr.mxu0 %v628
    %637 = vmatpush1.msra.mxu0 %v625
    %638 = vmatprep.subr.mxu0 0.0
    %639 = vmatpush1.msra.mxu0 0.0
    %640 = vmatprep.subr.mxu0 0.0
    %641 = vmatpush1.msra.mxu0 0.0
    %642 = vmatprep.subr.mxu0 0.0
    %643 = vmatpush1.msra.mxu0 0.0
    %644 = vmatprep.subr.mxu0 0.0
    %645 = vmatpush1.msra.mxu0 0.0
    %646 = vmatprep.subr.mxu0 0.0
    %647 = vmatpush1.msra.mxu0 0.0
    %648 = vmatprep.subr.mxu0 0.0
    %649 = vmatpush1.msra.mxu0 0.0
    %650 = vmatprep.subr.mxu0 0.0
    %651 = vmatpush1.msra.mxu0 0.0
    %652 = vmatprep.subr.mxu0 0.0
    %653 = vmatpush1.msra.mxu0 0.0
    %654 = vmatprep.subr.mxu0 0.0
    %655 = vmatpush1.msra.mxu0 0.0
    %656 = vmatprep.subr.mxu0 0.0
    %657 = vmatpush1.msra.mxu0 0.0
    %658 = vmatprep.subr.mxu0 0.0
    %659 = vmatpush1.msra.mxu0 0.0
    %660 = vmatprep.subr.mxu0 0.0
    %661 = vmatpush1.msra.mxu0 0.0
    %662 = vmatprep.subr.mxu0 0.0
    %663 = vmatpush1.msra.mxu0 0.0
    %664 = vmatprep.subr.mxu0 0.0
    %665 = vmatpush1.msra.mxu0 0.0
    %666 = vmatprep.subr.mxu0 0.0
    %667 = vmatpush1.msra.mxu0 0.0
    %668 = vmatprep.subr.mxu0 0.0
    %669 = vmatpush1.msra.mxu0 0.0
    %670 = vmatprep.subr.mxu0 0.0
    %671 = vmatpush1.msra.mxu0 0.0
    %672 = vmatprep.subr.mxu0 0.0
    %673 = vmatpush1.msra.mxu0 0.0
    %674 = vmatprep.subr.mxu0 0.0
    %675 = vmatpush1.msra.mxu0 0.0
    %676 = vmatprep.subr.mxu0 0.0
    %677 = vmatpush1.msra.mxu0 0.0
    %678 = vmatprep.subr.mxu0 0.0
    %679 = vmatpush1.msra.mxu0 0.0
    %680 = vmatprep.subr.mxu0 0.0
    %681 = vmatpush1.msra.mxu0 0.0
    %682 = vmatprep.subr.mxu0 0.0
    %683 = vmatpush1.msra.mxu0 0.0
    %684 = vmatprep.subr.mxu0 0.0
    %685 = vmatpush1.msra.mxu0 0.0
    %686 = vmatprep.subr.mxu0 0.0
    %687 = vmatpush1.msra.mxu0 0.0
    %688 = vmatprep.subr.mxu0 0.0
    %689 = vmatpush1.msra.mxu0 0.0
    %690 = vmatprep.subr.mxu0 0.0
    %691 = vmatpush1.msra.mxu0 0.0
    %692 = vmatprep.subr.mxu0 0.0
    %693 = vmatpush1.msra.mxu0 0.0
    %694 = vmatprep.mubr.f32.mxu0 0.0
    %695 = vmatmul.mubr.f32.gmra.mrb[0].mxu0 %v619
    %v696 = vpop.f32.mrb[0].mxu0
    %v697 = vadd.f32 0.0, %v696
    %v698 = vpop.f32.mrb[0].mxu0
    %v699 = vadd.f32 0.0, %v698
    %700 = vmatprep.mubr.f32.mxu0 0.0
    %701 = vmatmul.mubr.f32.gmra.mrb[0].mxu0 %v622
    %v702 = vpop.f32.mrb[0].mxu0
    %v703 = vadd.f32 0.0, %v702
    %v704 = vpop.f32.mrb[0].mxu0
    %v705 = vadd.f32 0.0, %v704
    %706 = vdwg.mxu0
    %v707 = vadd.f32 %v604, %v697
    %v708 = vadd.f32 %v605, %v699
    %v709 = vadd.f32 %v606, %v703
    %v710 = vadd.f32 %v607, %v705
    %v711 = vlaneseq
    %v712 = vshrl.u32 %v711, 7
    %v713 = vsub.s32 0, %v712
    %v714 = vrot.slane %v146, %v713
    %v715 = vlaneseq
    %v716 = vshrl.u32 %v715, 7
    %v717 = vsub.s32 0, %v716
    %v718 = vrot.slane %v148, %v717
    %v719 = vadd.f32 %v707, %v714
    %v720 = vadd.f32 %v708, %v718
    %v721 = vadd.f32 %v709, %v714
    %v722 = vadd.f32 %v710, %v718
    %v723 = vsel %vm178, %v721, 0.0
    %v724 = vadd.f32 %v719, %v723
    %v725 = vrot.slane %v724, 4
    %v726 = vadd.f32 %v724, %v725
    %v727 = vrot.slane %v726, 2
    %v728 = vadd.f32 %v726, %v727
    %v729 = vrot.slane %v728, 1
    %v730 = vadd.f32 %v728, %v729
    %vm731 = vcmask 130048
    %v732 = vsel %vm731, %v720, 0.0
    %vm733 = vcmask 125952
    %v734 = vsel %vm733, %v722, 0.0
    %v735 = vadd.f32 %v732, %v734
    %v736 = vrot.slane %v735, 4
    %v737 = vadd.f32 %v735, %v736
    %v738 = vrot.slane %v737, 2
    %v739 = vadd.f32 %v737, %v738
    %v740 = vrot.slane %v739, 1
    %v741 = vadd.f32 %v739, %v740
    %v742 = vadd.f32 %v730, 0.0
    %v743 = vadd.f32 %v741, 0.0
    %v744 = vmul.f32 %v719, %v719
    %v745 = vmul.f32 %v720, %v720
    %v746 = vmul.f32 %v721, %v721
    %v747 = vmul.f32 %v722, %v722
    %v748 = vsel %vm178, %v746, 0.0
    %v749 = vadd.f32 %v744, %v748
    %v750 = vrot.slane %v749, 4
    %v751 = vadd.f32 %v749, %v750
    %v752 = vrot.slane %v751, 2
    %v753 = vadd.f32 %v751, %v752
    %v754 = vrot.slane %v753, 1
    %v755 = vadd.f32 %v753, %v754
    %v756 = vsel %vm731, %v745, 0.0
    %v757 = vsel %vm733, %v747, 0.0
    %v758 = vadd.f32 %v756, %v757
    %v759 = vrot.slane %v758, 4
    %v760 = vadd.f32 %v758, %v759
    %v761 = vrot.slane %v760, 2
    %v762 = vadd.f32 %v760, %v761
    %v763 = vrot.slane %v762, 1
    %v764 = vadd.f32 %v762, %v763
    %v765 = vadd.f32 %v755, 0.0
    %v766 = vadd.f32 %v764, 0.0
    %767 = vmatprep.subr.mxu0 %v184
    %768 = vmatpush1.msra.mxu0 %v181
    %769 = vmatprep.subr.mxu0 %v188
    %770 = vmatpush1.msra.mxu0 %v186
    %771 = vmatprep.subr.mxu0 %v192
    %772 = vmatpush1.msra.mxu0 %v190
    %773 = vmatprep.subr.mxu0 %v208
    %774 = vmatpush1.msra.mxu0 %v206
    %775 = vmatprep.subr.mxu0 0.0
    %776 = vmatpush1.msra.mxu0 0.0
    %777 = vmatprep.subr.mxu0 0.0
    %778 = vmatpush1.msra.mxu0 0.0
    %779 = vmatprep.subr.mxu0 0.0
    %780 = vmatpush1.msra.mxu0 0.0
    %781 = vmatprep.subr.mxu0 0.0
    %782 = vmatpush1.msra.mxu0 0.0
    %783 = vmatprep.subr.mxu0 0.0
    %784 = vmatpush1.msra.mxu0 0.0
    %785 = vmatprep.subr.mxu0 0.0
    %786 = vmatpush1.msra.mxu0 0.0
    %787 = vmatprep.subr.mxu0 0.0
    %788 = vmatpush1.msra.mxu0 0.0
    %789 = vmatprep.subr.mxu0 0.0
    %790 = vmatpush1.msra.mxu0 0.0
    %791 = vmatprep.subr.mxu0 0.0
    %792 = vmatpush1.msra.mxu0 0.0
    %793 = vmatprep.subr.mxu0 0.0
    %794 = vmatpush1.msra.mxu0 0.0
    %795 = vmatprep.subr.mxu0 0.0
    %796 = vmatpush1.msra.mxu0 0.0
    %797 = vmatprep.subr.mxu0 0.0
    %798 = vmatpush1.msra.mxu0 0.0
    %799 = vmatprep.subr.mxu0 0.0
    %800 = vmatpush1.msra.mxu0 0.0
    %801 = vmatprep.subr.mxu0 0.0
    %802 = vmatpush1.msra.mxu0 0.0
    %803 = vmatprep.subr.mxu0 0.0
    %804 = vmatpush1.msra.mxu0 0.0
    %805 = vmatprep.subr.mxu0 0.0
    %806 = vmatpush1.msra.mxu0 0.0
    %807 = vmatprep.subr.mxu0 0.0
    %808 = vmatpush1.msra.mxu0 0.0
    %809 = vmatprep.subr.mxu0 0.0
    %810 = vmatpush1.msra.mxu0 0.0
    %811 = vmatprep.subr.mxu0 0.0
    %812 = vmatpush1.msra.mxu0 0.0
    %813 = vmatprep.subr.mxu0 0.0
    %814 = vmatpush1.msra.mxu0 0.0
    %815 = vmatprep.subr.mxu0 0.0
    %816 = vmatpush1.msra.mxu0 0.0
    %817 = vmatprep.subr.mxu0 0.0
    %818 = vmatpush1.msra.mxu0 0.0
    %819 = vmatprep.subr.mxu0 0.0
    %820 = vmatpush1.msra.mxu0 0.0
    %821 = vmatprep.subr.mxu0 0.0
    %822 = vmatpush1.msra.mxu0 0.0
    %823 = vmatprep.subr.mxu0 0.0
    %824 = vmatpush1.msra.mxu0 0.0
    %825 = vmatprep.subr.mxu0 0.0
    %826 = vmatpush1.msra.mxu0 0.0
    %827 = vmatprep.subr.mxu0 0.0
    %828 = vmatpush1.msra.mxu0 0.0
    %829 = vmatprep.subr.mxu0 0.0
    %830 = vmatpush1.msra.mxu0 0.0
    %831 = vmatprep.mubr.f32.mxu0 0.0
    %832 = vmatmul.mubr.f32.gmra.mrb[0].mxu0 %v387
    %v833 = vpop.f32.mrb[0].mxu0
    %v834 = vadd.f32 0.0, %v833
    %v835 = vpop.f32.mrb[0].mxu0
    %v836 = vadd.f32 0.0, %v835
    %837 = vmatprep.mubr.f32.mxu0 0.0
    %838 = vmatmul.mubr.f32.gmra.mrb[0].mxu0 %v390
    %v839 = vpop.f32.mrb[0].mxu0
    %v840 = vadd.f32 0.0, %v839
    %v841 = vpop.f32.mrb[0].mxu0
    %v842 = vadd.f32 0.0, %v841
    %843 = vdwg.mxu0
    %844 = vmatprep.subr.mxu0 %v153
    %845 = vmatpush1.msra.mxu0 %v152
    %846 = vmatprep.subr.mxu0 %v155
    %847 = vmatpush1.msra.mxu0 %v154
    %848 = vmatprep.subr.mxu0 %v157
    %849 = vmatpush1.msra.mxu0 %v156
    %850 = vmatprep.subr.mxu0 %v297
    %851 = vmatpush1.msra.mxu0 %v294
    %852 = vmatprep.subr.mxu0 0.0
    %853 = vmatpush1.msra.mxu0 0.0
    %854 = vmatprep.subr.mxu0 0.0
    %855 = vmatpush1.msra.mxu0 0.0
    %856 = vmatprep.subr.mxu0 0.0
    %857 = vmatpush1.msra.mxu0 0.0
    %858 = vmatprep.subr.mxu0 0.0
    %859 = vmatpush1.msra.mxu0 0.0
    %860 = vmatprep.subr.mxu0 0.0
    %861 = vmatpush1.msra.mxu0 0.0
    %862 = vmatprep.subr.mxu0 0.0
    %863 = vmatpush1.msra.mxu0 0.0
    %864 = vmatprep.subr.mxu0 0.0
    %865 = vmatpush1.msra.mxu0 0.0
    %866 = vmatprep.subr.mxu0 0.0
    %867 = vmatpush1.msra.mxu0 0.0
    %868 = vmatprep.subr.mxu0 0.0
    %869 = vmatpush1.msra.mxu0 0.0
    %870 = vmatprep.subr.mxu0 0.0
    %871 = vmatpush1.msra.mxu0 0.0
    %872 = vmatprep.subr.mxu0 0.0
    %873 = vmatpush1.msra.mxu0 0.0
    %874 = vmatprep.subr.mxu0 0.0
    %875 = vmatpush1.msra.mxu0 0.0
    %876 = vmatprep.subr.mxu0 0.0
    %877 = vmatpush1.msra.mxu0 0.0
    %878 = vmatprep.subr.mxu0 0.0
    %879 = vmatpush1.msra.mxu0 0.0
    %880 = vmatprep.subr.mxu0 0.0
    %881 = vmatpush1.msra.mxu0 0.0
    %882 = vmatprep.subr.mxu0 0.0
    %883 = vmatpush1.msra.mxu0 0.0
    %884 = vmatprep.subr.mxu0 0.0
    %885 = vmatpush1.msra.mxu0 0.0
    %886 = vmatprep.subr.mxu0 0.0
    %887 = vmatpush1.msra.mxu0 0.0
    %888 = vmatprep.subr.mxu0 0.0
    %889 = vmatpush1.msra.mxu0 0.0
    %890 = vmatprep.subr.mxu0 0.0
    %891 = vmatpush1.msra.mxu0 0.0
    %892 = vmatprep.subr.mxu0 0.0
    %893 = vmatpush1.msra.mxu0 0.0
    %894 = vmatprep.subr.mxu0 0.0
    %895 = vmatpush1.msra.mxu0 0.0
    %896 = vmatprep.subr.mxu0 0.0
    %897 = vmatpush1.msra.mxu0 0.0
    %898 = vmatprep.subr.mxu0 0.0
    %899 = vmatpush1.msra.mxu0 0.0
    %900 = vmatprep.subr.mxu0 0.0
    %901 = vmatpush1.msra.mxu0 0.0
    %902 = vmatprep.subr.mxu0 0.0
    %903 = vmatpush1.msra.mxu0 0.0
    %904 = vmatprep.subr.mxu0 0.0
    %905 = vmatpush1.msra.mxu0 0.0
    %906 = vmatprep.subr.mxu0 0.0
    %907 = vmatpush1.msra.mxu0 0.0
    %908 = vmatprep.mubr.f32.mxu0 0.0
    %909 = vmatmul.mubr.f32.gmra.mrb[0].mxu0 %v201
    %v910 = vpop.f32.mrb[0].mxu0
    %v911 = vadd.f32 %v834, %v910
    %v912 = vpop.f32.mrb[0].mxu0
    %v913 = vadd.f32 %v836, %v912
    %914 = vmatprep.mubr.f32.mxu0 0.0
    %915 = vmatmul.mubr.f32.gmra.mrb[0].mxu0 %v204
    %v916 = vpop.f32.mrb[0].mxu0
    %v917 = vadd.f32 %v840, %v916
    %v918 = vpop.f32.mrb[0].mxu0
    %v919 = vadd.f32 %v842, %v918
    %920 = vdwg.mxu0
    %921 = vmatprep.subr.mxu0 %v379
    %922 = vmatpush1.msra.mxu0 %v378
    %923 = vmatprep.subr.mxu0 %v381
    %924 = vmatpush1.msra.mxu0 %v380
    %925 = vmatprep.subr.mxu0 %v383
    %926 = vmatpush1.msra.mxu0 %v382
    %927 = vmatprep.subr.mxu0 %v396
    %928 = vmatpush1.msra.mxu0 %v393
    %929 = vmatprep.subr.mxu0 0.0
    %930 = vmatpush1.msra.mxu0 0.0
    %931 = vmatprep.subr.mxu0 0.0
    %932 = vmatpush1.msra.mxu0 0.0
    %933 = vmatprep.subr.mxu0 0.0
    %934 = vmatpush1.msra.mxu0 0.0
    %935 = vmatprep.subr.mxu0 0.0
    %936 = vmatpush1.msra.mxu0 0.0
    %937 = vmatprep.subr.mxu0 0.0
    %938 = vmatpush1.msra.mxu0 0.0
    %939 = vmatprep.subr.mxu0 0.0
    %940 = vmatpush1.msra.mxu0 0.0
    %941 = vmatprep.subr.mxu0 0.0
    %942 = vmatpush1.msra.mxu0 0.0
    %943 = vmatprep.subr.mxu0 0.0
    %944 = vmatpush1.msra.mxu0 0.0
    %945 = vmatprep.subr.mxu0 0.0
    %946 = vmatpush1.msra.mxu0 0.0
    %947 = vmatprep.subr.mxu0 0.0
    %948 = vmatpush1.msra.mxu0 0.0
    %949 = vmatprep.subr.mxu0 0.0
    %950 = vmatpush1.msra.mxu0 0.0
    %951 = vmatprep.subr.mxu0 0.0
    %952 = vmatpush1.msra.mxu0 0.0
    %953 = vmatprep.subr.mxu0 0.0
    %954 = vmatpush1.msra.mxu0 0.0
    %955 = vmatprep.subr.mxu0 0.0
    %956 = vmatpush1.msra.mxu0 0.0
    %957 = vmatprep.subr.mxu0 0.0
    %958 = vmatpush1.msra.mxu0 0.0
    %959 = vmatprep.subr.mxu0 0.0
    %960 = vmatpush1.msra.mxu0 0.0
    %961 = vmatprep.subr.mxu0 0.0
    %962 = vmatpush1.msra.mxu0 0.0
    %963 = vmatprep.subr.mxu0 0.0
    %964 = vmatpush1.msra.mxu0 0.0
    %965 = vmatprep.subr.mxu0 0.0
    %966 = vmatpush1.msra.mxu0 0.0
    %967 = vmatprep.subr.mxu0 0.0
    %968 = vmatpush1.msra.mxu0 0.0
    %969 = vmatprep.subr.mxu0 0.0
    %970 = vmatpush1.msra.mxu0 0.0
    %971 = vmatprep.subr.mxu0 0.0
    %972 = vmatpush1.msra.mxu0 0.0
    %973 = vmatprep.subr.mxu0 0.0
    %974 = vmatpush1.msra.mxu0 0.0
    %975 = vmatprep.subr.mxu0 0.0
    %976 = vmatpush1.msra.mxu0 0.0
    %977 = vmatprep.subr.mxu0 0.0
    %978 = vmatpush1.msra.mxu0 0.0
    %979 = vmatprep.subr.mxu0 0.0
    %980 = vmatpush1.msra.mxu0 0.0
    %981 = vmatprep.subr.mxu0 0.0
    %982 = vmatpush1.msra.mxu0 0.0
    %983 = vmatprep.subr.mxu0 0.0
    %984 = vmatpush1.msra.mxu0 0.0
    %985 = vmatprep.mubr.f32.mxu0 0.0
    %986 = vmatmul.mubr.f32.gmra.mrb[0].mxu0 %v518
    %v987 = vpop.f32.mrb[0].mxu0
    %v988 = vadd.f32 0.0, %v987
    %v989 = vpop.f32.mrb[0].mxu0
    %v990 = vadd.f32 0.0, %v989
    %991 = vmatprep.mubr.f32.mxu0 0.0
    %992 = vmatmul.mubr.f32.gmra.mrb[0].mxu0 %v521
    %v993 = vpop.f32.mrb[0].mxu0
    %v994 = vadd.f32 0.0, %v993
    %v995 = vpop.f32.mrb[0].mxu0
    %v996 = vadd.f32 0.0, %v995
    %997 = vdwg.mxu0
    %v998 = vadd.f32 %v911, %v988
    %v999 = vadd.f32 %v913, %v990
    %v1000 = vadd.f32 %v917, %v994
    %v1001 = vadd.f32 %v919, %v996
    %1002 = vmatprep.subr.mxu0 %v502
    %1003 = vmatpush1.msra.mxu0 %v499
    %1004 = vmatprep.subr.mxu0 %v506
    %1005 = vmatpush1.msra.mxu0 %v504
    %1006 = vmatprep.subr.mxu0 %v510
    %1007 = vmatpush1.msra.mxu0 %v508
    %1008 = vmatprep.subr.mxu0 %v525
    %1009 = vmatpush1.msra.mxu0 %v523
    %1010 = vmatprep.subr.mxu0 0.0
    %1011 = vmatpush1.msra.mxu0 0.0
    %1012 = vmatprep.subr.mxu0 0.0
    %1013 = vmatpush1.msra.mxu0 0.0
    %1014 = vmatprep.subr.mxu0 0.0
    %1015 = vmatpush1.msra.mxu0 0.0
    %1016 = vmatprep.subr.mxu0 0.0
    %1017 = vmatpush1.msra.mxu0 0.0
    %1018 = vmatprep.subr.mxu0 0.0
    %1019 = vmatpush1.msra.mxu0 0.0
    %1020 = vmatprep.subr.mxu0 0.0
    %1021 = vmatpush1.msra.mxu0 0.0
    %1022 = vmatprep.subr.mxu0 0.0
    %1023 = vmatpush1.msra.mxu0 0.0
    %1024 = vmatprep.subr.mxu0 0.0
    %1025 = vmatpush1.msra.mxu0 0.0
    %1026 = vmatprep.subr.mxu0 0.0
    %1027 = vmatpush1.msra.mxu0 0.0
    %1028 = vmatprep.subr.mxu0 0.0
    %1029 = vmatpush1.msra.mxu0 0.0
    %1030 = vmatprep.subr.mxu0 0.0
    %1031 = vmatpush1.msra.mxu0 0.0
    %1032 = vmatprep.subr.mxu0 0.0
    %1033 = vmatpush1.msra.mxu0 0.0
    %1034 = vmatprep.subr.mxu0 0.0
    %1035 = vmatpush1.msra.mxu0 0.0
    %1036 = vmatprep.subr.mxu0 0.0
    %1037 = vmatpush1.msra.mxu0 0.0
    %1038 = vmatprep.subr.mxu0 0.0
    %1039 = vmatpush1.msra.mxu0 0.0
    %1040 = vmatprep.subr.mxu0 0.0
    %1041 = vmatpush1.msra.mxu0 0.0
    %1042 = vmatprep.subr.mxu0 0.0
    %1043 = vmatpush1.msra.mxu0 0.0
    %1044 = vmatprep.subr.mxu0 0.0
    %1045 = vmatpush1.msra.mxu0 0.0
    %1046 = vmatprep.subr.mxu0 0.0
    %1047 = vmatpush1.msra.mxu0 0.0
    %1048 = vmatprep.subr.mxu0 0.0
    %1049 = vmatpush1.msra.mxu0 0.0
    %1050 = vmatprep.subr.mxu0 0.0
    %1051 = vmatpush1.msra.mxu0 0.0
    %1052 = vmatprep.subr.mxu0 0.0
    %1053 = vmatpush1.msra.mxu0 0.0
    %1054 = vmatprep.subr.mxu0 0.0
    %1055 = vmatpush1.msra.mxu0 0.0
    %1056 = vmatprep.subr.mxu0 0.0
    %1057 = vmatpush1.msra.mxu0 0.0
    %1058 = vmatprep.subr.mxu0 0.0
    %1059 = vmatpush1.msra.mxu0 0.0
    %1060 = vmatprep.subr.mxu0 0.0
    %1061 = vmatpush1.msra.mxu0 0.0
    %1062 = vmatprep.subr.mxu0 0.0
    %1063 = vmatpush1.msra.mxu0 0.0
    %1064 = vmatprep.subr.mxu0 0.0
    %1065 = vmatpush1.msra.mxu0 0.0
    %1066 = vmatprep.mubr.f32.mxu0 0.0
    %1067 = vmatmul.mubr.f32.gmra.mrb[0].mxu0 %v619
    %v1068 = vpop.f32.mrb[0].mxu0
    %v1069 = vadd.f32 0.0, %v1068
    %v1070 = vpop.f32.mrb[0].mxu0
    %v1071 = vadd.f32 0.0, %v1070
    %1072 = vmatprep.mubr.f32.mxu0 0.0
    %1073 = vmatmul.mubr.f32.gmra.mrb[0].mxu0 %v622
    %v1074 = vpop.f32.mrb[0].mxu0
    %v1075 = vadd.f32 0.0, %v1074
    %v1076 = vpop.f32.mrb[0].mxu0
    %v1077 = vadd.f32 0.0, %v1076
    %1078 = vdwg.mxu0
    %v1079 = vadd.f32 %v998, %v1069
    %v1080 = vadd.f32 %v999, %v1071
    %v1081 = vadd.f32 %v1000, %v1075
    %v1082 = vadd.f32 %v1001, %v1077
    %v1083 = vld [vmem:[%s0 + $0x10] sm:$0xff]
    %v1084 = vld [vmem:[%s0 + $0x18] sm:$0xf]
    %v1086 = vsel %vm199, %v1083, 0
    %v1089 = vsel %vm199, %v1084, 0
    %1091 = vmatprep.subr.mxu0 %v611
    %1092 = vmatpush1.msra.mxu0 %v610
    %1093 = vmatprep.subr.mxu0 %v613
    %1094 = vmatpush1.msra.mxu0 %v612
    %1095 = vmatprep.subr.mxu0 %v615
    %1096 = vmatpush1.msra.mxu0 %v614
    %1097 = vmatprep.subr.mxu0 %v628
    %1098 = vmatpush1.msra.mxu0 %v625
    %1099 = vmatprep.subr.mxu0 0.0
    %1100 = vmatpush1.msra.mxu0 0.0
    %1101 = vmatprep.subr.mxu0 0.0
    %1102 = vmatpush1.msra.mxu0 0.0
    %1103 = vmatprep.subr.mxu0 0.0
    %1104 = vmatpush1.msra.mxu0 0.0
    %1105 = vmatprep.subr.mxu0 0.0
    %1106 = vmatpush1.msra.mxu0 0.0
    %1107 = vmatprep.subr.mxu0 0.0
    %1108 = vmatpush1.msra.mxu0 0.0
    %1109 = vmatprep.subr.mxu0 0.0
    %1110 = vmatpush1.msra.mxu0 0.0
    %1111 = vmatprep.subr.mxu0 0.0
    %1112 = vmatpush1.msra.mxu0 0.0
    %1113 = vmatprep.subr.mxu0 0.0
    %1114 = vmatpush1.msra.mxu0 0.0
    %1115 = vmatprep.subr.mxu0 0.0
    %1116 = vmatpush1.msra.mxu0 0.0
    %1117 = vmatprep.subr.mxu0 0.0
    %1118 = vmatpush1.msra.mxu0 0.0
    %1119 = vmatprep.subr.mxu0 0.0
    %1120 = vmatpush1.msra.mxu0 0.0
    %1121 = vmatprep.subr.mxu0 0.0
    %1122 = vmatpush1.msra.mxu0 0.0
    %1123 = vmatprep.subr.mxu0 0.0
    %1124 = vmatpush1.msra.mxu0 0.0
    %1125 = vmatprep.subr.mxu0 0.0
    %1126 = vmatpush1.msra.mxu0 0.0
    %1127 = vmatprep.subr.mxu0 0.0
    %1128 = vmatpush1.msra.mxu0 0.0
    %1129 = vmatprep.subr.mxu0 0.0
    %1130 = vmatpush1.msra.mxu0 0.0
    %1131 = vmatprep.subr.mxu0 0.0
    %1132 = vmatpush1.msra.mxu0 0.0
    %1133 = vmatprep.subr.mxu0 0.0
    %1134 = vmatpush1.msra.mxu0 0.0
    %1135 = vmatprep.subr.mxu0 0.0
    %1136 = vmatpush1.msra.mxu0 0.0
    %1137 = vmatprep.subr.mxu0 0.0
    %1138 = vmatpush1.msra.mxu0 0.0
    %1139 = vmatprep.subr.mxu0 0.0
    %1140 = vmatpush1.msra.mxu0 0.0
    %1141 = vmatprep.subr.mxu0 0.0
    %1142 = vmatpush1.msra.mxu0 0.0
    %1143 = vmatprep.subr.mxu0 0.0
    %1144 = vmatpush1.msra.mxu0 0.0
    %1145 = vmatprep.subr.mxu0 0.0
    %1146 = vmatpush1.msra.mxu0 0.0
    %1147 = vmatprep.subr.mxu0 0.0
    %1148 = vmatpush1.msra.mxu0 0.0
    %1149 = vmatprep.subr.mxu0 0.0
    %1150 = vmatpush1.msra.mxu0 0.0
    %1151 = vmatprep.subr.mxu0 0.0
    %1152 = vmatpush1.msra.mxu0 0.0
    %1153 = vmatprep.subr.mxu0 0.0
    %1154 = vmatpush1.msra.mxu0 0.0
    %1155 = vmatprep.mubr.f32.mxu0 0.0
    %1156 = vmatmul.mubr.f32.gmra.mrb[0].mxu0 %v1086
    %v1157 = vpop.f32.mrb[0].mxu0
    %v1158 = vadd.f32 0.0, %v1157
    %v1159 = vpop.f32.mrb[0].mxu0
    %v1160 = vadd.f32 0.0, %v1159
    %1161 = vmatprep.mubr.f32.mxu0 0.0
    %1162 = vmatmul.mubr.f32.gmra.mrb[0].mxu0 %v1089
    %v1163 = vpop.f32.mrb[0].mxu0
    %v1164 = vadd.f32 0.0, %v1163
    %v1165 = vpop.f32.mrb[0].mxu0
    %v1166 = vadd.f32 0.0, %v1165
    %1167 = vdwg.mxu0
    %v1168 = vadd.f32 %v1079, %v1158
    %v1169 = vadd.f32 %v1080, %v1160
    %v1170 = vadd.f32 %v1081, %v1164
    %v1171 = vadd.f32 %v1082, %v1166
    %v1172 = vadd.f32 %v1168, %v714
    %v1173 = vadd.f32 %v1169, %v718
    %v1174 = vadd.f32 %v1170, %v714
    %v1175 = vadd.f32 %v1171, %v718
    %v1176 = vsel %vm178, %v1174, 0.0
    %v1177 = vadd.f32 %v1172, %v1176
    %v1178 = vrot.slane %v1177, 4
    %v1179 = vadd.f32 %v1177, %v1178
    %v1180 = vrot.slane %v1179, 2
    %v1181 = vadd.f32 %v1179, %v1180
    %v1182 = vrot.slane %v1181, 1
    %v1183 = vadd.f32 %v1181, %v1182
    %v1184 = vsel %vm731, %v1173, 0.0
    %v1185 = vsel %vm733, %v1175, 0.0
    %v1186 = vadd.f32 %v1184, %v1185
    %v1187 = vrot.slane %v1186, 4
    %v1188 = vadd.f32 %v1186, %v1187
    %v1189 = vrot.slane %v1188, 2
    %v1190 = vadd.f32 %v1188, %v1189
    %v1191 = vrot.slane %v1190, 1
    %v1192 = vadd.f32 %v1190, %v1191
    %v1193 = vadd.f32 %v742, %v1183
    %v1194 = vadd.f32 %v743, %v1192
    %v1195 = vmul.f32 %v1172, %v1172
    %v1196 = vmul.f32 %v1173, %v1173
    %v1197 = vmul.f32 %v1174, %v1174
    %v1198 = vmul.f32 %v1175, %v1175
    %v1199 = vsel %vm178, %v1197, 0.0
    %v1200 = vadd.f32 %v1195, %v1199
    %v1201 = vrot.slane %v1200, 4
    %v1202 = vadd.f32 %v1200, %v1201
    %v1203 = vrot.slane %v1202, 2
    %v1204 = vadd.f32 %v1202, %v1203
    %v1205 = vrot.slane %v1204, 1
    %v1206 = vadd.f32 %v1204, %v1205
    %v1207 = vsel %vm731, %v1196, 0.0
    %v1208 = vsel %vm733, %v1198, 0.0
    %v1209 = vadd.f32 %v1207, %v1208
    %v1210 = vrot.slane %v1209, 4
    %v1211 = vadd.f32 %v1209, %v1210
    %v1212 = vrot.slane %v1211, 2
    %v1213 = vadd.f32 %v1211, %v1212
    %v1214 = vrot.slane %v1213, 1
    %v1215 = vadd.f32 %v1213, %v1214
    %v1216 = vadd.f32 %v765, %v1206
    %v1217 = vadd.f32 %v766, %v1215
    %1218 = vmatprep.subr.mxu0 %v184
    %1219 = vmatpush1.msra.mxu0 %v181
    %1220 = vmatprep.subr.mxu0 %v188
    %1221 = vmatpush1.msra.mxu0 %v186
    %1222 = vmatprep.subr.mxu0 %v192
    %1223 = vmatpush1.msra.mxu0 %v190
    %1224 = vmatprep.subr.mxu0 %v208
    %1225 = vmatpush1.msra.mxu0 %v206
    %1226 = vmatprep.subr.mxu0 0.0
    %1227 = vmatpush1.msra.mxu0 0.0
    %1228 = vmatprep.subr.mxu0 0.0
    %1229 = vmatpush1.msra.mxu0 0.0
    %1230 = vmatprep.subr.mxu0 0.0
    %1231 = vmatpush1.msra.mxu0 0.0
    %1232 = vmatprep.subr.mxu0 0.0
    %1233 = vmatpush1.msra.mxu0 0.0
    %1234 = vmatprep.subr.mxu0 0.0
    %1235 = vmatpush1.msra.mxu0 0.0
    %1236 = vmatprep.subr.mxu0 0.0
    %1237 = vmatpush1.msra.mxu0 0.0
    %1238 = vmatprep.subr.mxu0 0.0
    %1239 = vmatpush1.msra.mxu0 0.0
    %1240 = vmatprep.subr.mxu0 0.0
    %1241 = vmatpush1.msra.mxu0 0.0
    %1242 = vmatprep.subr.mxu0 0.0
    %1243 = vmatpush1.msra.mxu0 0.0
    %1244 = vmatprep.subr.mxu0 0.0
    %1245 = vmatpush1.msra.mxu0 0.0
    %1246 = vmatprep.subr.mxu0 0.0
    %1247 = vmatpush1.msra.mxu0 0.0
    %1248 = vmatprep.subr.mxu0 0.0
    %1249 = vmatpush1.msra.mxu0 0.0
    %1250 = vmatprep.subr.mxu0 0.0
    %1251 = vmatpush1.msra.mxu0 0.0
    %1252 = vmatprep.subr.mxu0 0.0
    %1253 = vmatpush1.msra.mxu0 0.0
    %1254 = vmatprep.subr.mxu0 0.0
    %1255 = vmatpush1.msra.mxu0 0.0
    %1256 = vmatprep.subr.mxu0 0.0
    %1257 = vmatpush1.msra.mxu0 0.0
    %1258 = vmatprep.subr.mxu0 0.0
    %1259 = vmatpush1.msra.mxu0 0.0
    %1260 = vmatprep.subr.mxu0 0.0
    %1261 = vmatpush1.msra.mxu0 0.0
    %1262 = vmatprep.subr.mxu0 0.0
    %1263 = vmatpush1.msra.mxu0 0.0
    %1264 = vmatprep.subr.mxu0 0.0
    %1265 = vmatpush1.msra.mxu0 0.0
    %1266 = vmatprep.subr.mxu0 0.0
    %1267 = vmatpush1.msra.mxu0 0.0
    %1268 = vmatprep.subr.mxu0 0.0
    %1269 = vmatpush1.msra.mxu0 0.0
    %1270 = vmatprep.subr.mxu0 0.0
    %1271 = vmatpush1.msra.mxu0 0.0
    %1272 = vmatprep.subr.mxu0 0.0
    %1273 = vmatpush1.msra.mxu0 0.0
    %1274 = vmatprep.subr.mxu0 0.0
    %1275 = vmatpush1.msra.mxu0 0.0
    %1276 = vmatprep.subr.mxu0 0.0
    %1277 = vmatpush1.msra.mxu0 0.0
    %1278 = vmatprep.subr.mxu0 0.0
    %1279 = vmatpush1.msra.mxu0 0.0
    %1280 = vmatprep.subr.mxu0 0.0
    %1281 = vmatpush1.msra.mxu0 0.0
    %1282 = vmatprep.mubr.f32.mxu0 0.0
    %1283 = vmatmul.mubr.f32.gmra.mrb[0].mxu0 %v518
    %v1284 = vpop.f32.mrb[0].mxu0
    %v1285 = vadd.f32 0.0, %v1284
    %v1286 = vpop.f32.mrb[0].mxu0
    %v1287 = vadd.f32 0.0, %v1286
    %1288 = vmatprep.mubr.f32.mxu0 0.0
    %1289 = vmatmul.mubr.f32.gmra.mrb[0].mxu0 %v521
    %v1290 = vpop.f32.mrb[0].mxu0
    %v1291 = vadd.f32 0.0, %v1290
    %v1292 = vpop.f32.mrb[0].mxu0
    %v1293 = vadd.f32 0.0, %v1292
    %1294 = vdwg.mxu0
    %1295 = vmatprep.subr.mxu0 %v153
    %1296 = vmatpush1.msra.mxu0 %v152
    %1297 = vmatprep.subr.mxu0 %v155
    %1298 = vmatpush1.msra.mxu0 %v154
    %1299 = vmatprep.subr.mxu0 %v157
    %1300 = vmatpush1.msra.mxu0 %v156
    %1301 = vmatprep.subr.mxu0 %v297
    %1302 = vmatpush1.msra.mxu0 %v294
    %1303 = vmatprep.subr.mxu0 0.0
    %1304 = vmatpush1.msra.mxu0 0.0
    %1305 = vmatprep.subr.mxu0 0.0
    %1306 = vmatpush1.msra.mxu0 0.0
    %1307 = vmatprep.subr.mxu0 0.0
    %1308 = vmatpush1.msra.mxu0 0.0
    %1309 = vmatprep.subr.mxu0 0.0
    %1310 = vmatpush1.msra.mxu0 0.0
    %1311 = vmatprep.subr.mxu0 0.0
    %1312 = vmatpush1.msra.mxu0 0.0
    %1313 = vmatprep.subr.mxu0 0.0
    %1314 = vmatpush1.msra.mxu0 0.0
    %1315 = vmatprep.subr.mxu0 0.0
    %1316 = vmatpush1.msra.mxu0 0.0
    %1317 = vmatprep.subr.mxu0 0.0
    %1318 = vmatpush1.msra.mxu0 0.0
    %1319 = vmatprep.subr.mxu0 0.0
    %1320 = vmatpush1.msra.mxu0 0.0
    %1321 = vmatprep.subr.mxu0 0.0
    %1322 = vmatpush1.msra.mxu0 0.0
    %1323 = vmatprep.subr.mxu0 0.0
    %1324 = vmatpush1.msra.mxu0 0.0
    %1325 = vmatprep.subr.mxu0 0.0
    %1326 = vmatpush1.msra.mxu0 0.0
    %1327 = vmatprep.subr.mxu0 0.0
    %1328 = vmatpush1.msra.mxu0 0.0
    %1329 = vmatprep.subr.mxu0 0.0
    %1330 = vmatpush1.msra.mxu0 0.0
    %1331 = vmatprep.subr.mxu0 0.0
    %1332 = vmatpush1.msra.mxu0 0.0
    %1333 = vmatprep.subr.mxu0 0.0
    %1334 = vmatpush1.msra.mxu0 0.0
    %1335 = vmatprep.subr.mxu0 0.0
    %1336 = vmatpush1.msra.mxu0 0.0
    %1337 = vmatprep.subr.mxu0 0.0
    %1338 = vmatpush1.msra.mxu0 0.0
    %1339 = vmatprep.subr.mxu0 0.0
    %1340 = vmatpush1.msra.mxu0 0.0
    %1341 = vmatprep.subr.mxu0 0.0
    %1342 = vmatpush1.msra.mxu0 0.0
    %1343 = vmatprep.subr.mxu0 0.0
    %1344 = vmatpush1.msra.mxu0 0.0
    %1345 = vmatprep.subr.mxu0 0.0
    %1346 = vmatpush1.msra.mxu0 0.0
    %1347 = vmatprep.subr.mxu0 0.0
    %1348 = vmatpush1.msra.mxu0 0.0
    %1349 = vmatprep.subr.mxu0 0.0
    %1350 = vmatpush1.msra.mxu0 0.0
    %1351 = vmatprep.subr.mxu0 0.0
    %1352 = vmatpush1.msra.mxu0 0.0
    %1353 = vmatprep.subr.mxu0 0.0
    %1354 = vmatpush1.msra.mxu0 0.0
    %1355 = vmatprep.subr.mxu0 0.0
    %1356 = vmatpush1.msra.mxu0 0.0
    %1357 = vmatprep.subr.mxu0 0.0
    %1358 = vmatpush1.msra.mxu0 0.0
    %1359 = vmatprep.mubr.f32.mxu0 0.0
    %1360 = vmatmul.mubr.f32.gmra.mrb[0].mxu0 %v387
    %v1361 = vpop.f32.mrb[0].mxu0
    %v1362 = vadd.f32 %v1285, %v1361
    %v1363 = vpop.f32.mrb[0].mxu0
    %v1364 = vadd.f32 %v1287, %v1363
    %1365 = vmatprep.mubr.f32.mxu0 0.0
    %1366 = vmatmul.mubr.f32.gmra.mrb[0].mxu0 %v390
    %v1367 = vpop.f32.mrb[0].mxu0
    %v1368 = vadd.f32 %v1291, %v1367
    %v1369 = vpop.f32.mrb[0].mxu0
    %v1370 = vadd.f32 %v1293, %v1369
    %1371 = vdwg.mxu0
    %1372 = vmatprep.subr.mxu0 %v379
    %1373 = vmatpush1.msra.mxu0 %v378
    %1374 = vmatprep.subr.mxu0 %v381
    %1375 = vmatpush1.msra.mxu0 %v380
    %1376 = vmatprep.subr.mxu0 %v383
    %1377 = vmatpush1.msra.mxu0 %v382
    %1378 = vmatprep.subr.mxu0 %v396
    %1379 = vmatpush1.msra.mxu0 %v393
    %1380 = vmatprep.subr.mxu0 0.0
    %1381 = vmatpush1.msra.mxu0 0.0
    %1382 = vmatprep.subr.mxu0 0.0
    %1383 = vmatpush1.msra.mxu0 0.0
    %1384 = vmatprep.subr.mxu0 0.0
    %1385 = vmatpush1.msra.mxu0 0.0
    %1386 = vmatprep.subr.mxu0 0.0
    %1387 = vmatpush1.msra.mxu0 0.0
    %1388 = vmatprep.subr.mxu0 0.0
    %1389 = vmatpush1.msra.mxu0 0.0
    %1390 = vmatprep.subr.mxu0 0.0
    %1391 = vmatpush1.msra.mxu0 0.0
    %1392 = vmatprep.subr.mxu0 0.0
    %1393 = vmatpush1.msra.mxu0 0.0
    %1394 = vmatprep.subr.mxu0 0.0
    %1395 = vmatpush1.msra.mxu0 0.0
    %1396 = vmatprep.subr.mxu0 0.0
    %1397 = vmatpush1.msra.mxu0 0.0
    %1398 = vmatprep.subr.mxu0 0.0
    %1399 = vmatpush1.msra.mxu0 0.0
    %1400 = vmatprep.subr.mxu0 0.0
    %1401 = vmatpush1.msra.mxu0 0.0
    %1402 = vmatprep.subr.mxu0 0.0
    %1403 = vmatpush1.msra.mxu0 0.0
    %1404 = vmatprep.subr.mxu0 0.0
    %1405 = vmatpush1.msra.mxu0 0.0
    %1406 = vmatprep.subr.mxu0 0.0
    %1407 = vmatpush1.msra.mxu0 0.0
    %1408 = vmatprep.subr.mxu0 0.0
    %1409 = vmatpush1.msra.mxu0 0.0
    %1410 = vmatprep.subr.mxu0 0.0
    %1411 = vmatpush1.msra.mxu0 0.0
    %1412 = vmatprep.subr.mxu0 0.0
    %1413 = vmatpush1.msra.mxu0 0.0
    %1414 = vmatprep.subr.mxu0 0.0
    %1415 = vmatpush1.msra.mxu0 0.0
    %1416 = vmatprep.subr.mxu0 0.0
    %1417 = vmatpush1.msra.mxu0 0.0
    %1418 = vmatprep.subr.mxu0 0.0
    %1419 = vmatpush1.msra.mxu0 0.0
    %1420 = vmatprep.subr.mxu0 0.0
    %1421 = vmatpush1.msra.mxu0 0.0
    %1422 = vmatprep.subr.mxu0 0.0
    %1423 = vmatpush1.msra.mxu0 0.0
    %1424 = vmatprep.subr.mxu0 0.0
    %1425 = vmatpush1.msra.mxu0 0.0
    %1426 = vmatprep.subr.mxu0 0.0
    %1427 = vmatpush1.msra.mxu0 0.0
    %1428 = vmatprep.subr.mxu0 0.0
    %1429 = vmatpush1.msra.mxu0 0.0
    %1430 = vmatprep.subr.mxu0 0.0
    %1431 = vmatpush1.msra.mxu0 0.0
    %1432 = vmatprep.subr.mxu0 0.0
    %1433 = vmatpush1.msra.mxu0 0.0
    %1434 = vmatprep.subr.mxu0 0.0
    %1435 = vmatpush1.msra.mxu0 0.0
    %1436 = vmatprep.mubr.f32.mxu0 0.0
    %1437 = vmatmul.mubr.f32.gmra.mrb[0].mxu0 %v619
    %v1438 = vpop.f32.mrb[0].mxu0
    %v1439 = vadd.f32 0.0, %v1438
    %v1440 = vpop.f32.mrb[0].mxu0
    %v1441 = vadd.f32 0.0, %v1440
    %1442 = vmatprep.mubr.f32.mxu0 0.0
    %1443 = vmatmul.mubr.f32.gmra.mrb[0].mxu0 %v622
    %v1444 = vpop.f32.mrb[0].mxu0
    %v1445 = vadd.f32 0.0, %v1444
    %v1446 = vpop.f32.mrb[0].mxu0
    %v1447 = vadd.f32 0.0, %v1446
    %1448 = vdwg.mxu0
    %v1449 = vadd.f32 %v1362, %v1439
    %v1450 = vadd.f32 %v1364, %v1441
    %v1451 = vadd.f32 %v1368, %v1445
    %v1452 = vadd.f32 %v1370, %v1447
    %1453 = vmatprep.subr.mxu0 %v502
    %1454 = vmatpush1.msra.mxu0 %v499
    %1455 = vmatprep.subr.mxu0 %v506
    %1456 = vmatpush1.msra.mxu0 %v504
    %1457 = vmatprep.subr.mxu0 %v510
    %1458 = vmatpush1.msra.mxu0 %v508
    %1459 = vmatprep.subr.mxu0 %v525
    %1460 = vmatpush1.msra.mxu0 %v523
    %1461 = vmatprep.subr.mxu0 0.0
    %1462 = vmatpush1.msra.mxu0 0.0
    %1463 = vmatprep.subr.mxu0 0.0
    %1464 = vmatpush1.msra.mxu0 0.0
    %1465 = vmatprep.subr.mxu0 0.0
    %1466 = vmatpush1.msra.mxu0 0.0
    %1467 = vmatprep.subr.mxu0 0.0
    %1468 = vmatpush1.msra.mxu0 0.0
    %1469 = vmatprep.subr.mxu0 0.0
    %1470 = vmatpush1.msra.mxu0 0.0
    %1471 = vmatprep.subr.mxu0 0.0
    %1472 = vmatpush1.msra.mxu0 0.0
    %1473 = vmatprep.subr.mxu0 0.0
    %1474 = vmatpush1.msra.mxu0 0.0
    %1475 = vmatprep.subr.mxu0 0.0
    %1476 = vmatpush1.msra.mxu0 0.0
    %1477 = vmatprep.subr.mxu0 0.0
    %1478 = vmatpush1.msra.mxu0 0.0
    %1479 = vmatprep.subr.mxu0 0.0
    %1480 = vmatpush1.msra.mxu0 0.0
    %1481 = vmatprep.subr.mxu0 0.0
    %1482 = vmatpush1.msra.mxu0 0.0
    %1483 = vmatprep.subr.mxu0 0.0
    %1484 = vmatpush1.msra.mxu0 0.0
    %1485 = vmatprep.subr.mxu0 0.0
    %1486 = vmatpush1.msra.mxu0 0.0
    %1487 = vmatprep.subr.mxu0 0.0
    %1488 = vmatpush1.msra.mxu0 0.0
    %1489 = vmatprep.subr.mxu0 0.0
    %1490 = vmatpush1.msra.mxu0 0.0
    %1491 = vmatprep.subr.mxu0 0.0
    %1492 = vmatpush1.msra.mxu0 0.0
    %1493 = vmatprep.subr.mxu0 0.0
    %1494 = vmatpush1.msra.mxu0 0.0
    %1495 = vmatprep.subr.mxu0 0.0
    %1496 = vmatpush1.msra.mxu0 0.0
    %1497 = vmatprep.subr.mxu0 0.0
    %1498 = vmatpush1.msra.mxu0 0.0
    %1499 = vmatprep.subr.mxu0 0.0
    %1500 = vmatpush1.msra.mxu0 0.0
    %1501 = vmatprep.subr.mxu0 0.0
    %1502 = vmatpush1.msra.mxu0 0.0
    %1503 = vmatprep.subr.mxu0 0.0
    %1504 = vmatpush1.msra.mxu0 0.0
    %1505 = vmatprep.subr.mxu0 0.0
    %1506 = vmatpush1.msra.mxu0 0.0
    %1507 = vmatprep.subr.mxu0 0.0
    %1508 = vmatpush1.msra.mxu0 0.0
    %1509 = vmatprep.subr.mxu0 0.0
    %1510 = vmatpush1.msra.mxu0 0.0
    %1511 = vmatprep.subr.mxu0 0.0
    %1512 = vmatpush1.msra.mxu0 0.0
    %1513 = vmatprep.subr.mxu0 0.0
    %1514 = vmatpush1.msra.mxu0 0.0
    %1515 = vmatprep.subr.mxu0 0.0
    %1516 = vmatpush1.msra.mxu0 0.0
    %1517 = vmatprep.mubr.f32.mxu0 0.0
    %1518 = vmatmul.mubr.f32.gmra.mrb[0].mxu0 %v1086
    %v1519 = vpop.f32.mrb[0].mxu0
    %v1520 = vadd.f32 0.0, %v1519
    %v1521 = vpop.f32.mrb[0].mxu0
    %v1522 = vadd.f32 0.0, %v1521
    %1523 = vmatprep.mubr.f32.mxu0 0.0
    %1524 = vmatmul.mubr.f32.gmra.mrb[0].mxu0 %v1089
    %v1525 = vpop.f32.mrb[0].mxu0
    %v1526 = vadd.f32 0.0, %v1525
    %v1527 = vpop.f32.mrb[0].mxu0
    %v1528 = vadd.f32 0.0, %v1527
    %1529 = vdwg.mxu0
    %v1530 = vadd.f32 %v1449, %v1520
    %v1531 = vadd.f32 %v1450, %v1522
    %v1532 = vadd.f32 %v1451, %v1526
    %v1533 = vadd.f32 %v1452, %v1528
    %v1534 = vld [vmem:[%s0 + $0x1e] sm:$0xff]
    %v1535 = vld [vmem:[%s0 + $0x26] sm:$0xf]
    %v1537 = vsel %vm199, %v1534, 0
    %v1540 = vsel %vm199, %v1535, 0
    %1542 = vmatprep.subr.mxu0 %v611
    %1543 = vmatpush1.msra.mxu0 %v610
    %1544 = vmatprep.subr.mxu0 %v613
    %1545 = vmatpush1.msra.mxu0 %v612
    %1546 = vmatprep.subr.mxu0 %v615
    %1547 = vmatpush1.msra.mxu0 %v614
    %1548 = vmatprep.subr.mxu0 %v628
    %1549 = vmatpush1.msra.mxu0 %v625
    %1550 = vmatprep.subr.mxu0 0.0
    %1551 = vmatpush1.msra.mxu0 0.0
    %1552 = vmatprep.subr.mxu0 0.0
    %1553 = vmatpush1.msra.mxu0 0.0
    %1554 = vmatprep.subr.mxu0 0.0
    %1555 = vmatpush1.msra.mxu0 0.0
    %1556 = vmatprep.subr.mxu0 0.0
    %1557 = vmatpush1.msra.mxu0 0.0
    %1558 = vmatprep.subr.mxu0 0.0
    %1559 = vmatpush1.msra.mxu0 0.0
    %1560 = vmatprep.subr.mxu0 0.0
    %1561 = vmatpush1.msra.mxu0 0.0
    %1562 = vmatprep.subr.mxu0 0.0
    %1563 = vmatpush1.msra.mxu0 0.0
    %1564 = vmatprep.subr.mxu0 0.0
    %1565 = vmatpush1.msra.mxu0 0.0
    %1566 = vmatprep.subr.mxu0 0.0
    %1567 = vmatpush1.msra.mxu0 0.0
    %1568 = vmatprep.subr.mxu0 0.0
    %1569 = vmatpush1.msra.mxu0 0.0
    %1570 = vmatprep.subr.mxu0 0.0
    %1571 = vmatpush1.msra.mxu0 0.0
    %1572 = vmatprep.subr.mxu0 0.0
    %1573 = vmatpush1.msra.mxu0 0.0
    %1574 = vmatprep.subr.mxu0 0.0
    %1575 = vmatpush1.msra.mxu0 0.0
    %1576 = vmatprep.subr.mxu0 0.0
    %1577 = vmatpush1.msra.mxu0 0.0
    %1578 = vmatprep.subr.mxu0 0.0
    %1579 = vmatpush1.msra.mxu0 0.0
    %1580 = vmatprep.subr.mxu0 0.0
    %1581 = vmatpush1.msra.mxu0 0.0
    %1582 = vmatprep.subr.mxu0 0.0
    %1583 = vmatpush1.msra.mxu0 0.0
    %1584 = vmatprep.subr.mxu0 0.0
    %1585 = vmatpush1.msra.mxu0 0.0
    %1586 = vmatprep.subr.mxu0 0.0
    %1587 = vmatpush1.msra.mxu0 0.0
    %1588 = vmatprep.subr.mxu0 0.0
    %1589 = vmatpush1.msra.mxu0 0.0
    %1590 = vmatprep.subr.mxu0 0.0
    %1591 = vmatpush1.msra.mxu0 0.0
    %1592 = vmatprep.subr.mxu0 0.0
    %1593 = vmatpush1.msra.mxu0 0.0
    %1594 = vmatprep.subr.mxu0 0.0
    %1595 = vmatpush1.msra.mxu0 0.0
    %1596 = vmatprep.subr.mxu0 0.0
    %1597 = vmatpush1.msra.mxu0 0.0
    %1598 = vmatprep.subr.mxu0 0.0
    %1599 = vmatpush1.msra.mxu0 0.0
    %1600 = vmatprep.subr.mxu0 0.0
    %1601 = vmatpush1.msra.mxu0 0.0
    %1602 = vmatprep.subr.mxu0 0.0
    %1603 = vmatpush1.msra.mxu0 0.0
    %1604 = vmatprep.subr.mxu0 0.0
    %1605 = vmatpush1.msra.mxu0 0.0
    %1606 = vmatprep.mubr.f32.mxu0 0.0
    %1607 = vmatmul.mubr.f32.gmra.mrb[0].mxu0 %v1537
    %v1608 = vpop.f32.mrb[0].mxu0
    %v1609 = vadd.f32 0.0, %v1608
    %v1610 = vpop.f32.mrb[0].mxu0
    %v1611 = vadd.f32 0.0, %v1610
    %1612 = vmatprep.mubr.f32.mxu0 0.0
    %1613 = vmatmul.mubr.f32.gmra.mrb[0].mxu0 %v1540
    %v1614 = vpop.f32.mrb[0].mxu0
    %v1615 = vadd.f32 0.0, %v1614
    %v1616 = vpop.f32.mrb[0].mxu0
    %v1617 = vadd.f32 0.0, %v1616
    %1618 = vdwg.mxu0
    %v1619 = vadd.f32 %v1530, %v1609
    %v1620 = vadd.f32 %v1531, %v1611
    %v1621 = vadd.f32 %v1532, %v1615
    %v1622 = vadd.f32 %v1533, %v1617
    %v1623 = vadd.f32 %v1619, %v714
    %v1624 = vadd.f32 %v1620, %v718
    %v1625 = vadd.f32 %v1621, %v714
    %v1626 = vadd.f32 %v1622, %v718
    %v1627 = vsel %vm178, %v1625, 0.0
    %v1628 = vadd.f32 %v1623, %v1627
    %v1629 = vrot.slane %v1628, 4
    %v1630 = vadd.f32 %v1628, %v1629
    %v1631 = vrot.slane %v1630, 2
    %v1632 = vadd.f32 %v1630, %v1631
    %v1633 = vrot.slane %v1632, 1
    %v1634 = vadd.f32 %v1632, %v1633
    %v1635 = vsel %vm731, %v1624, 0.0
    %v1636 = vsel %vm733, %v1626, 0.0
    %v1637 = vadd.f32 %v1635, %v1636
    %v1638 = vrot.slane %v1637, 4
    %v1639 = vadd.f32 %v1637, %v1638
    %v1640 = vrot.slane %v1639, 2
    %v1641 = vadd.f32 %v1639, %v1640
    %v1642 = vrot.slane %v1641, 1
    %v1643 = vadd.f32 %v1641, %v1642
    %v1644 = vadd.f32 %v1193, %v1634
    %v1645 = vadd.f32 %v1194, %v1643
    %v1646 = vmul.f32 %v1623, %v1623
    %v1647 = vmul.f32 %v1624, %v1624
    %v1648 = vmul.f32 %v1625, %v1625
    %v1649 = vmul.f32 %v1626, %v1626
    %v1650 = vsel %vm178, %v1648, 0.0
    %v1651 = vadd.f32 %v1646, %v1650
    %v1652 = vrot.slane %v1651, 4
    %v1653 = vadd.f32 %v1651, %v1652
    %v1654 = vrot.slane %v1653, 2
    %v1655 = vadd.f32 %v1653, %v1654
    %v1656 = vrot.slane %v1655, 1
    %v1657 = vadd.f32 %v1655, %v1656
    %v1658 = vsel %vm731, %v1647, 0.0
    %v1659 = vsel %vm733, %v1649, 0.0
    %v1660 = vadd.f32 %v1658, %v1659
    %v1661 = vrot.slane %v1660, 4
    %v1662 = vadd.f32 %v1660, %v1661
    %v1663 = vrot.slane %v1662, 2
    %v1664 = vadd.f32 %v1662, %v1663
    %v1665 = vrot.slane %v1664, 1
    %v1666 = vadd.f32 %v1664, %v1665
    %v1667 = vadd.f32 %v1216, %v1657
    %v1668 = vadd.f32 %v1217, %v1666
    %1669 = vmatprep.subr.mxu0 %v184
    %1670 = vmatpush1.msra.mxu0 %v181
    %1671 = vmatprep.subr.mxu0 %v188
    %1672 = vmatpush1.msra.mxu0 %v186
    %1673 = vmatprep.subr.mxu0 %v192
    %1674 = vmatpush1.msra.mxu0 %v190
    %1675 = vmatprep.subr.mxu0 %v208
    %1676 = vmatpush1.msra.mxu0 %v206
    %1677 = vmatprep.subr.mxu0 0.0
    %1678 = vmatpush1.msra.mxu0 0.0
    %1679 = vmatprep.subr.mxu0 0.0
    %1680 = vmatpush1.msra.mxu0 0.0
    %1681 = vmatprep.subr.mxu0 0.0
    %1682 = vmatpush1.msra.mxu0 0.0
    %1683 = vmatprep.subr.mxu0 0.0
    %1684 = vmatpush1.msra.mxu0 0.0
    %1685 = vmatprep.subr.mxu0 0.0
    %1686 = vmatpush1.msra.mxu0 0.0
    %1687 = vmatprep.subr.mxu0 0.0
    %1688 = vmatpush1.msra.mxu0 0.0
    %1689 = vmatprep.subr.mxu0 0.0
    %1690 = vmatpush1.msra.mxu0 0.0
    %1691 = vmatprep.subr.mxu0 0.0
    %1692 = vmatpush1.msra.mxu0 0.0
    %1693 = vmatprep.subr.mxu0 0.0
    %1694 = vmatpush1.msra.mxu0 0.0
    %1695 = vmatprep.subr.mxu0 0.0
    %1696 = vmatpush1.msra.mxu0 0.0
    %1697 = vmatprep.subr.mxu0 0.0
    %1698 = vmatpush1.msra.mxu0 0.0
    %1699 = vmatprep.subr.mxu0 0.0
    %1700 = vmatpush1.msra.mxu0 0.0
    %1701 = vmatprep.subr.mxu0 0.0
    %1702 = vmatpush1.msra.mxu0 0.0
    %1703 = vmatprep.subr.mxu0 0.0
    %1704 = vmatpush1.msra.mxu0 0.0
    %1705 = vmatprep.subr.mxu0 0.0
    %1706 = vmatpush1.msra.mxu0 0.0
    %1707 = vmatprep.subr.mxu0 0.0
    %1708 = vmatpush1.msra.mxu0 0.0
    %1709 = vmatprep.subr.mxu0 0.0
    %1710 = vmatpush1.msra.mxu0 0.0
    %1711 = vmatprep.subr.mxu0 0.0
    %1712 = vmatpush1.msra.mxu0 0.0
    %1713 = vmatprep.subr.mxu0 0.0
    %1714 = vmatpush1.msra.mxu0 0.0
    %1715 = vmatprep.subr.mxu0 0.0
    %1716 = vmatpush1.msra.mxu0 0.0
    %1717 = vmatprep.subr.mxu0 0.0
    %1718 = vmatpush1.msra.mxu0 0.0
    %1719 = vmatprep.subr.mxu0 0.0
    %1720 = vmatpush1.msra.mxu0 0.0
    %1721 = vmatprep.subr.mxu0 0.0
    %1722 = vmatpush1.msra.mxu0 0.0
    %1723 = vmatprep.subr.mxu0 0.0
    %1724 = vmatpush1.msra.mxu0 0.0
    %1725 = vmatprep.subr.mxu0 0.0
    %1726 = vmatpush1.msra.mxu0 0.0
    %1727 = vmatprep.subr.mxu0 0.0
    %1728 = vmatpush1.msra.mxu0 0.0
    %1729 = vmatprep.subr.mxu0 0.0
    %1730 = vmatpush1.msra.mxu0 0.0
    %1731 = vmatprep.subr.mxu0 0.0
    %1732 = vmatpush1.msra.mxu0 0.0
    %1733 = vmatprep.mubr.f32.mxu0 0.0
    %1734 = vmatmul.mubr.f32.gmra.mrb[0].mxu0 %v619
    %v1735 = vpop.f32.mrb[0].mxu0
    %v1736 = vadd.f32 0.0, %v1735
    %v1737 = vpop.f32.mrb[0].mxu0
    %v1738 = vadd.f32 0.0, %v1737
    %1739 = vmatprep.mubr.f32.mxu0 0.0
    %1740 = vmatmul.mubr.f32.gmra.mrb[0].mxu0 %v622
    %v1741 = vpop.f32.mrb[0].mxu0
    %v1742 = vadd.f32 0.0, %v1741
    %v1743 = vpop.f32.mrb[0].mxu0
    %v1744 = vadd.f32 0.0, %v1743
    %1745 = vdwg.mxu0
    %1746 = vmatprep.subr.mxu0 %v153
    %1747 = vmatpush1.msra.mxu0 %v152
    %1748 = vmatprep.subr.mxu0 %v155
    %1749 = vmatpush1.msra.mxu0 %v154
    %1750 = vmatprep.subr.mxu0 %v157
    %1751 = vmatpush1.msra.mxu0 %v156
    %1752 = vmatprep.subr.mxu0 %v297
    %1753 = vmatpush1.msra.mxu0 %v294
    %1754 = vmatprep.subr.mxu0 0.0
    %1755 = vmatpush1.msra.mxu0 0.0
    %1756 = vmatprep.subr.mxu0 0.0
    %1757 = vmatpush1.msra.mxu0 0.0
    %1758 = vmatprep.subr.mxu0 0.0
    %1759 = vmatpush1.msra.mxu0 0.0
    %1760 = vmatprep.subr.mxu0 0.0
    %1761 = vmatpush1.msra.mxu0 0.0
    %1762 = vmatprep.subr.mxu0 0.0
    %1763 = vmatpush1.msra.mxu0 0.0
    %1764 = vmatprep.subr.mxu0 0.0
    %1765 = vmatpush1.msra.mxu0 0.0
    %1766 = vmatprep.subr.mxu0 0.0
    %1767 = vmatpush1.msra.mxu0 0.0
    %1768 = vmatprep.subr.mxu0 0.0
    %1769 = vmatpush1.msra.mxu0 0.0
    %1770 = vmatprep.subr.mxu0 0.0
    %1771 = vmatpush1.msra.mxu0 0.0
    %1772 = vmatprep.subr.mxu0 0.0
    %1773 = vmatpush1.msra.mxu0 0.0
    %1774 = vmatprep.subr.mxu0 0.0
    %1775 = vmatpush1.msra.mxu0 0.0
    %1776 = vmatprep.subr.mxu0 0.0
    %1777 = vmatpush1.msra.mxu0 0.0
    %1778 = vmatprep.subr.mxu0 0.0
    %1779 = vmatpush1.msra.mxu0 0.0
    %1780 = vmatprep.subr.mxu0 0.0
    %1781 = vmatpush1.msra.mxu0 0.0
    %1782 = vmatprep.subr.mxu0 0.0
    %1783 = vmatpush1.msra.mxu0 0.0
    %1784 = vmatprep.subr.mxu0 0.0
    %1785 = vmatpush1.msra.mxu0 0.0
    %1786 = vmatprep.subr.mxu0 0.0
    %1787 = vmatpush1.msra.mxu0 0.0
    %1788 = vmatprep.subr.mxu0 0.0
    %1789 = vmatpush1.msra.mxu0 0.0
    %1790 = vmatprep.subr.mxu0 0.0
    %1791 = vmatpush1.msra.mxu0 0.0
    %1792 = vmatprep.subr.mxu0 0.0
    %1793 = vmatpush1.msra.mxu0 0.0
    %1794 = vmatprep.subr.mxu0 0.0
    %1795 = vmatpush1.msra.mxu0 0.0
    %1796 = vmatprep.subr.mxu0 0.0
    %1797 = vmatpush1.msra.mxu0 0.0
    %1798 = vmatprep.subr.mxu0 0.0
    %1799 = vmatpush1.msra.mxu0 0.0
    %1800 = vmatprep.subr.mxu0 0.0
    %1801 = vmatpush1.msra.mxu0 0.0
    %1802 = vmatprep.subr.mxu0 0.0
    %1803 = vmatpush1.msra.mxu0 0.0
    %1804 = vmatprep.subr.mxu0 0.0
    %1805 = vmatpush1.msra.mxu0 0.0
    %1806 = vmatprep.subr.mxu0 0.0
    %1807 = vmatpush1.msra.mxu0 0.0
    %1808 = vmatprep.subr.mxu0 0.0
    %1809 = vmatpush1.msra.mxu0 0.0
    %1810 = vmatprep.mubr.f32.mxu0 0.0
    %1811 = vmatmul.mubr.f32.gmra.mrb[0].mxu0 %v518
    %v1812 = vpop.f32.mrb[0].mxu0
    %v1813 = vadd.f32 %v1736, %v1812
    %v1814 = vpop.f32.mrb[0].mxu0
    %v1815 = vadd.f32 %v1738, %v1814
    %1816 = vmatprep.mubr.f32.mxu0 0.0
    %1817 = vmatmul.mubr.f32.gmra.mrb[0].mxu0 %v521
    %v1818 = vpop.f32.mrb[0].mxu0
    %v1819 = vadd.f32 %v1742, %v1818
    %v1820 = vpop.f32.mrb[0].mxu0
    %v1821 = vadd.f32 %v1744, %v1820
    %1822 = vdwg.mxu0
    %1823 = vmatprep.subr.mxu0 %v379
    %1824 = vmatpush1.msra.mxu0 %v378
    %1825 = vmatprep.subr.mxu0 %v381
    %1826 = vmatpush1.msra.mxu0 %v380
    %1827 = vmatprep.subr.mxu0 %v383
    %1828 = vmatpush1.msra.mxu0 %v382
    %1829 = vmatprep.subr.mxu0 %v396
    %1830 = vmatpush1.msra.mxu0 %v393
    %1831 = vmatprep.subr.mxu0 0.0
    %1832 = vmatpush1.msra.mxu0 0.0
    %1833 = vmatprep.subr.mxu0 0.0
    %1834 = vmatpush1.msra.mxu0 0.0
    %1835 = vmatprep.subr.mxu0 0.0
    %1836 = vmatpush1.msra.mxu0 0.0
    %1837 = vmatprep.subr.mxu0 0.0
    %1838 = vmatpush1.msra.mxu0 0.0
    %1839 = vmatprep.subr.mxu0 0.0
    %1840 = vmatpush1.msra.mxu0 0.0
    %1841 = vmatprep.subr.mxu0 0.0
    %1842 = vmatpush1.msra.mxu0 0.0
    %1843 = vmatprep.subr.mxu0 0.0
    %1844 = vmatpush1.msra.mxu0 0.0
    %1845 = vmatprep.subr.mxu0 0.0
    %1846 = vmatpush1.msra.mxu0 0.0
    %1847 = vmatprep.subr.mxu0 0.0
    %1848 = vmatpush1.msra.mxu0 0.0
    %1849 = vmatprep.subr.mxu0 0.0
    %1850 = vmatpush1.msra.mxu0 0.0
    %1851 = vmatprep.subr.mxu0 0.0
    %1852 = vmatpush1.msra.mxu0 0.0
    %1853 = vmatprep.subr.mxu0 0.0
    %1854 = vmatpush1.msra.mxu0 0.0
    %1855 = vmatprep.subr.mxu0 0.0
    %1856 = vmatpush1.msra.mxu0 0.0
    %1857 = vmatprep.subr.mxu0 0.0
    %1858 = vmatpush1.msra.mxu0 0.0
    %1859 = vmatprep.subr.mxu0 0.0
    %1860 = vmatpush1.msra.mxu0 0.0
    %1861 = vmatprep.subr.mxu0 0.0
    %1862 = vmatpush1.msra.mxu0 0.0
    %1863 = vmatprep.subr.mxu0 0.0
    %1864 = vmatpush1.msra.mxu0 0.0
    %1865 = vmatprep.subr.mxu0 0.0
    %1866 = vmatpush1.msra.mxu0 0.0
    %1867 = vmatprep.subr.mxu0 0.0
    %1868 = vmatpush1.msra.mxu0 0.0
    %1869 = vmatprep.subr.mxu0 0.0
    %1870 = vmatpush1.msra.mxu0 0.0
    %1871 = vmatprep.subr.mxu0 0.0
    %1872 = vmatpush1.msra.mxu0 0.0
    %1873 = vmatprep.subr.mxu0 0.0
    %1874 = vmatpush1.msra.mxu0 0.0
    %1875 = vmatprep.subr.mxu0 0.0
    %1876 = vmatpush1.msra.mxu0 0.0
    %1877 = vmatprep.subr.mxu0 0.0
    %1878 = vmatpush1.msra.mxu0 0.0
    %1879 = vmatprep.subr.mxu0 0.0
    %1880 = vmatpush1.msra.mxu0 0.0
    %1881 = vmatprep.subr.mxu0 0.0
    %1882 = vmatpush1.msra.mxu0 0.0
    %1883 = vmatprep.subr.mxu0 0.0
    %1884 = vmatpush1.msra.mxu0 0.0
    %1885 = vmatprep.subr.mxu0 0.0
    %1886 = vmatpush1.msra.mxu0 0.0
    %1887 = vmatprep.mubr.f32.mxu0 0.0
    %1888 = vmatmul.mubr.f32.gmra.mrb[0].mxu0 %v1086
    %v1889 = vpop.f32.mrb[0].mxu0
    %v1890 = vadd.f32 0.0, %v1889
    %v1891 = vpop.f32.mrb[0].mxu0
    %v1892 = vadd.f32 0.0, %v1891
    %1893 = vmatprep.mubr.f32.mxu0 0.0
    %1894 = vmatmul.mubr.f32.gmra.mrb[0].mxu0 %v1089
    %v1895 = vpop.f32.mrb[0].mxu0
    %v1896 = vadd.f32 0.0, %v1895
    %v1897 = vpop.f32.mrb[0].mxu0
    %v1898 = vadd.f32 0.0, %v1897
    %1899 = vdwg.mxu0
    %v1900 = vadd.f32 %v1813, %v1890
    %v1901 = vadd.f32 %v1815, %v1892
    %v1902 = vadd.f32 %v1819, %v1896
    %v1903 = vadd.f32 %v1821, %v1898
    %1904 = vmatprep.subr.mxu0 %v502
    %1905 = vmatpush1.msra.mxu0 %v499
    %1906 = vmatprep.subr.mxu0 %v506
    %1907 = vmatpush1.msra.mxu0 %v504
    %1908 = vmatprep.subr.mxu0 %v510
    %1909 = vmatpush1.msra.mxu0 %v508
    %1910 = vmatprep.subr.mxu0 %v525
    %1911 = vmatpush1.msra.mxu0 %v523
    %1912 = vmatprep.subr.mxu0 0.0
    %1913 = vmatpush1.msra.mxu0 0.0
    %1914 = vmatprep.subr.mxu0 0.0
    %1915 = vmatpush1.msra.mxu0 0.0
    %1916 = vmatprep.subr.mxu0 0.0
    %1917 = vmatpush1.msra.mxu0 0.0
    %1918 = vmatprep.subr.mxu0 0.0
    %1919 = vmatpush1.msra.mxu0 0.0
    %1920 = vmatprep.subr.mxu0 0.0
    %1921 = vmatpush1.msra.mxu0 0.0
    %1922 = vmatprep.subr.mxu0 0.0
    %1923 = vmatpush1.msra.mxu0 0.0
    %1924 = vmatprep.subr.mxu0 0.0
    %1925 = vmatpush1.msra.mxu0 0.0
    %1926 = vmatprep.subr.mxu0 0.0
    %1927 = vmatpush1.msra.mxu0 0.0
    %1928 = vmatprep.subr.mxu0 0.0
    %1929 = vmatpush1.msra.mxu0 0.0
    %1930 = vmatprep.subr.mxu0 0.0
    %1931 = vmatpush1.msra.mxu0 0.0
    %1932 = vmatprep.subr.mxu0 0.0
    %1933 = vmatpush1.msra.mxu0 0.0
    %1934 = vmatprep.subr.mxu0 0.0
    %1935 = vmatpush1.msra.mxu0 0.0
    %1936 = vmatprep.subr.mxu0 0.0
    %1937 = vmatpush1.msra.mxu0 0.0
    %1938 = vmatprep.subr.mxu0 0.0
    %1939 = vmatpush1.msra.mxu0 0.0
    %1940 = vmatprep.subr.mxu0 0.0
    %1941 = vmatpush1.msra.mxu0 0.0
    %1942 = vmatprep.subr.mxu0 0.0
    %1943 = vmatpush1.msra.mxu0 0.0
    %1944 = vmatprep.subr.mxu0 0.0
    %1945 = vmatpush1.msra.mxu0 0.0
    %1946 = vmatprep.subr.mxu0 0.0
    %1947 = vmatpush1.msra.mxu0 0.0
    %1948 = vmatprep.subr.mxu0 0.0
    %1949 = vmatpush1.msra.mxu0 0.0
    %1950 = vmatprep.subr.mxu0 0.0
    %1951 = vmatpush1.msra.mxu0 0.0
    %1952 = vmatprep.subr.mxu0 0.0
    %1953 = vmatpush1.msra.mxu0 0.0
    %1954 = vmatprep.subr.mxu0 0.0
    %1955 = vmatpush1.msra.mxu0 0.0
    %1956 = vmatprep.subr.mxu0 0.0
    %1957 = vmatpush1.msra.mxu0 0.0
    %1958 = vmatprep.subr.mxu0 0.0
    %1959 = vmatpush1.msra.mxu0 0.0
    %1960 = vmatprep.subr.mxu0 0.0
    %1961 = vmatpush1.msra.mxu0 0.0
    %1962 = vmatprep.subr.mxu0 0.0
    %1963 = vmatpush1.msra.mxu0 0.0
    %1964 = vmatprep.subr.mxu0 0.0
    %1965 = vmatpush1.msra.mxu0 0.0
    %1966 = vmatprep.subr.mxu0 0.0
    %1967 = vmatpush1.msra.mxu0 0.0
    %1968 = vmatprep.mubr.f32.mxu0 0.0
    %1969 = vmatmul.mubr.f32.gmra.mrb[0].mxu0 %v1537
    %v1970 = vpop.f32.mrb[0].mxu0
    %v1971 = vadd.f32 0.0, %v1970
    %v1972 = vpop.f32.mrb[0].mxu0
    %v1973 = vadd.f32 0.0, %v1972
    %1974 = vmatprep.mubr.f32.mxu0 0.0
    %1975 = vmatmul.mubr.f32.gmra.mrb[0].mxu0 %v1540
    %v1976 = vpop.f32.mrb[0].mxu0
    %v1977 = vadd.f32 0.0, %v1976
    %v1978 = vpop.f32.mrb[0].mxu0
    %v1979 = vadd.f32 0.0, %v1978
    %1980 = vdwg.mxu0
    %v1981 = vadd.f32 %v1900, %v1971
    %v1982 = vadd.f32 %v1901, %v1973
    %v1983 = vadd.f32 %v1902, %v1977
    %v1984 = vadd.f32 %v1903, %v1979
    %v1985 = vld [vmem:[%s0 + $0x2c] sm:$0xff]
    %v1986 = vld [vmem:[%s0 + $0x34] sm:$0xf]
    %v1988 = vsel %vm199, %v1985, 0
    %v1991 = vsel %vm199, %v1986, 0
    %1993 = vmatprep.subr.mxu0 %v611
    %1994 = vmatpush1.msra.mxu0 %v610
    %1995 = vmatprep.subr.mxu0 %v613
    %1996 = vmatpush1.msra.mxu0 %v612
    %1997 = vmatprep.subr.mxu0 %v615
    %1998 = vmatpush1.msra.mxu0 %v614
    %1999 = vmatprep.subr.mxu0 %v628
    %2000 = vmatpush1.msra.mxu0 %v625
    %2001 = vmatprep.subr.mxu0 0.0
    %2002 = vmatpush1.msra.mxu0 0.0
    %2003 = vmatprep.subr.mxu0 0.0
    %2004 = vmatpush1.msra.mxu0 0.0
    %2005 = vmatprep.subr.mxu0 0.0
    %2006 = vmatpush1.msra.mxu0 0.0
    %2007 = vmatprep.subr.mxu0 0.0
    %2008 = vmatpush1.msra.mxu0 0.0
    %2009 = vmatprep.subr.mxu0 0.0
    %2010 = vmatpush1.msra.mxu0 0.0
    %2011 = vmatprep.subr.mxu0 0.0
    %2012 = vmatpush1.msra.mxu0 0.0
    %2013 = vmatprep.subr.mxu0 0.0
    %2014 = vmatpush1.msra.mxu0 0.0
    %2015 = vmatprep.subr.mxu0 0.0
    %2016 = vmatpush1.msra.mxu0 0.0
    %2017 = vmatprep.subr.mxu0 0.0
    %2018 = vmatpush1.msra.mxu0 0.0
    %2019 = vmatprep.subr.mxu0 0.0
    %2020 = vmatpush1.msra.mxu0 0.0
    %2021 = vmatprep.subr.mxu0 0.0
    %2022 = vmatpush1.msra.mxu0 0.0
    %2023 = vmatprep.subr.mxu0 0.0
    %2024 = vmatpush1.msra.mxu0 0.0
    %2025 = vmatprep.subr.mxu0 0.0
    %2026 = vmatpush1.msra.mxu0 0.0
    %2027 = vmatprep.subr.mxu0 0.0
    %2028 = vmatpush1.msra.mxu0 0.0
    %2029 = vmatprep.subr.mxu0 0.0
    %2030 = vmatpush1.msra.mxu0 0.0
    %2031 = vmatprep.subr.mxu0 0.0
    %2032 = vmatpush1.msra.mxu0 0.0
    %2033 = vmatprep.subr.mxu0 0.0
    %2034 = vmatpush1.msra.mxu0 0.0
    %2035 = vmatprep.subr.mxu0 0.0
    %2036 = vmatpush1.msra.mxu0 0.0
    %2037 = vmatprep.subr.mxu0 0.0
    %2038 = vmatpush1.msra.mxu0 0.0
    %2039 = vmatprep.subr.mxu0 0.0
    %2040 = vmatpush1.msra.mxu0 0.0
    %2041 = vmatprep.subr.mxu0 0.0
    %2042 = vmatpush1.msra.mxu0 0.0
    %2043 = vmatprep.subr.mxu0 0.0
    %2044 = vmatpush1.msra.mxu0 0.0
    %2045 = vmatprep.subr.mxu0 0.0
    %2046 = vmatpush1.msra.mxu0 0.0
    %2047 = vmatprep.subr.mxu0 0.0
    %2048 = vmatpush1.msra.mxu0 0.0
    %2049 = vmatprep.subr.mxu0 0.0
    %2050 = vmatpush1.msra.mxu0 0.0
    %2051 = vmatprep.subr.mxu0 0.0
    %2052 = vmatpush1.msra.mxu0 0.0
    %2053 = vmatprep.subr.mxu0 0.0
    %2054 = vmatpush1.msra.mxu0 0.0
    %2055 = vmatprep.subr.mxu0 0.0
    %2056 = vmatpush1.msra.mxu0 0.0
    %2057 = vmatprep.mubr.f32.mxu0 0.0
    %2058 = vmatmul.mubr.f32.gmra.mrb[0].mxu0 %v1988
    %v2059 = vpop.f32.mrb[0].mxu0
    %v2060 = vadd.f32 0.0, %v2059
    %v2061 = vpop.f32.mrb[0].mxu0
    %v2062 = vadd.f32 0.0, %v2061
    %2063 = vmatprep.mubr.f32.mxu0 0.0
    %2064 = vmatmul.mubr.f32.gmra.mrb[0].mxu0 %v1991
    %v2065 = vpop.f32.mrb[0].mxu0
    %v2066 = vadd.f32 0.0, %v2065
    %v2067 = vpop.f32.mrb[0].mxu0
    %v2068 = vadd.f32 0.0, %v2067
    %2069 = vdwg.mxu0
    %v2070 = vadd.f32 %v1981, %v2060
    %v2071 = vadd.f32 %v1982, %v2062
    %v2072 = vadd.f32 %v1983, %v2066
    %v2073 = vadd.f32 %v1984, %v2068
    %v2074 = vadd.f32 %v2070, %v714
    %v2075 = vadd.f32 %v2071, %v718
    %v2076 = vadd.f32 %v2072, %v714
    %v2077 = vadd.f32 %v2073, %v718
    %v2078 = vsel %vm178, %v2076, 0.0
    %v2079 = vadd.f32 %v2074, %v2078
    %v2080 = vrot.slane %v2079, 4
    %v2081 = vadd.f32 %v2079, %v2080
    %v2082 = vrot.slane %v2081, 2
    %v2083 = vadd.f32 %v2081, %v2082
    %v2084 = vrot.slane %v2083, 1
    %v2085 = vadd.f32 %v2083, %v2084
    %v2086 = vsel %vm731, %v2075, 0.0
    %v2087 = vsel %vm733, %v2077, 0.0
    %v2088 = vadd.f32 %v2086, %v2087
    %v2089 = vrot.slane %v2088, 4
    %v2090 = vadd.f32 %v2088, %v2089
    %v2091 = vrot.slane %v2090, 2
    %v2092 = vadd.f32 %v2090, %v2091
    %v2093 = vrot.slane %v2092, 1
    %v2094 = vadd.f32 %v2092, %v2093
    %v2095 = vadd.f32 %v1644, %v2085
    %v2096 = vadd.f32 %v1645, %v2094
    %v2097 = vmul.f32 %v2074, %v2074
    %v2098 = vmul.f32 %v2075, %v2075
    %v2099 = vmul.f32 %v2076, %v2076
    %v2100 = vmul.f32 %v2077, %v2077
    %v2101 = vsel %vm178, %v2099, 0.0
    %v2102 = vadd.f32 %v2097, %v2101
    %v2103 = vrot.slane %v2102, 4
    %v2104 = vadd.f32 %v2102, %v2103
    %v2105 = vrot.slane %v2104, 2
    %v2106 = vadd.f32 %v2104, %v2105
    %v2107 = vrot.slane %v2106, 1
    %v2108 = vadd.f32 %v2106, %v2107
    %v2109 = vsel %vm731, %v2098, 0.0
    %v2110 = vsel %vm733, %v2100, 0.0
    %v2111 = vadd.f32 %v2109, %v2110
    %v2112 = vrot.slane %v2111, 4
    %v2113 = vadd.f32 %v2111, %v2112
    %v2114 = vrot.slane %v2113, 2
    %v2115 = vadd.f32 %v2113, %v2114
    %v2116 = vrot.slane %v2115, 1
    %v2117 = vadd.f32 %v2115, %v2116
    %v2118 = vadd.f32 %v1667, %v2108
    %v2119 = vadd.f32 %v1668, %v2117
    %v2120 = vld [vmem:[%s5] sm:$0xff]
    %v2121 = vld [vmem:[%s5 + $0x8] sm:$0xff]
    %v2122 = vld [vmem:[%s5 + $0x10] sm:$0xff]
    %v2123 = vld [vmem:[%s5 + $0x18] sm:$0xff]
    %v2124 = vld [vmem:[%s5 + $0x20] sm:$0xff]
    %v2125 = vld [vmem:[%s5 + $0x28] sm:$0xff]
    %v2126 = vld [vmem:[%s5 + $0x30] sm:$0xff]
    %v2127 = vld [vmem:[%s5 + $0x38] sm:$0xff]
    %v2128 = vld [vmem:[%s5 + $0x40] sm:$0xff]
    %v2129 = vld [vmem:[%s5 + $0x48] sm:$0xff]
    %v2130 = vld [vmem:[%s5 + $0x50] sm:$0xff]
    %v2131 = vld [vmem:[%s5 + $0x58] sm:$0xff]
    %v2132 = vld [vmem:[%s5 + $0x60] sm:$0xff]
    %v2133 = vld [vmem:[%s5 + $0x68] sm:$0xff]
    %v2134 = vld [vmem:[%s5 + $0x70] sm:$0xff]
    %v2135 = vld [vmem:[%s5 + $0x78] sm:$0xff]
    %v2136 = vld [vmem:[%s5 + $0x80] sm:$0xff]
    %v2137 = vld [vmem:[%s5 + $0x88] sm:$0xff]
    %v2139 = vsel %vm731, %v2096, 0
    %2141 = vmatprep.subr.mxu0 0.0
    %2142 = vmatpush1.msra.mxu0 %v2120
    %2143 = vmatprep.subr.mxu0 0.0
    %2144 = vmatpush1.msra.mxu0 %v2121
    %2145 = vmatprep.subr.mxu0 0.0
    %2146 = vmatpush1.msra.mxu0 %v2122
    %2147 = vmatprep.subr.mxu0 0.0
    %2148 = vmatpush1.msra.mxu0 %v2123
    %2149 = vmatprep.subr.mxu0 0.0
    %2150 = vmatpush1.msra.mxu0 %v2124
    %2151 = vmatprep.subr.mxu0 0.0
    %2152 = vmatpush1.msra.mxu0 %v2125
    %2153 = vmatprep.subr.mxu0 0.0
    %2154 = vmatpush1.msra.mxu0 %v2126
    %2155 = vmatprep.subr.mxu0 0.0
    %2156 = vmatpush1.msra.mxu0 %v2127
    %2157 = vmatprep.subr.mxu0 0.0
    %2158 = vmatpush1.msra.mxu0 %v2128
    %2159 = vmatprep.subr.mxu0 0.0
    %2160 = vmatpush1.msra.mxu0 %v2129
    %2161 = vmatprep.subr.mxu0 0.0
    %2162 = vmatpush1.msra.mxu0 %v2130
    %2163 = vmatprep.subr.mxu0 0.0
    %2164 = vmatpush1.msra.mxu0 %v2131
    %2165 = vmatprep.subr.mxu0 0.0
    %2166 = vmatpush1.msra.mxu0 %v2132
    %2167 = vmatprep.subr.mxu0 0.0
    %2168 = vmatpush1.msra.mxu0 %v2133
    %2169 = vmatprep.subr.mxu0 0.0
    %2170 = vmatpush1.msra.mxu0 %v2134
    %2171 = vmatprep.subr.mxu0 0.0
    %2172 = vmatpush1.msra.mxu0 %v2135
    %2173 = vmatprep.subr.mxu0 0.0
    %2174 = vmatpush1.msra.mxu0 %v2136
    %2175 = vmatprep.subr.mxu0 0.0
    %2176 = vmatpush1.msra.mxu0 %v2137
    %2177 = vmatprep.subr.mxu0 0.0
    %2178 = vmatpush1.msra.mxu0 0.0
    %2179 = vmatprep.subr.mxu0 0.0
    %2180 = vmatpush1.msra.mxu0 0.0
    %2181 = vmatprep.subr.mxu0 0.0
    %2182 = vmatpush1.msra.mxu0 0.0
    %2183 = vmatprep.subr.mxu0 0.0
    %2184 = vmatpush1.msra.mxu0 0.0
    %2185 = vmatprep.subr.mxu0 0.0
    %2186 = vmatpush1.msra.mxu0 0.0
    %2187 = vmatprep.subr.mxu0 0.0
    %2188 = vmatpush1.msra.mxu0 0.0
    %2189 = vmatprep.subr.mxu0 0.0
    %2190 = vmatpush1.msra.mxu0 0.0
    %2191 = vmatprep.subr.mxu0 0.0
    %2192 = vmatpush1.msra.mxu0 0.0
    %2193 = vmatprep.subr.mxu0 0.0
    %2194 = vmatpush1.msra.mxu0 0.0
    %2195 = vmatprep.subr.mxu0 0.0
    %2196 = vmatpush1.msra.mxu0 0.0
    %2197 = vmatprep.subr.mxu0 0.0
    %2198 = vmatpush1.msra.mxu0 0.0
    %2199 = vmatprep.subr.mxu0 0.0
    %2200 = vmatpush1.msra.mxu0 0.0
    %2201 = vmatprep.subr.mxu0 0.0
    %2202 = vmatpush1.msra.mxu0 0.0
    %2203 = vmatprep.subr.mxu0 0.0
    %2204 = vmatpush1.msra.mxu0 0.0
    %2205 = vmatprep.mubr.f32.mxu0 %v2139
    %2206 = vmatmul.mubr.f32.gmra.mrb[0].mxu0 %v2095
    %v2207 = vpop.f32.mrb[0].mxu0
    %v2208 = vadd.f32 0.0, %v2207
    %v2209 = vpop.f32.mrb[0].mxu0
    %2210 = vdwg.mxu0
    %v2211 = vrcp.pop 1152.0
    %v2212 = vmul.f32 %v2208, %v2211
    %v2214 = vsel %vm731, %v2119, 0
    %2216 = vmatprep.subr.mxu0 0.0
    %2217 = vmatpush1.msra.mxu0 %v2120
    %2218 = vmatprep.subr.mxu0 0.0
    %2219 = vmatpush1.msra.mxu0 %v2121
    %2220 = vmatprep.subr.mxu0 0.0
    %2221 = vmatpush1.msra.mxu0 %v2122
    %2222 = vmatprep.subr.mxu0 0.0
    %2223 = vmatpush1.msra.mxu0 %v2123
    %2224 = vmatprep.subr.mxu0 0.0
    %2225 = vmatpush1.msra.mxu0 %v2124
    %2226 = vmatprep.subr.mxu0 0.0
    %2227 = vmatpush1.msra.mxu0 %v2125
    %2228 = vmatprep.subr.mxu0 0.0
    %2229 = vmatpush1.msra.mxu0 %v2126
    %2230 = vmatprep.subr.mxu0 0.0
    %2231 = vmatpush1.msra.mxu0 %v2127
    %2232 = vmatprep.subr.mxu0 0.0
    %2233 = vmatpush1.msra.mxu0 %v2128
    %2234 = vmatprep.subr.mxu0 0.0
    %2235 = vmatpush1.msra.mxu0 %v2129
    %2236 = vmatprep.subr.mxu0 0.0
    %2237 = vmatpush1.msra.mxu0 %v2130
    %2238 = vmatprep.subr.mxu0 0.0
    %2239 = vmatpush1.msra.mxu0 %v2131
    %2240 = vmatprep.subr.mxu0 0.0
    %2241 = vmatpush1.msra.mxu0 %v2132
    %2242 = vmatprep.subr.mxu0 0.0
    %2243 = vmatpush1.msra.mxu0 %v2133
    %2244 = vmatprep.subr.mxu0 0.0
    %2245 = vmatpush1.msra.mxu0 %v2134
    %2246 = vmatprep.subr.mxu0 0.0
    %2247 = vmatpush1.msra.mxu0 %v2135
    %2248 = vmatprep.subr.mxu0 0.0
    %2249 = vmatpush1.msra.mxu0 %v2136
    %2250 = vmatprep.subr.mxu0 0.0
    %2251 = vmatpush1.msra.mxu0 %v2137
    %2252 = vmatprep.subr.mxu0 0.0
    %2253 = vmatpush1.msra.mxu0 0.0
    %2254 = vmatprep.subr.mxu0 0.0
    %2255 = vmatpush1.msra.mxu0 0.0
    %2256 = vmatprep.subr.mxu0 0.0
    %2257 = vmatpush1.msra.mxu0 0.0
    %2258 = vmatprep.subr.mxu0 0.0
    %2259 = vmatpush1.msra.mxu0 0.0
    %2260 = vmatprep.subr.mxu0 0.0
    %2261 = vmatpush1.msra.mxu0 0.0
    %2262 = vmatprep.subr.mxu0 0.0
    %2263 = vmatpush1.msra.mxu0 0.0
    %2264 = vmatprep.subr.mxu0 0.0
    %2265 = vmatpush1.msra.mxu0 0.0
    %2266 = vmatprep.subr.mxu0 0.0
    %2267 = vmatpush1.msra.mxu0 0.0
    %2268 = vmatprep.subr.mxu0 0.0
    %2269 = vmatpush1.msra.mxu0 0.0
    %2270 = vmatprep.subr.mxu0 0.0
    %2271 = vmatpush1.msra.mxu0 0.0
    %2272 = vmatprep.subr.mxu0 0.0
    %2273 = vmatpush1.msra.mxu0 0.0
    %2274 = vmatprep.subr.mxu0 0.0
    %2275 = vmatpush1.msra.mxu0 0.0
    %2276 = vmatprep.subr.mxu0 0.0
    %2277 = vmatpush1.msra.mxu0 0.0
    %2278 = vmatprep.subr.mxu0 0.0
    %2279 = vmatpush1.msra.mxu0 0.0
    %2280 = vmatprep.mubr.f32.mxu0 %v2214
    %2281 = vmatmul.mubr.f32.gmra.mrb[0].mxu0 %v2118
    %v2282 = vpop.f32.mrb[0].mxu0
    %v2283 = vadd.f32 0.0, %v2282
    %v2284 = vpop.f32.mrb[0].mxu0
    %2285 = vdwg.mxu0
    %v2286 = vmul.f32 %v2283, %v2211
    %v2287 = vmul.f32 %v2212, %v2212
    %v2288 = vsub.f32 %v2286, %v2287
    %v2289 = vld [vmem:[%s3] sm:$0x1]
    %v2290 = vadd.f32 %v2288, 1e-05
    %v2291 = vrsqrt.pop %v2290
    %v2292 = vmul.f32 %v2289, %v2291
    %v2293 = vld [vmem:[%s4] sm:$0x1]
    %v2294 = vmul.f32 %v2212, %v2292
    %v2295 = vsub.f32 %v2293, %v2294
    %v2297 = vsel %vm68, %v2292, 0
    %2299 = vmatprep.subr.mxu0 %v77
    %2300 = vmatpush1.msra.mxu0 %v74
    %2301 = vmatprep.subr.mxu0 0.0
    %2302 = vmatpush1.msra.mxu0 0.0
    %2303 = vmatprep.subr.mxu0 0.0
    %2304 = vmatpush1.msra.mxu0 0.0
    %2305 = vmatprep.subr.mxu0 0.0
    %2306 = vmatpush1.msra.mxu0 0.0
    %2307 = vmatprep.subr.mxu0 0.0
    %2308 = vmatpush1.msra.mxu0 0.0
    %2309 = vmatprep.subr.mxu0 0.0
    %2310 = vmatpush1.msra.mxu0 0.0
    %2311 = vmatprep.subr.mxu0 0.0
    %2312 = vmatpush1.msra.mxu0 0.0
    %2313 = vmatprep.subr.mxu0 0.0
    %2314 = vmatpush1.msra.mxu0 0.0
    %2315 = vmatprep.subr.mxu0 0.0
    %2316 = vmatpush1.msra.mxu0 0.0
    %2317 = vmatprep.subr.mxu0 0.0
    %2318 = vmatpush1.msra.mxu0 0.0
    %2319 = vmatprep.subr.mxu0 0.0
    %2320 = vmatpush1.msra.mxu0 0.0
    %2321 = vmatprep.subr.mxu0 0.0
    %2322 = vmatpush1.msra.mxu0 0.0
    %2323 = vmatprep.subr.mxu0 0.0
    %2324 = vmatpush1.msra.mxu0 0.0
    %2325 = vmatprep.subr.mxu0 0.0
    %2326 = vmatpush1.msra.mxu0 0.0
    %2327 = vmatprep.subr.mxu0 0.0
    %2328 = vmatpush1.msra.mxu0 0.0
    %2329 = vmatprep.subr.mxu0 0.0
    %2330 = vmatpush1.msra.mxu0 0.0
    %2331 = vmatprep.subr.mxu0 0.0
    %2332 = vmatpush1.msra.mxu0 0.0
    %2333 = vmatprep.subr.mxu0 0.0
    %2334 = vmatpush1.msra.mxu0 0.0
    %2335 = vmatprep.subr.mxu0 0.0
    %2336 = vmatpush1.msra.mxu0 0.0
    %2337 = vmatprep.subr.mxu0 0.0
    %2338 = vmatpush1.msra.mxu0 0.0
    %2339 = vmatprep.subr.mxu0 0.0
    %2340 = vmatpush1.msra.mxu0 0.0
    %2341 = vmatprep.subr.mxu0 0.0
    %2342 = vmatpush1.msra.mxu0 0.0
    %2343 = vmatprep.subr.mxu0 0.0
    %2344 = vmatpush1.msra.mxu0 0.0
    %2345 = vmatprep.subr.mxu0 0.0
    %2346 = vmatpush1.msra.mxu0 0.0
    %2347 = vmatprep.subr.mxu0 0.0
    %2348 = vmatpush1.msra.mxu0 0.0
    %2349 = vmatprep.subr.mxu0 0.0
    %2350 = vmatpush1.msra.mxu0 0.0
    %2351 = vmatprep.subr.mxu0 0.0
    %2352 = vmatpush1.msra.mxu0 0.0
    %2353 = vmatprep.subr.mxu0 0.0
    %2354 = vmatpush1.msra.mxu0 0.0
    %2355 = vmatprep.subr.mxu0 0.0
    %2356 = vmatpush1.msra.mxu0 0.0
    %2357 = vmatprep.subr.mxu0 0.0
    %2358 = vmatpush1.msra.mxu0 0.0
    %2359 = vmatprep.subr.mxu0 0.0
    %2360 = vmatpush1.msra.mxu0 0.0
    %2361 = vmatprep.subr.mxu0 0.0
    %2362 = vmatpush1.msra.mxu0 0.0
    %2363 = vmatprep.mubr.f32.mxu0 0.0
    %2364 = vmatmul.mubr.f32.gmra.mrb[0].mxu0 %v2297
    %v2365 = vpop.f32.mrb[0].mxu0
    %v2366 = vadd.f32 0.0, %v2365
    %v2367 = vpop.f32.mrb[0].mxu0
    %v2368 = vadd.f32 0.0, %v2367
    %2369 = vdwg.mxu0
    %v2371 = vsel %vm68, %v2295, 0
    %2373 = vmatprep.subr.mxu0 %v77
    %2374 = vmatpush1.msra.mxu0 %v74
    %2375 = vmatprep.subr.mxu0 0.0
    %2376 = vmatpush1.msra.mxu0 0.0
    %2377 = vmatprep.subr.mxu0 0.0
    %2378 = vmatpush1.msra.mxu0 0.0
    %2379 = vmatprep.subr.mxu0 0.0
    %2380 = vmatpush1.msra.mxu0 0.0
    %2381 = vmatprep.subr.mxu0 0.0
    %2382 = vmatpush1.msra.mxu0 0.0
    %2383 = vmatprep.subr.mxu0 0.0
    %2384 = vmatpush1.msra.mxu0 0.0
    %2385 = vmatprep.subr.mxu0 0.0
    %2386 = vmatpush1.msra.mxu0 0.0
    %2387 = vmatprep.subr.mxu0 0.0
    %2388 = vmatpush1.msra.mxu0 0.0
    %2389 = vmatprep.subr.mxu0 0.0
    %2390 = vmatpush1.msra.mxu0 0.0
    %2391 = vmatprep.subr.mxu0 0.0
    %2392 = vmatpush1.msra.mxu0 0.0
    %2393 = vmatprep.subr.mxu0 0.0
    %2394 = vmatpush1.msra.mxu0 0.0
    %2395 = vmatprep.subr.mxu0 0.0
    %2396 = vmatpush1.msra.mxu0 0.0
    %2397 = vmatprep.subr.mxu0 0.0
    %2398 = vmatpush1.msra.mxu0 0.0
    %2399 = vmatprep.subr.mxu0 0.0
    %2400 = vmatpush1.msra.mxu0 0.0
    %2401 = vmatprep.subr.mxu0 0.0
    %2402 = vmatpush1.msra.mxu0 0.0
    %2403 = vmatprep.subr.mxu0 0.0
    %2404 = vmatpush1.msra.mxu0 0.0
    %2405 = vmatprep.subr.mxu0 0.0
    %2406 = vmatpush1.msra.mxu0 0.0
    %2407 = vmatprep.subr.mxu0 0.0
    %2408 = vmatpush1.msra.mxu0 0.0
    %2409 = vmatprep.subr.mxu0 0.0
    %2410 = vmatpush1.msra.mxu0 0.0
    %2411 = vmatprep.subr.mxu0 0.0
    %2412 = vmatpush1.msra.mxu0 0.0
    %2413 = vmatprep.subr.mxu0 0.0
    %2414 = vmatpush1.msra.mxu0 0.0
    %2415 = vmatprep.subr.mxu0 0.0
    %2416 = vmatpush1.msra.mxu0 0.0
    %2417 = vmatprep.subr.mxu0 0.0
    %2418 = vmatpush1.msra.mxu0 0.0
    %2419 = vmatprep.subr.mxu0 0.0
    %2420 = vmatpush1.msra.mxu0 0.0
    %2421 = vmatprep.subr.mxu0 0.0
    %2422 = vmatpush1.msra.mxu0 0.0
    %2423 = vmatprep.subr.mxu0 0.0
    %2424 = vmatpush1.msra.mxu0 0.0
    %2425 = vmatprep.subr.mxu0 0.0
    %2426 = vmatpush1.msra.mxu0 0.0
    %2427 = vmatprep.subr.mxu0 0.0
    %2428 = vmatpush1.msra.mxu0 0.0
    %2429 = vmatprep.subr.mxu0 0.0
    %2430 = vmatpush1.msra.mxu0 0.0
    %2431 = vmatprep.subr.mxu0 0.0
    %2432 = vmatpush1.msra.mxu0 0.0
    %2433 = vmatprep.subr.mxu0 0.0
    %2434 = vmatpush1.msra.mxu0 0.0
    %2435 = vmatprep.subr.mxu0 0.0
    %2436 = vmatpush1.msra.mxu0 0.0
    %2437 = vmatprep.mubr.f32.mxu0 0.0
    %2438 = vmatmul.mubr.f32.gmra.mrb[0].mxu0 %v2371
    %v2439 = vpop.f32.mrb[0].mxu0
    %v2440 = vadd.f32 0.0, %v2439
    %v2441 = vpop.f32.mrb[0].mxu0
    %v2442 = vadd.f32 0.0, %v2441
    %2443 = vdwg.mxu0
    %v2444 = vlaneseq
    %v2445 = vshrl.u32 %v2444, 7
    %v2446 = vsub.s32 0, %v2445
    %v2447 = vrot.slane %v2366, %v2446
    %v2448 = vlaneseq
    %v2449 = vshrl.u32 %v2448, 7
    %v2450 = vsub.s32 0, %v2449
    %v2451 = vrot.slane %v2368, %v2450
    %v2452 = vmul.f32 %v719, %v2447
    %v2453 = vmul.f32 %v720, %v2451
    %v2454 = vmul.f32 %v721, %v2447
    %v2455 = vmul.f32 %v722, %v2451
    %v2456 = vlaneseq
    %v2457 = vshrl.u32 %v2456, 7
    %v2458 = vsub.s32 0, %v2457
    %v2459 = vrot.slane %v2440, %v2458
    %v2460 = vlaneseq
    %v2461 = vshrl.u32 %v2460, 7
    %v2462 = vsub.s32 0, %v2461
    %v2463 = vrot.slane %v2442, %v2462
    %v2464 = vadd.f32 %v2452, %v2459
    %v2465 = vadd.f32 %v2453, %v2463
    %v2466 = vadd.f32 %v2454, %v2459
    %v2467 = vadd.f32 %v2455, %v2463
    %v2468 = vmax.f32 %v2464, 0.0
    %v2469 = vmax.f32 %v2465, 0.0
    %v2470 = vmax.f32 %v2466, 0.0
    %v2471 = vmax.f32 %v2467, 0.0
    %v2472 = vmul.f32 %v1172, %v2447
    %v2473 = vmul.f32 %v1173, %v2451
    %v2474 = vmul.f32 %v1174, %v2447
    %v2475 = vmul.f32 %v1175, %v2451
    %v2476 = vadd.f32 %v2472, %v2459
    %v2477 = vadd.f32 %v2473, %v2463
    %v2478 = vadd.f32 %v2474, %v2459
    %v2479 = vadd.f32 %v2475, %v2463
    %v2480 = vmax.f32 %v2476, 0.0
    %v2481 = vmax.f32 %v2477, 0.0
    %v2482 = vmax.f32 %v2478, 0.0
    %v2483 = vmax.f32 %v2479, 0.0
    %v2484 = vmul.f32 %v1623, %v2447
    %v2485 = vmul.f32 %v1624, %v2451
    %v2486 = vmul.f32 %v1625, %v2447
    %v2487 = vmul.f32 %v1626, %v2451
    %v2488 = vadd.f32 %v2484, %v2459
    %v2489 = vadd.f32 %v2485, %v2463
    %v2490 = vadd.f32 %v2486, %v2459
    %v2491 = vadd.f32 %v2487, %v2463
    %v2492 = vmax.f32 %v2488, 0.0
    %v2493 = vmax.f32 %v2489, 0.0
    %v2494 = vmax.f32 %v2490, 0.0
    %v2495 = vmax.f32 %v2491, 0.0
    %v2496 = vmul.f32 %v2074, %v2447
    %v2497 = vmul.f32 %v2075, %v2451
    %v2498 = vmul.f32 %v2076, %v2447
    %v2499 = vmul.f32 %v2077, %v2451
    %v2500 = vadd.f32 %v2496, %v2459
    %v2501 = vadd.f32 %v2497, %v2463
    %v2502 = vadd.f32 %v2498, %v2459
    %v2503 = vadd.f32 %v2499, %v2463
    %v2504 = vmax.f32 %v2500, 0.0
    %v2505 = vmax.f32 %v2501, 0.0
    %v2506 = vmax.f32 %v2502, 0.0
    %v2507 = vmax.f32 %v2503, 0.0
    %2512 = vrot.lane.b32.xlu0 %v2468, 56
    %v2513 = vpop.permute.xlu0 %2512
    %2514 = vrot.lane.b32.xlu0 %v2469, 56
    %v2515 = vpop.permute.xlu0 %2514
    %2516 = vrot.lane.b32.xlu0 %v2470, 56
    %v2517 = vpop.permute.xlu0 %2516
    %2518 = vrot.lane.b32.xlu0 %v2471, 56
    %v2519 = vpop.permute.xlu0 %2518
    %vm2520 = vcmask 457728
    %v2521 = vsel %vm2520, %v2513, %v2515
    %v2522 = vsel %vm2520, %v2517, %v2519
    %v2525 = vmax.f32 %v2468, %v2521
    %v2526 = vmax.f32 %v2470, %v2522
    %2531 = vrot.lane.b32.xlu0 %v2480, 56
    %v2532 = vpop.permute.xlu0 %2531
    %2533 = vrot.lane.b32.xlu0 %v2481, 56
    %v2534 = vpop.permute.xlu0 %2533
    %2535 = vrot.lane.b32.xlu0 %v2482, 56
    %v2536 = vpop.permute.xlu0 %2535
    %2537 = vrot.lane.b32.xlu0 %v2483, 56
    %v2538 = vpop.permute.xlu0 %2537
    %v2539 = vsel %vm2520, %v2532, %v2534
    %v2540 = vsel %vm2520, %v2536, %v2538
    %v2543 = vmax.f32 %v2480, %v2539
    %v2544 = vmax.f32 %v2482, %v2540
    %v2545 = vmax.f32 %v2525, %v2543
    %v2546 = vmax.f32 %v2526, %v2544
    %2551 = vrot.lane.b32.xlu0 %v2492, 56
    %v2552 = vpop.permute.xlu0 %2551
    %2553 = vrot.lane.b32.xlu0 %v2493, 56
    %v2554 = vpop.permute.xlu0 %2553
    %2555 = vrot.lane.b32.xlu0 %v2494, 56
    %v2556 = vpop.permute.xlu0 %2555
    %2557 = vrot.lane.b32.xlu0 %v2495, 56
    %v2558 = vpop.permute.xlu0 %2557
    %v2559 = vsel %vm2520, %v2552, %v2554
    %v2560 = vsel %vm2520, %v2556, %v2558
    %v2563 = vmax.f32 %v2492, %v2559
    %v2564 = vmax.f32 %v2494, %v2560
    %2569 = vrot.lane.b32.xlu0 %v2504, 56
    %v2570 = vpop.permute.xlu0 %2569
    %2571 = vrot.lane.b32.xlu0 %v2505, 56
    %v2572 = vpop.permute.xlu0 %2571
    %2573 = vrot.lane.b32.xlu0 %v2506, 56
    %v2574 = vpop.permute.xlu0 %2573
    %2575 = vrot.lane.b32.xlu0 %v2507, 56
    %v2576 = vpop.permute.xlu0 %2575
    %v2577 = vsel %vm2520, %v2570, %v2572
    %v2578 = vsel %vm2520, %v2574, %v2576
    %v2581 = vmax.f32 %v2504, %v2577
    %v2582 = vmax.f32 %v2506, %v2578
    %v2583 = vmax.f32 %v2563, %v2581
    %v2584 = vmax.f32 %v2564, %v2582
    %v2585 = vld [vmem:[%s8] sm:$0x1]
    %v2587 = vsel %vm731, %v2585, 0
    %2589 = vmatprep.subr.mxu0 0.0
    %2590 = vmatpush1.msra.mxu0 %v65
    %2591 = vmatprep.subr.mxu0 0.0
    %2592 = vmatpush1.msra.mxu0 %v66
    %2593 = vmatprep.subr.mxu0 0.0
    %2594 = vmatpush1.msra.mxu0 0.0
    %2595 = vmatprep.subr.mxu0 0.0
    %2596 = vmatpush1.msra.mxu0 0.0
    %2597 = vmatprep.subr.mxu0 0.0
    %2598 = vmatpush1.msra.mxu0 0.0
    %2599 = vmatprep.subr.mxu0 0.0
    %2600 = vmatpush1.msra.mxu0 0.0
    %2601 = vmatprep.subr.mxu0 0.0
    %2602 = vmatpush1.msra.mxu0 0.0
    %2603 = vmatprep.subr.mxu0 0.0
    %2604 = vmatpush1.msra.mxu0 0.0
    %2605 = vmatprep.subr.mxu0 0.0
    %2606 = vmatpush1.msra.mxu0 0.0
    %2607 = vmatprep.subr.mxu0 0.0
    %2608 = vmatpush1.msra.mxu0 0.0
    %2609 = vmatprep.subr.mxu0 0.0
    %2610 = vmatpush1.msra.mxu0 0.0
    %2611 = vmatprep.subr.mxu0 0.0
    %2612 = vmatpush1.msra.mxu0 0.0
    %2613 = vmatprep.subr.mxu0 0.0
    %2614 = vmatpush1.msra.mxu0 0.0
    %2615 = vmatprep.subr.mxu0 0.0
    %2616 = vmatpush1.msra.mxu0 0.0
    %2617 = vmatprep.subr.mxu0 0.0
    %2618 = vmatpush1.msra.mxu0 0.0
    %2619 = vmatprep.subr.mxu0 0.0
    %2620 = vmatpush1.msra.mxu0 0.0
    %2621 = vmatprep.subr.mxu0 0.0
    %2622 = vmatpush1.msra.mxu0 0.0
    %2623 = vmatprep.subr.mxu0 0.0
    %2624 = vmatpush1.msra.mxu0 0.0
    %2625 = vmatprep.subr.mxu0 0.0
    %2626 = vmatpush1.msra.mxu0 0.0
    %2627 = vmatprep.subr.mxu0 0.0
    %2628 = vmatpush1.msra.mxu0 0.0
    %2629 = vmatprep.subr.mxu0 0.0
    %2630 = vmatpush1.msra.mxu0 0.0
    %2631 = vmatprep.subr.mxu0 0.0
    %2632 = vmatpush1.msra.mxu0 0.0
    %2633 = vmatprep.subr.mxu0 0.0
    %2634 = vmatpush1.msra.mxu0 0.0
    %2635 = vmatprep.subr.mxu0 0.0
    %2636 = vmatpush1.msra.mxu0 0.0
    %2637 = vmatprep.subr.mxu0 0.0
    %2638 = vmatpush1.msra.mxu0 0.0
    %2639 = vmatprep.subr.mxu0 0.0
    %2640 = vmatpush1.msra.mxu0 0.0
    %2641 = vmatprep.subr.mxu0 0.0
    %2642 = vmatpush1.msra.mxu0 0.0
    %2643 = vmatprep.subr.mxu0 0.0
    %2644 = vmatpush1.msra.mxu0 0.0
    %2645 = vmatprep.subr.mxu0 0.0
    %2646 = vmatpush1.msra.mxu0 0.0
    %2647 = vmatprep.subr.mxu0 0.0
    %2648 = vmatpush1.msra.mxu0 0.0
    %2649 = vmatprep.subr.mxu0 0.0
    %2650 = vmatpush1.msra.mxu0 0.0
    %2651 = vmatprep.subr.mxu0 0.0
    %2652 = vmatpush1.msra.mxu0 0.0
    %2653 = vmatprep.mubr.f32.mxu0 0.0
    %2654 = vmatmul.mubr.f32.gmra.mrb[0].mxu0 %v2587
    %v2655 = vpop.f32.mrb[0].mxu0
    %v2656 = vadd.f32 0.0, %v2655
    %v2657 = vpop.f32.mrb[0].mxu0
    %2658 = vdwg.mxu0
    %v2659 = vld [vmem:[%s7] sm:$0xff]
    %v2660 = vld [vmem:[%s7 + $0x8] sm:$0xff]
    %v2661 = vld [vmem:[%s7 + $0x10] sm:$0xff]
    %v2662 = vld [vmem:[%s7 + $0x18] sm:$0xff]
    %v2663 = vld [vmem:[%s7 + $0x20] sm:$0xff]
    %v2664 = vld [vmem:[%s7 + $0x28] sm:$0xff]
    %v2665 = vld [vmem:[%s7 + $0x30] sm:$0xff]
    %v2666 = vld [vmem:[%s7 + $0x38] sm:$0xff]
    %v2667 = vld [vmem:[%s7 + $0x40] sm:$0xff]
    %v2668 = vld [vmem:[%s7 + $0x48] sm:$0xff]
    %v2669 = vld [vmem:[%s7 + $0x50] sm:$0xff]
    %v2670 = vld [vmem:[%s7 + $0x58] sm:$0xff]
    %v2671 = vld [vmem:[%s7 + $0x60] sm:$0xff]
    %v2672 = vld [vmem:[%s7 + $0x68] sm:$0xff]
    %v2673 = vld [vmem:[%s7 + $0x70] sm:$0xff]
    %v2674 = vld [vmem:[%s7 + $0x78] sm:$0xff]
    %v2675 = vld [vmem:[%s7 + $0x80] sm:$0xff]
    %v2676 = vld [vmem:[%s7 + $0x88] sm:$0xff]
    %vm2677 = vcmask 588800
    %v2679 = vsel %vm2677, %v2583, 0
    %2681 = vmatprep.subr.mxu0 0.0
    %2682 = vmatpush1.msra.mxu0 %v2668
    %2683 = vmatprep.subr.mxu0 0.0
    %2684 = vmatpush1.msra.mxu0 %v2669
    %2685 = vmatprep.subr.mxu0 0.0
    %2686 = vmatpush1.msra.mxu0 %v2670
    %2687 = vmatprep.subr.mxu0 0.0
    %2688 = vmatpush1.msra.mxu0 %v2671
    %2689 = vmatprep.subr.mxu0 0.0
    %2690 = vmatpush1.msra.mxu0 %v2672
    %2691 = vmatprep.subr.mxu0 0.0
    %2692 = vmatpush1.msra.mxu0 %v2673
    %2693 = vmatprep.subr.mxu0 0.0
    %2694 = vmatpush1.msra.mxu0 %v2674
    %2695 = vmatprep.subr.mxu0 0.0
    %2696 = vmatpush1.msra.mxu0 %v2675
    %2697 = vmatprep.subr.mxu0 0.0
    %2698 = vmatpush1.msra.mxu0 %v2676
    %2699 = vmatprep.subr.mxu0 0.0
    %2700 = vmatpush1.msra.mxu0 0.0
    %2701 = vmatprep.subr.mxu0 0.0
    %2702 = vmatpush1.msra.mxu0 0.0
    %2703 = vmatprep.subr.mxu0 0.0
    %2704 = vmatpush1.msra.mxu0 0.0
    %2705 = vmatprep.subr.mxu0 0.0
    %2706 = vmatpush1.msra.mxu0 0.0
    %2707 = vmatprep.subr.mxu0 0.0
    %2708 = vmatpush1.msra.mxu0 0.0
    %2709 = vmatprep.subr.mxu0 0.0
    %2710 = vmatpush1.msra.mxu0 0.0
    %2711 = vmatprep.subr.mxu0 0.0
    %2712 = vmatpush1.msra.mxu0 0.0
    %2713 = vmatprep.subr.mxu0 0.0
    %2714 = vmatpush1.msra.mxu0 0.0
    %2715 = vmatprep.subr.mxu0 0.0
    %2716 = vmatpush1.msra.mxu0 0.0
    %2717 = vmatprep.subr.mxu0 0.0
    %2718 = vmatpush1.msra.mxu0 0.0
    %2719 = vmatprep.subr.mxu0 0.0
    %2720 = vmatpush1.msra.mxu0 0.0
    %2721 = vmatprep.subr.mxu0 0.0
    %2722 = vmatpush1.msra.mxu0 0.0
    %2723 = vmatprep.subr.mxu0 0.0
    %2724 = vmatpush1.msra.mxu0 0.0
    %2725 = vmatprep.subr.mxu0 0.0
    %2726 = vmatpush1.msra.mxu0 0.0
    %2727 = vmatprep.subr.mxu0 0.0
    %2728 = vmatpush1.msra.mxu0 0.0
    %2729 = vmatprep.subr.mxu0 0.0
    %2730 = vmatpush1.msra.mxu0 0.0
    %2731 = vmatprep.subr.mxu0 0.0
    %2732 = vmatpush1.msra.mxu0 0.0
    %2733 = vmatprep.subr.mxu0 0.0
    %2734 = vmatpush1.msra.mxu0 0.0
    %2735 = vmatprep.subr.mxu0 0.0
    %2736 = vmatpush1.msra.mxu0 0.0
    %2737 = vmatprep.subr.mxu0 0.0
    %2738 = vmatpush1.msra.mxu0 0.0
    %2739 = vmatprep.subr.mxu0 0.0
    %2740 = vmatpush1.msra.mxu0 0.0
    %2741 = vmatprep.subr.mxu0 0.0
    %2742 = vmatpush1.msra.mxu0 0.0
    %2743 = vmatprep.subr.mxu0 0.0
    %2744 = vmatpush1.msra.mxu0 0.0
    %2745 = vmatprep.mubr.f32.mxu0 0.0
    %2746 = vmatmul.mubr.f32.gmra.mrb[0].mxu0 %v2679
    %v2747 = vpop.f32.mrb[0].mxu0
    %v2748 = vadd.f32 0.0, %v2747
    %v2749 = vpop.f32.mrb[0].mxu0
    %2750 = vdwg.mxu0
    %v2752 = vsel %vm2677, %v2545, 0
    %2754 = vmatprep.subr.mxu0 0.0
    %2755 = vmatpush1.msra.mxu0 %v2659
    %2756 = vmatprep.subr.mxu0 0.0
    %2757 = vmatpush1.msra.mxu0 %v2660
    %2758 = vmatprep.subr.mxu0 0.0
    %2759 = vmatpush1.msra.mxu0 %v2661
    %2760 = vmatprep.subr.mxu0 0.0
    %2761 = vmatpush1.msra.mxu0 %v2662
    %2762 = vmatprep.subr.mxu0 0.0
    %2763 = vmatpush1.msra.mxu0 %v2663
    %2764 = vmatprep.subr.mxu0 0.0
    %2765 = vmatpush1.msra.mxu0 %v2664
    %2766 = vmatprep.subr.mxu0 0.0
    %2767 = vmatpush1.msra.mxu0 %v2665
    %2768 = vmatprep.subr.mxu0 0.0
    %2769 = vmatpush1.msra.mxu0 %v2666
    %2770 = vmatprep.subr.mxu0 0.0
    %2771 = vmatpush1.msra.mxu0 %v2667
    %2772 = vmatprep.subr.mxu0 0.0
    %2773 = vmatpush1.msra.mxu0 0.0
    %2774 = vmatprep.subr.mxu0 0.0
    %2775 = vmatpush1.msra.mxu0 0.0
    %2776 = vmatprep.subr.mxu0 0.0
    %2777 = vmatpush1.msra.mxu0 0.0
    %2778 = vmatprep.subr.mxu0 0.0
    %2779 = vmatpush1.msra.mxu0 0.0
    %2780 = vmatprep.subr.mxu0 0.0
    %2781 = vmatpush1.msra.mxu0 0.0
    %2782 = vmatprep.subr.mxu0 0.0
    %2783 = vmatpush1.msra.mxu0 0.0
    %2784 = vmatprep.subr.mxu0 0.0
    %2785 = vmatpush1.msra.mxu0 0.0
    %2786 = vmatprep.subr.mxu0 0.0
    %2787 = vmatpush1.msra.mxu0 0.0
    %2788 = vmatprep.subr.mxu0 0.0
    %2789 = vmatpush1.msra.mxu0 0.0
    %2790 = vmatprep.subr.mxu0 0.0
    %2791 = vmatpush1.msra.mxu0 0.0
    %2792 = vmatprep.subr.mxu0 0.0
    %2793 = vmatpush1.msra.mxu0 0.0
    %2794 = vmatprep.subr.mxu0 0.0
    %2795 = vmatpush1.msra.mxu0 0.0
    %2796 = vmatprep.subr.mxu0 0.0
    %2797 = vmatpush1.msra.mxu0 0.0
    %2798 = vmatprep.subr.mxu0 0.0
    %2799 = vmatpush1.msra.mxu0 0.0
    %2800 = vmatprep.subr.mxu0 0.0
    %2801 = vmatpush1.msra.mxu0 0.0
    %2802 = vmatprep.subr.mxu0 0.0
    %2803 = vmatpush1.msra.mxu0 0.0
    %2804 = vmatprep.subr.mxu0 0.0
    %2805 = vmatpush1.msra.mxu0 0.0
    %2806 = vmatprep.subr.mxu0 0.0
    %2807 = vmatpush1.msra.mxu0 0.0
    %2808 = vmatprep.subr.mxu0 0.0
    %2809 = vmatpush1.msra.mxu0 0.0
    %2810 = vmatprep.subr.mxu0 0.0
    %2811 = vmatpush1.msra.mxu0 0.0
    %2812 = vmatprep.subr.mxu0 0.0
    %2813 = vmatpush1.msra.mxu0 0.0
    %2814 = vmatprep.subr.mxu0 0.0
    %2815 = vmatpush1.msra.mxu0 0.0
    %2816 = vmatprep.subr.mxu0 0.0
    %2817 = vmatpush1.msra.mxu0 0.0
    %2818 = vmatprep.mubr.f32.mxu0 0.0
    %2819 = vmatmul.mubr.f32.gmra.mrb[0].mxu0 %v2752
    %v2820 = vpop.f32.mrb[0].mxu0
    %v2821 = vadd.f32 %v2748, %v2820
    %v2822 = vpop.f32.mrb[0].mxu0
    %2823 = vdwg.mxu0
    %v2824 = vld [vmem:[%s7 + $0x90] sm:$0xff]
    %v2825 = vld [vmem:[%s7 + $0x98] sm:$0xff]
    %v2826 = vld [vmem:[%s7 + $0xa0] sm:$0xff]
    %v2827 = vld [vmem:[%s7 + $0xa8] sm:$0xff]
    %v2828 = vld [vmem:[%s7 + $0xb0] sm:$0xff]
    %v2829 = vld [vmem:[%s7 + $0xb8] sm:$0xff]
    %v2830 = vld [vmem:[%s7 + $0xc0] sm:$0xff]
    %v2831 = vld [vmem:[%s7 + $0xc8] sm:$0xff]
    %v2832 = vld [vmem:[%s7 + $0xd0] sm:$0xff]
    %v2834 = vrot.slane %v2545, 2
    %v2835 = vrot.slane %v2546, 2
    %v2836 = vsel %vm72, %v2834, %v2835
    %v2837 = vsel %vm2677, %v2836, 0
    %2839 = vmatprep.subr.mxu0 0.0
    %2840 = vmatpush1.msra.mxu0 %v2824
    %2841 = vmatprep.subr.mxu0 0.0
    %2842 = vmatpush1.msra.mxu0 %v2825
    %2843 = vmatprep.subr.mxu0 0.0
    %2844 = vmatpush1.msra.mxu0 %v2826
    %2845 = vmatprep.subr.mxu0 0.0
    %2846 = vmatpush1.msra.mxu0 %v2827
    %2847 = vmatprep.subr.mxu0 0.0
    %2848 = vmatpush1.msra.mxu0 %v2828
    %2849 = vmatprep.subr.mxu0 0.0
    %2850 = vmatpush1.msra.mxu0 %v2829
    %2851 = vmatprep.subr.mxu0 0.0
    %2852 = vmatpush1.msra.mxu0 %v2830
    %2853 = vmatprep.subr.mxu0 0.0
    %2854 = vmatpush1.msra.mxu0 %v2831
    %2855 = vmatprep.subr.mxu0 0.0
    %2856 = vmatpush1.msra.mxu0 %v2832
    %2857 = vmatprep.subr.mxu0 0.0
    %2858 = vmatpush1.msra.mxu0 0.0
    %2859 = vmatprep.subr.mxu0 0.0
    %2860 = vmatpush1.msra.mxu0 0.0
    %2861 = vmatprep.subr.mxu0 0.0
    %2862 = vmatpush1.msra.mxu0 0.0
    %2863 = vmatprep.subr.mxu0 0.0
    %2864 = vmatpush1.msra.mxu0 0.0
    %2865 = vmatprep.subr.mxu0 0.0
    %2866 = vmatpush1.msra.mxu0 0.0
    %2867 = vmatprep.subr.mxu0 0.0
    %2868 = vmatpush1.msra.mxu0 0.0
    %2869 = vmatprep.subr.mxu0 0.0
    %2870 = vmatpush1.msra.mxu0 0.0
    %2871 = vmatprep.subr.mxu0 0.0
    %2872 = vmatpush1.msra.mxu0 0.0
    %2873 = vmatprep.subr.mxu0 0.0
    %2874 = vmatpush1.msra.mxu0 0.0
    %2875 = vmatprep.subr.mxu0 0.0
    %2876 = vmatpush1.msra.mxu0 0.0
    %2877 = vmatprep.subr.mxu0 0.0
    %2878 = vmatpush1.msra.mxu0 0.0
    %2879 = vmatprep.subr.mxu0 0.0
    %2880 = vmatpush1.msra.mxu0 0.0
    %2881 = vmatprep.subr.mxu0 0.0
    %2882 = vmatpush1.msra.mxu0 0.0
    %2883 = vmatprep.subr.mxu0 0.0
    %2884 = vmatpush1.msra.mxu0 0.0
    %2885 = vmatprep.subr.mxu0 0.0
    %2886 = vmatpush1.msra.mxu0 0.0
    %2887 = vmatprep.subr.mxu0 0.0
    %2888 = vmatpush1.msra.mxu0 0.0
    %2889 = vmatprep.subr.mxu0 0.0
    %2890 = vmatpush1.msra.mxu0 0.0
    %2891 = vmatprep.subr.mxu0 0.0
    %2892 = vmatpush1.msra.mxu0 0.0
    %2893 = vmatprep.subr.mxu0 0.0
    %2894 = vmatpush1.msra.mxu0 0.0
    %2895 = vmatprep.subr.mxu0 0.0
    %2896 = vmatpush1.msra.mxu0 0.0
    %2897 = vmatprep.subr.mxu0 0.0
    %2898 = vmatpush1.msra.mxu0 0.0
    %2899 = vmatprep.subr.mxu0 0.0
    %2900 = vmatpush1.msra.mxu0 0.0
    %2901 = vmatprep.subr.mxu0 0.0
    %2902 = vmatpush1.msra.mxu0 0.0
    %2903 = vmatprep.mubr.f32.mxu0 0.0
    %2904 = vmatmul.mubr.f32.gmra.mrb[0].mxu0 %v2837
    %v2905 = vpop.f32.mrb[0].mxu0
    %v2906 = vadd.f32 0.0, %v2905
    %v2907 = vpop.f32.mrb[0].mxu0
    %2908 = vdwg.mxu0
    %v2909 = vadd.f32 %v2821, %v2906
    %v2910 = vld [vmem:[%s7 + $0xd8] sm:$0xff]
    %v2911 = vld [vmem:[%s7 + $0xe0] sm:$0xff]
    %v2912 = vld [vmem:[%s7 + $0xe8] sm:$0xff]
    %v2913 = vld [vmem:[%s7 + $0xf0] sm:$0xff]
    %v2914 = vld [vmem:[%s7 + $0xf8] sm:$0xff]
    %v2915 = vld [vmem:[%s7 + $0x100] sm:$0xff]
    %v2916 = vld [vmem:[%s7 + $0x108] sm:$0xff]
    %v2917 = vld [vmem:[%s7 + $0x110] sm:$0xff]
    %v2918 = vld [vmem:[%s7 + $0x118] sm:$0xff]
    %v2920 = vrot.slane %v2583, 2
    %v2921 = vrot.slane %v2584, 2
    %v2922 = vsel %vm72, %v2920, %v2921
    %v2923 = vsel %vm2677, %v2922, 0
    %2925 = vmatprep.subr.mxu0 0.0
    %2926 = vmatpush1.msra.mxu0 %v2910
    %2927 = vmatprep.subr.mxu0 0.0
    %2928 = vmatpush1.msra.mxu0 %v2911
    %2929 = vmatprep.subr.mxu0 0.0
    %2930 = vmatpush1.msra.mxu0 %v2912
    %2931 = vmatprep.subr.mxu0 0.0
    %2932 = vmatpush1.msra.mxu0 %v2913
    %2933 = vmatprep.subr.mxu0 0.0
    %2934 = vmatpush1.msra.mxu0 %v2914
    %2935 = vmatprep.subr.mxu0 0.0
    %2936 = vmatpush1.msra.mxu0 %v2915
    %2937 = vmatprep.subr.mxu0 0.0
    %2938 = vmatpush1.msra.mxu0 %v2916
    %2939 = vmatprep.subr.mxu0 0.0
    %2940 = vmatpush1.msra.mxu0 %v2917
    %2941 = vmatprep.subr.mxu0 0.0
    %2942 = vmatpush1.msra.mxu0 %v2918
    %2943 = vmatprep.subr.mxu0 0.0
    %2944 = vmatpush1.msra.mxu0 0.0
    %2945 = vmatprep.subr.mxu0 0.0
    %2946 = vmatpush1.msra.mxu0 0.0
    %2947 = vmatprep.subr.mxu0 0.0
    %2948 = vmatpush1.msra.mxu0 0.0
    %2949 = vmatprep.subr.mxu0 0.0
    %2950 = vmatpush1.msra.mxu0 0.0
    %2951 = vmatprep.subr.mxu0 0.0
    %2952 = vmatpush1.msra.mxu0 0.0
    %2953 = vmatprep.subr.mxu0 0.0
    %2954 = vmatpush1.msra.mxu0 0.0
    %2955 = vmatprep.subr.mxu0 0.0
    %2956 = vmatpush1.msra.mxu0 0.0
    %2957 = vmatprep.subr.mxu0 0.0
    %2958 = vmatpush1.msra.mxu0 0.0
    %2959 = vmatprep.subr.mxu0 0.0
    %2960 = vmatpush1.msra.mxu0 0.0
    %2961 = vmatprep.subr.mxu0 0.0
    %2962 = vmatpush1.msra.mxu0 0.0
    %2963 = vmatprep.subr.mxu0 0.0
    %2964 = vmatpush1.msra.mxu0 0.0
    %2965 = vmatprep.subr.mxu0 0.0
    %2966 = vmatpush1.msra.mxu0 0.0
    %2967 = vmatprep.subr.mxu0 0.0
    %2968 = vmatpush1.msra.mxu0 0.0
    %2969 = vmatprep.subr.mxu0 0.0
    %2970 = vmatpush1.msra.mxu0 0.0
    %2971 = vmatprep.subr.mxu0 0.0
    %2972 = vmatpush1.msra.mxu0 0.0
    %2973 = vmatprep.subr.mxu0 0.0
    %2974 = vmatpush1.msra.mxu0 0.0
    %2975 = vmatprep.subr.mxu0 0.0
    %2976 = vmatpush1.msra.mxu0 0.0
    %2977 = vmatprep.subr.mxu0 0.0
    %2978 = vmatpush1.msra.mxu0 0.0
    %2979 = vmatprep.subr.mxu0 0.0
    %2980 = vmatpush1.msra.mxu0 0.0
    %2981 = vmatprep.subr.mxu0 0.0
    %2982 = vmatpush1.msra.mxu0 0.0
    %2983 = vmatprep.subr.mxu0 0.0
    %2984 = vmatpush1.msra.mxu0 0.0
    %2985 = vmatprep.subr.mxu0 0.0
    %2986 = vmatpush1.msra.mxu0 0.0
    %2987 = vmatprep.subr.mxu0 0.0
    %2988 = vmatpush1.msra.mxu0 0.0
    %2989 = vmatprep.mubr.f32.mxu0 0.0
    %2990 = vmatmul.mubr.f32.gmra.mrb[0].mxu0 %v2923
    %v2991 = vpop.f32.mrb[0].mxu0
    %v2992 = vadd.f32 0.0, %v2991
    %v2993 = vpop.f32.mrb[0].mxu0
    %2994 = vdwg.mxu0
    %v2995 = vadd.f32 %v2909, %v2992
    %v2996 = vld [vmem:[%s7 + $0x120] sm:$0xff]
    %v2997 = vld [vmem:[%s7 + $0x128] sm:$0xff]
    %v2998 = vld [vmem:[%s7 + $0x130] sm:$0xff]
    %v2999 = vld [vmem:[%s7 + $0x138] sm:$0xff]
    %v3000 = vld [vmem:[%s7 + $0x140] sm:$0xff]
    %v3001 = vld [vmem:[%s7 + $0x148] sm:$0xff]
    %v3002 = vld [vmem:[%s7 + $0x150] sm:$0xff]
    %v3003 = vld [vmem:[%s7 + $0x158] sm:$0xff]
    %v3004 = vld [vmem:[%s7 + $0x160] sm:$0xff]
    %v3005 = vrot.slane %v2545, 4
    %v3006 = vrot.slane %v2546, 4
    %v3007 = vsel %vm178, %v3005, %v3006
    %v3008 = vsel %vm2677, %v3007, 0
    %3010 = vmatprep.subr.mxu0 0.0
    %3011 = vmatpush1.msra.mxu0 %v2996
    %3012 = vmatprep.subr.mxu0 0.0
    %3013 = vmatpush1.msra.mxu0 %v2997
    %3014 = vmatprep.subr.mxu0 0.0
    %3015 = vmatpush1.msra.mxu0 %v2998
    %3016 = vmatprep.subr.mxu0 0.0
    %3017 = vmatpush1.msra.mxu0 %v2999
    %3018 = vmatprep.subr.mxu0 0.0
    %3019 = vmatpush1.msra.mxu0 %v3000
    %3020 = vmatprep.subr.mxu0 0.0
    %3021 = vmatpush1.msra.mxu0 %v3001
    %3022 = vmatprep.subr.mxu0 0.0
    %3023 = vmatpush1.msra.mxu0 %v3002
    %3024 = vmatprep.subr.mxu0 0.0
    %3025 = vmatpush1.msra.mxu0 %v3003
    %3026 = vmatprep.subr.mxu0 0.0
    %3027 = vmatpush1.msra.mxu0 %v3004
    %3028 = vmatprep.subr.mxu0 0.0
    %3029 = vmatpush1.msra.mxu0 0.0
    %3030 = vmatprep.subr.mxu0 0.0
    %3031 = vmatpush1.msra.mxu0 0.0
    %3032 = vmatprep.subr.mxu0 0.0
    %3033 = vmatpush1.msra.mxu0 0.0
    %3034 = vmatprep.subr.mxu0 0.0
    %3035 = vmatpush1.msra.mxu0 0.0
    %3036 = vmatprep.subr.mxu0 0.0
    %3037 = vmatpush1.msra.mxu0 0.0
    %3038 = vmatprep.subr.mxu0 0.0
    %3039 = vmatpush1.msra.mxu0 0.0
    %3040 = vmatprep.subr.mxu0 0.0
    %3041 = vmatpush1.msra.mxu0 0.0
    %3042 = vmatprep.subr.mxu0 0.0
    %3043 = vmatpush1.msra.mxu0 0.0
    %3044 = vmatprep.subr.mxu0 0.0
    %3045 = vmatpush1.msra.mxu0 0.0
    %3046 = vmatprep.subr.mxu0 0.0
    %3047 = vmatpush1.msra.mxu0 0.0
    %3048 = vmatprep.subr.mxu0 0.0
    %3049 = vmatpush1.msra.mxu0 0.0
    %3050 = vmatprep.subr.mxu0 0.0
    %3051 = vmatpush1.msra.mxu0 0.0
    %3052 = vmatprep.subr.mxu0 0.0
    %3053 = vmatpush1.msra.mxu0 0.0
    %3054 = vmatprep.subr.mxu0 0.0
    %3055 = vmatpush1.msra.mxu0 0.0
    %3056 = vmatprep.subr.mxu0 0.0
    %3057 = vmatpush1.msra.mxu0 0.0
    %3058 = vmatprep.subr.mxu0 0.0
    %3059 = vmatpush1.msra.mxu0 0.0
    %3060 = vmatprep.subr.mxu0 0.0
    %3061 = vmatpush1.msra.mxu0 0.0
    %3062 = vmatprep.subr.mxu0 0.0
    %3063 = vmatpush1.msra.mxu0 0.0
    %3064 = vmatprep.subr.mxu0 0.0
    %3065 = vmatpush1.msra.mxu0 0.0
    %3066 = vmatprep.subr.mxu0 0.0
    %3067 = vmatpush1.msra.mxu0 0.0
    %3068 = vmatprep.subr.mxu0 0.0
    %3069 = vmatpush1.msra.mxu0 0.0
    %3070 = vmatprep.subr.mxu0 0.0
    %3071 = vmatpush1.msra.mxu0 0.0
    %3072 = vmatprep.subr.mxu0 0.0
    %3073 = vmatpush1.msra.mxu0 0.0
    %3074 = vmatprep.mubr.f32.mxu0 0.0
    %3075 = vmatmul.mubr.f32.gmra.mrb[0].mxu0 %v3008
    %v3076 = vpop.f32.mrb[0].mxu0
    %v3077 = vadd.f32 0.0, %v3076
    %v3078 = vpop.f32.mrb[0].mxu0
    %3079 = vdwg.mxu0
    %v3080 = vadd.f32 %v2995, %v3077
    %v3081 = vlaneseq
    %v3082 = vshrl.u32 %v3081, 7
    %v3083 = vsub.s32 0, %v3082
    %v3084 = vrot.slane %v2656, %v3083
    %v3085 = vadd.f32 %v3080, %v3084
    %v3086 = vrot.slane %v3085, 4
    %v3087 = vadd.f32 %v3085, %v3086
    %v3088 = vrot.slane %v3087, 2
    %v3089 = vadd.f32 %v3087, %v3088
    %v3090 = vrot.slane %v3089, 1
    %v3091 = vadd.f32 %v3089, %v3090
    %v3092 = vadd.f32 %v3091, 0.0
    %v3093 = vmul.f32 %v3085, %v3085
    %v3094 = vrot.slane %v3093, 4
    %v3095 = vadd.f32 %v3093, %v3094
    %v3096 = vrot.slane %v3095, 2
    %v3097 = vadd.f32 %v3095, %v3096
    %v3098 = vrot.slane %v3097, 1
    %v3099 = vadd.f32 %v3097, %v3098
    %v3100 = vadd.f32 %v3099, 0.0
    %3101 = vmatprep.subr.mxu0 0.0
    %3102 = vmatpush1.msra.mxu0 %v2668
    %3103 = vmatprep.subr.mxu0 0.0
    %3104 = vmatpush1.msra.mxu0 %v2669
    %3105 = vmatprep.subr.mxu0 0.0
    %3106 = vmatpush1.msra.mxu0 %v2670
    %3107 = vmatprep.subr.mxu0 0.0
    %3108 = vmatpush1.msra.mxu0 %v2671
    %3109 = vmatprep.subr.mxu0 0.0
    %3110 = vmatpush1.msra.mxu0 %v2672
    %3111 = vmatprep.subr.mxu0 0.0
    %3112 = vmatpush1.msra.mxu0 %v2673
    %3113 = vmatprep.subr.mxu0 0.0
    %3114 = vmatpush1.msra.mxu0 %v2674
    %3115 = vmatprep.subr.mxu0 0.0
    %3116 = vmatpush1.msra.mxu0 %v2675
    %3117 = vmatprep.subr.mxu0 0.0
    %3118 = vmatpush1.msra.mxu0 %v2676
    %3119 = vmatprep.subr.mxu0 0.0
    %3120 = vmatpush1.msra.mxu0 0.0
    %3121 = vmatprep.subr.mxu0 0.0
    %3122 = vmatpush1.msra.mxu0 0.0
    %3123 = vmatprep.subr.mxu0 0.0
    %3124 = vmatpush1.msra.mxu0 0.0
    %3125 = vmatprep.subr.mxu0 0.0
    %3126 = vmatpush1.msra.mxu0 0.0
    %3127 = vmatprep.subr.mxu0 0.0
    %3128 = vmatpush1.msra.mxu0 0.0
    %3129 = vmatprep.subr.mxu0 0.0
    %3130 = vmatpush1.msra.mxu0 0.0
    %3131 = vmatprep.subr.mxu0 0.0
    %3132 = vmatpush1.msra.mxu0 0.0
    %3133 = vmatprep.subr.mxu0 0.0
    %3134 = vmatpush1.msra.mxu0 0.0
    %3135 = vmatprep.subr.mxu0 0.0
    %3136 = vmatpush1.msra.mxu0 0.0
    %3137 = vmatprep.subr.mxu0 0.0
    %3138 = vmatpush1.msra.mxu0 0.0
    %3139 = vmatprep.subr.mxu0 0.0
    %3140 = vmatpush1.msra.mxu0 0.0
    %3141 = vmatprep.subr.mxu0 0.0
    %3142 = vmatpush1.msra.mxu0 0.0
    %3143 = vmatprep.subr.mxu0 0.0
    %3144 = vmatpush1.msra.mxu0 0.0
    %3145 = vmatprep.subr.mxu0 0.0
    %3146 = vmatpush1.msra.mxu0 0.0
    %3147 = vmatprep.subr.mxu0 0.0
    %3148 = vmatpush1.msra.mxu0 0.0
    %3149 = vmatprep.subr.mxu0 0.0
    %3150 = vmatpush1.msra.mxu0 0.0
    %3151 = vmatprep.subr.mxu0 0.0
    %3152 = vmatpush1.msra.mxu0 0.0
    %3153 = vmatprep.subr.mxu0 0.0
    %3154 = vmatpush1.msra.mxu0 0.0
    %3155 = vmatprep.subr.mxu0 0.0
    %3156 = vmatpush1.msra.mxu0 0.0
    %3157 = vmatprep.subr.mxu0 0.0
    %3158 = vmatpush1.msra.mxu0 0.0
    %3159 = vmatprep.subr.mxu0 0.0
    %3160 = vmatpush1.msra.mxu0 0.0
    %3161 = vmatprep.subr.mxu0 0.0
    %3162 = vmatpush1.msra.mxu0 0.0
    %3163 = vmatprep.subr.mxu0 0.0
    %3164 = vmatpush1.msra.mxu0 0.0
    %3165 = vmatprep.mubr.f32.mxu0 0.0
    %3166 = vmatmul.mubr.f32.gmra.mrb[0].mxu0 %v2837
    %v3167 = vpop.f32.mrb[0].mxu0
    %v3168 = vadd.f32 0.0, %v3167
    %v3169 = vpop.f32.mrb[0].mxu0
    %3170 = vdwg.mxu0
    %3171 = vmatprep.subr.mxu0 0.0
    %3172 = vmatpush1.msra.mxu0 %v2659
    %3173 = vmatprep.subr.mxu0 0.0
    %3174 = vmatpush1.msra.mxu0 %v2660
    %3175 = vmatprep.subr.mxu0 0.0
    %3176 = vmatpush1.msra.mxu0 %v2661
    %3177 = vmatprep.subr.mxu0 0.0
    %3178 = vmatpush1.msra.mxu0 %v2662
    %3179 = vmatprep.subr.mxu0 0.0
    %3180 = vmatpush1.msra.mxu0 %v2663
    %3181 = vmatprep.subr.mxu0 0.0
    %3182 = vmatpush1.msra.mxu0 %v2664
    %3183 = vmatprep.subr.mxu0 0.0
    %3184 = vmatpush1.msra.mxu0 %v2665
    %3185 = vmatprep.subr.mxu0 0.0
    %3186 = vmatpush1.msra.mxu0 %v2666
    %3187 = vmatprep.subr.mxu0 0.0
    %3188 = vmatpush1.msra.mxu0 %v2667
    %3189 = vmatprep.subr.mxu0 0.0
    %3190 = vmatpush1.msra.mxu0 0.0
    %3191 = vmatprep.subr.mxu0 0.0
    %3192 = vmatpush1.msra.mxu0 0.0
    %3193 = vmatprep.subr.mxu0 0.0
    %3194 = vmatpush1.msra.mxu0 0.0
    %3195 = vmatprep.subr.mxu0 0.0
    %3196 = vmatpush1.msra.mxu0 0.0
    %3197 = vmatprep.subr.mxu0 0.0
    %3198 = vmatpush1.msra.mxu0 0.0
    %3199 = vmatprep.subr.mxu0 0.0
    %3200 = vmatpush1.msra.mxu0 0.0
    %3201 = vmatprep.subr.mxu0 0.0
    %3202 = vmatpush1.msra.mxu0 0.0
    %3203 = vmatprep.subr.mxu0 0.0
    %3204 = vmatpush1.msra.mxu0 0.0
    %3205 = vmatprep.subr.mxu0 0.0
    %3206 = vmatpush1.msra.mxu0 0.0
    %3207 = vmatprep.subr.mxu0 0.0
    %3208 = vmatpush1.msra.mxu0 0.0
    %3209 = vmatprep.subr.mxu0 0.0
    %3210 = vmatpush1.msra.mxu0 0.0
    %3211 = vmatprep.subr.mxu0 0.0
    %3212 = vmatpush1.msra.mxu0 0.0
    %3213 = vmatprep.subr.mxu0 0.0
    %3214 = vmatpush1.msra.mxu0 0.0
    %3215 = vmatprep.subr.mxu0 0.0
    %3216 = vmatpush1.msra.mxu0 0.0
    %3217 = vmatprep.subr.mxu0 0.0
    %3218 = vmatpush1.msra.mxu0 0.0
    %3219 = vmatprep.subr.mxu0 0.0
    %3220 = vmatpush1.msra.mxu0 0.0
    %3221 = vmatprep.subr.mxu0 0.0
    %3222 = vmatpush1.msra.mxu0 0.0
    %3223 = vmatprep.subr.mxu0 0.0
    %3224 = vmatpush1.msra.mxu0 0.0
    %3225 = vmatprep.subr.mxu0 0.0
    %3226 = vmatpush1.msra.mxu0 0.0
    %3227 = vmatprep.subr.mxu0 0.0
    %3228 = vmatpush1.msra.mxu0 0.0
    %3229 = vmatprep.subr.mxu0 0.0
    %3230 = vmatpush1.msra.mxu0 0.0
    %3231 = vmatprep.subr.mxu0 0.0
    %3232 = vmatpush1.msra.mxu0 0.0
    %3233 = vmatprep.subr.mxu0 0.0
    %3234 = vmatpush1.msra.mxu0 0.0
    %3235 = vmatprep.mubr.f32.mxu0 0.0
    %3236 = vmatmul.mubr.f32.gmra.mrb[0].mxu0 %v2679
    %v3237 = vpop.f32.mrb[0].mxu0
    %v3238 = vadd.f32 %v3168, %v3237
    %v3239 = vpop.f32.mrb[0].mxu0
    %3240 = vdwg.mxu0
    %3241 = vmatprep.subr.mxu0 0.0
    %3242 = vmatpush1.msra.mxu0 %v2824
    %3243 = vmatprep.subr.mxu0 0.0
    %3244 = vmatpush1.msra.mxu0 %v2825
    %3245 = vmatprep.subr.mxu0 0.0
    %3246 = vmatpush1.msra.mxu0 %v2826
    %3247 = vmatprep.subr.mxu0 0.0
    %3248 = vmatpush1.msra.mxu0 %v2827
    %3249 = vmatprep.subr.mxu0 0.0
    %3250 = vmatpush1.msra.mxu0 %v2828
    %3251 = vmatprep.subr.mxu0 0.0
    %3252 = vmatpush1.msra.mxu0 %v2829
    %3253 = vmatprep.subr.mxu0 0.0
    %3254 = vmatpush1.msra.mxu0 %v2830
    %3255 = vmatprep.subr.mxu0 0.0
    %3256 = vmatpush1.msra.mxu0 %v2831
    %3257 = vmatprep.subr.mxu0 0.0
    %3258 = vmatpush1.msra.mxu0 %v2832
    %3259 = vmatprep.subr.mxu0 0.0
    %3260 = vmatpush1.msra.mxu0 0.0
    %3261 = vmatprep.subr.mxu0 0.0
    %3262 = vmatpush1.msra.mxu0 0.0
    %3263 = vmatprep.subr.mxu0 0.0
    %3264 = vmatpush1.msra.mxu0 0.0
    %3265 = vmatprep.subr.mxu0 0.0
    %3266 = vmatpush1.msra.mxu0 0.0
    %3267 = vmatprep.subr.mxu0 0.0
    %3268 = vmatpush1.msra.mxu0 0.0
    %3269 = vmatprep.subr.mxu0 0.0
    %3270 = vmatpush1.msra.mxu0 0.0
    %3271 = vmatprep.subr.mxu0 0.0
    %3272 = vmatpush1.msra.mxu0 0.0
    %3273 = vmatprep.subr.mxu0 0.0
    %3274 = vmatpush1.msra.mxu0 0.0
    %3275 = vmatprep.subr.mxu0 0.0
    %3276 = vmatpush1.msra.mxu0 0.0
    %3277 = vmatprep.subr.mxu0 0.0
    %3278 = vmatpush1.msra.mxu0 0.0
    %3279 = vmatprep.subr.mxu0 0.0
    %3280 = vmatpush1.msra.mxu0 0.0
    %3281 = vmatprep.subr.mxu0 0.0
    %3282 = vmatpush1.msra.mxu0 0.0
    %3283 = vmatprep.subr.mxu0 0.0
    %3284 = vmatpush1.msra.mxu0 0.0
    %3285 = vmatprep.subr.mxu0 0.0
    %3286 = vmatpush1.msra.mxu0 0.0
    %3287 = vmatprep.subr.mxu0 0.0
    %3288 = vmatpush1.msra.mxu0 0.0
    %3289 = vmatprep.subr.mxu0 0.0
    %3290 = vmatpush1.msra.mxu0 0.0
    %3291 = vmatprep.subr.mxu0 0.0
    %3292 = vmatpush1.msra.mxu0 0.0
    %3293 = vmatprep.subr.mxu0 0.0
    %3294 = vmatpush1.msra.mxu0 0.0
    %3295 = vmatprep.subr.mxu0 0.0
    %3296 = vmatpush1.msra.mxu0 0.0
    %3297 = vmatprep.subr.mxu0 0.0
    %3298 = vmatpush1.msra.mxu0 0.0
    %3299 = vmatprep.subr.mxu0 0.0
    %3300 = vmatpush1.msra.mxu0 0.0
    %3301 = vmatprep.subr.mxu0 0.0
    %3302 = vmatpush1.msra.mxu0 0.0
    %3303 = vmatprep.subr.mxu0 0.0
    %3304 = vmatpush1.msra.mxu0 0.0
    %3305 = vmatprep.mubr.f32.mxu0 0.0
    %3306 = vmatmul.mubr.f32.gmra.mrb[0].mxu0 %v2923
    %v3307 = vpop.f32.mrb[0].mxu0
    %v3308 = vadd.f32 0.0, %v3307
    %v3309 = vpop.f32.mrb[0].mxu0
    %3310 = vdwg.mxu0
    %v3311 = vadd.f32 %v3238, %v3308
    %3312 = vmatprep.subr.mxu0 0.0
    %3313 = vmatpush1.msra.mxu0 %v2910
    %3314 = vmatprep.subr.mxu0 0.0
    %3315 = vmatpush1.msra.mxu0 %v2911
    %3316 = vmatprep.subr.mxu0 0.0
    %3317 = vmatpush1.msra.mxu0 %v2912
    %3318 = vmatprep.subr.mxu0 0.0
    %3319 = vmatpush1.msra.mxu0 %v2913
    %3320 = vmatprep.subr.mxu0 0.0
    %3321 = vmatpush1.msra.mxu0 %v2914
    %3322 = vmatprep.subr.mxu0 0.0
    %3323 = vmatpush1.msra.mxu0 %v2915
    %3324 = vmatprep.subr.mxu0 0.0
    %3325 = vmatpush1.msra.mxu0 %v2916
    %3326 = vmatprep.subr.mxu0 0.0
    %3327 = vmatpush1.msra.mxu0 %v2917
    %3328 = vmatprep.subr.mxu0 0.0
    %3329 = vmatpush1.msra.mxu0 %v2918
    %3330 = vmatprep.subr.mxu0 0.0
    %3331 = vmatpush1.msra.mxu0 0.0
    %3332 = vmatprep.subr.mxu0 0.0
    %3333 = vmatpush1.msra.mxu0 0.0
    %3334 = vmatprep.subr.mxu0 0.0
    %3335 = vmatpush1.msra.mxu0 0.0
    %3336 = vmatprep.subr.mxu0 0.0
    %3337 = vmatpush1.msra.mxu0 0.0
    %3338 = vmatprep.subr.mxu0 0.0
    %3339 = vmatpush1.msra.mxu0 0.0
    %3340 = vmatprep.subr.mxu0 0.0
    %3341 = vmatpush1.msra.mxu0 0.0
    %3342 = vmatprep.subr.mxu0 0.0
    %3343 = vmatpush1.msra.mxu0 0.0
    %3344 = vmatprep.subr.mxu0 0.0
    %3345 = vmatpush1.msra.mxu0 0.0
    %3346 = vmatprep.subr.mxu0 0.0
    %3347 = vmatpush1.msra.mxu0 0.0
    %3348 = vmatprep.subr.mxu0 0.0
    %3349 = vmatpush1.msra.mxu0 0.0
    %3350 = vmatprep.subr.mxu0 0.0
    %3351 = vmatpush1.msra.mxu0 0.0
    %3352 = vmatprep.subr.mxu0 0.0
    %3353 = vmatpush1.msra.mxu0 0.0
    %3354 = vmatprep.subr.mxu0 0.0
    %3355 = vmatpush1.msra.mxu0 0.0
    %3356 = vmatprep.subr.mxu0 0.0
    %3357 = vmatpush1.msra.mxu0 0.0
    %3358 = vmatprep.subr.mxu0 0.0
    %3359 = vmatpush1.msra.mxu0 0.0
    %3360 = vmatprep.subr.mxu0 0.0
    %3361 = vmatpush1.msra.mxu0 0.0
    %3362 = vmatprep.subr.mxu0 0.0
    %3363 = vmatpush1.msra.mxu0 0.0
    %3364 = vmatprep.subr.mxu0 0.0
    %3365 = vmatpush1.msra.mxu0 0.0
    %3366 = vmatprep.subr.mxu0 0.0
    %3367 = vmatpush1.msra.mxu0 0.0
    %3368 = vmatprep.subr.mxu0 0.0
    %3369 = vmatpush1.msra.mxu0 0.0
    %3370 = vmatprep.subr.mxu0 0.0
    %3371 = vmatpush1.msra.mxu0 0.0
    %3372 = vmatprep.subr.mxu0 0.0
    %3373 = vmatpush1.msra.mxu0 0.0
    %3374 = vmatprep.subr.mxu0 0.0
    %3375 = vmatpush1.msra.mxu0 0.0
    %3376 = vmatprep.mubr.f32.mxu0 0.0
    %3377 = vmatmul.mubr.f32.gmra.mrb[0].mxu0 %v3008
    %v3378 = vpop.f32.mrb[0].mxu0
    %v3379 = vadd.f32 0.0, %v3378
    %v3380 = vpop.f32.mrb[0].mxu0
    %3381 = vdwg.mxu0
    %v3382 = vadd.f32 %v3311, %v3379
    %v3383 = vrot.slane %v2583, 4
    %v3384 = vrot.slane %v2584, 4
    %v3385 = vsel %vm178, %v3383, %v3384
    %v3386 = vsel %vm2677, %v3385, 0
    %3388 = vmatprep.subr.mxu0 0.0
    %3389 = vmatpush1.msra.mxu0 %v2996
    %3390 = vmatprep.subr.mxu0 0.0
    %3391 = vmatpush1.msra.mxu0 %v2997
    %3392 = vmatprep.subr.mxu0 0.0
    %3393 = vmatpush1.msra.mxu0 %v2998
    %3394 = vmatprep.subr.mxu0 0.0
    %3395 = vmatpush1.msra.mxu0 %v2999
    %3396 = vmatprep.subr.mxu0 0.0
    %3397 = vmatpush1.msra.mxu0 %v3000
    %3398 = vmatprep.subr.mxu0 0.0
    %3399 = vmatpush1.msra.mxu0 %v3001
    %3400 = vmatprep.subr.mxu0 0.0
    %3401 = vmatpush1.msra.mxu0 %v3002
    %3402 = vmatprep.subr.mxu0 0.0
    %3403 = vmatpush1.msra.mxu0 %v3003
    %3404 = vmatprep.subr.mxu0 0.0
    %3405 = vmatpush1.msra.mxu0 %v3004
    %3406 = vmatprep.subr.mxu0 0.0
    %3407 = vmatpush1.msra.mxu0 0.0
    %3408 = vmatprep.subr.mxu0 0.0
    %3409 = vmatpush1.msra.mxu0 0.0
    %3410 = vmatprep.subr.mxu0 0.0
    %3411 = vmatpush1.msra.mxu0 0.0
    %3412 = vmatprep.subr.mxu0 0.0
    %3413 = vmatpush1.msra.mxu0 0.0
    %3414 = vmatprep.subr.mxu0 0.0
    %3415 = vmatpush1.msra.mxu0 0.0
    %3416 = vmatprep.subr.mxu0 0.0
    %3417 = vmatpush1.msra.mxu0 0.0
    %3418 = vmatprep.subr.mxu0 0.0
    %3419 = vmatpush1.msra.mxu0 0.0
    %3420 = vmatprep.subr.mxu0 0.0
    %3421 = vmatpush1.msra.mxu0 0.0
    %3422 = vmatprep.subr.mxu0 0.0
    %3423 = vmatpush1.msra.mxu0 0.0
    %3424 = vmatprep.subr.mxu0 0.0
    %3425 = vmatpush1.msra.mxu0 0.0
    %3426 = vmatprep.subr.mxu0 0.0
    %3427 = vmatpush1.msra.mxu0 0.0
    %3428 = vmatprep.subr.mxu0 0.0
    %3429 = vmatpush1.msra.mxu0 0.0
    %3430 = vmatprep.subr.mxu0 0.0
    %3431 = vmatpush1.msra.mxu0 0.0
    %3432 = vmatprep.subr.mxu0 0.0
    %3433 = vmatpush1.msra.mxu0 0.0
    %3434 = vmatprep.subr.mxu0 0.0
    %3435 = vmatpush1.msra.mxu0 0.0
    %3436 = vmatprep.subr.mxu0 0.0
    %3437 = vmatpush1.msra.mxu0 0.0
    %3438 = vmatprep.subr.mxu0 0.0
    %3439 = vmatpush1.msra.mxu0 0.0
    %3440 = vmatprep.subr.mxu0 0.0
    %3441 = vmatpush1.msra.mxu0 0.0
    %3442 = vmatprep.subr.mxu0 0.0
    %3443 = vmatpush1.msra.mxu0 0.0
    %3444 = vmatprep.subr.mxu0 0.0
    %3445 = vmatpush1.msra.mxu0 0.0
    %3446 = vmatprep.subr.mxu0 0.0
    %3447 = vmatpush1.msra.mxu0 0.0
    %3448 = vmatprep.subr.mxu0 0.0
    %3449 = vmatpush1.msra.mxu0 0.0
    %3450 = vmatprep.subr.mxu0 0.0
    %3451 = vmatpush1.msra.mxu0 0.0
    %3452 = vmatprep.mubr.f32.mxu0 0.0
    %3453 = vmatmul.mubr.f32.gmra.mrb[0].mxu0 %v3386
    %v3454 = vpop.f32.mrb[0].mxu0
    %v3455 = vadd.f32 0.0, %v3454
    %v3456 = vpop.f32.mrb[0].mxu0
    %3457 = vdwg.mxu0
    %v3458 = vadd.f32 %v3382, %v3455
    %v3459 = vadd.f32 %v3458, %v3084
    %v3460 = vrot.slane %v3459, 4
    %v3461 = vadd.f32 %v3459, %v3460
    %v3462 = vrot.slane %v3461, 2
    %v3463 = vadd.f32 %v3461, %v3462
    %v3464 = vrot.slane %v3463, 1
    %v3465 = vadd.f32 %v3463, %v3464
    %v3466 = vadd.f32 %v3092, %v3465
    %v3467 = vmul.f32 %v3459, %v3459
    %v3468 = vrot.slane %v3467, 4
    %v3469 = vadd.f32 %v3467, %v3468
    %v3470 = vrot.slane %v3469, 2
    %v3471 = vadd.f32 %v3469, %v3470
    %v3472 = vrot.slane %v3471, 1
    %v3473 = vadd.f32 %v3471, %v3472
    %v3474 = vadd.f32 %v3100, %v3473
    %v3475 = vld [vmem:[%s11] sm:$0xff]
    %v3476 = vld [vmem:[%s11 + $0x8] sm:$0xff]
    %v3477 = vld [vmem:[%s11 + $0x10] sm:$0xff]
    %v3478 = vld [vmem:[%s11 + $0x18] sm:$0xff]
    %v3479 = vld [vmem:[%s11 + $0x20] sm:$0xff]
    %v3480 = vld [vmem:[%s11 + $0x28] sm:$0xff]
    %v3481 = vld [vmem:[%s11 + $0x30] sm:$0xff]
    %v3482 = vld [vmem:[%s11 + $0x38] sm:$0xff]
    %v3483 = vld [vmem:[%s11 + $0x40] sm:$0xff]
    %v3484 = vld [vmem:[%s11 + $0x48] sm:$0xff]
    %v3485 = vld [vmem:[%s11 + $0x50] sm:$0xff]
    %v3486 = vld [vmem:[%s11 + $0x58] sm:$0xff]
    %v3487 = vld [vmem:[%s11 + $0x60] sm:$0xff]
    %v3488 = vld [vmem:[%s11 + $0x68] sm:$0xff]
    %v3489 = vld [vmem:[%s11 + $0x70] sm:$0xff]
    %v3490 = vld [vmem:[%s11 + $0x78] sm:$0xff]
    %3491 = vmatprep.subr.mxu0 0.0
    %3492 = vmatpush1.msra.mxu0 %v3475
    %3493 = vmatprep.subr.mxu0 0.0
    %3494 = vmatpush1.msra.mxu0 %v3476
    %3495 = vmatprep.subr.mxu0 0.0
    %3496 = vmatpush1.msra.mxu0 %v3477
    %3497 = vmatprep.subr.mxu0 0.0
    %3498 = vmatpush1.msra.mxu0 %v3478
    %3499 = vmatprep.subr.mxu0 0.0
    %3500 = vmatpush1.msra.mxu0 %v3479
    %3501 = vmatprep.subr.mxu0 0.0
    %3502 = vmatpush1.msra.mxu0 %v3480
    %3503 = vmatprep.subr.mxu0 0.0
    %3504 = vmatpush1.msra.mxu0 %v3481
    %3505 = vmatprep.subr.mxu0 0.0
    %3506 = vmatpush1.msra.mxu0 %v3482
    %3507 = vmatprep.subr.mxu0 0.0
    %3508 = vmatpush1.msra.mxu0 %v3483
    %3509 = vmatprep.subr.mxu0 0.0
    %3510 = vmatpush1.msra.mxu0 %v3484
    %3511 = vmatprep.subr.mxu0 0.0
    %3512 = vmatpush1.msra.mxu0 %v3485
    %3513 = vmatprep.subr.mxu0 0.0
    %3514 = vmatpush1.msra.mxu0 %v3486
    %3515 = vmatprep.subr.mxu0 0.0
    %3516 = vmatpush1.msra.mxu0 %v3487
    %3517 = vmatprep.subr.mxu0 0.0
    %3518 = vmatpush1.msra.mxu0 %v3488
    %3519 = vmatprep.subr.mxu0 0.0
    %3520 = vmatpush1.msra.mxu0 %v3489
    %3521 = vmatprep.subr.mxu0 0.0
    %3522 = vmatpush1.msra.mxu0 %v3490
    %3523 = vmatprep.subr.mxu0 0.0
    %3524 = vmatpush1.msra.mxu0 0.0
    %3525 = vmatprep.subr.mxu0 0.0
    %3526 = vmatpush1.msra.mxu0 0.0
    %3527 = vmatprep.subr.mxu0 0.0
    %3528 = vmatpush1.msra.mxu0 0.0
    %3529 = vmatprep.subr.mxu0 0.0
    %3530 = vmatpush1.msra.mxu0 0.0
    %3531 = vmatprep.subr.mxu0 0.0
    %3532 = vmatpush1.msra.mxu0 0.0
    %3533 = vmatprep.subr.mxu0 0.0
    %3534 = vmatpush1.msra.mxu0 0.0
    %3535 = vmatprep.subr.mxu0 0.0
    %3536 = vmatpush1.msra.mxu0 0.0
    %3537 = vmatprep.subr.mxu0 0.0
    %3538 = vmatpush1.msra.mxu0 0.0
    %3539 = vmatprep.subr.mxu0 0.0
    %3540 = vmatpush1.msra.mxu0 0.0
    %3541 = vmatprep.subr.mxu0 0.0
    %3542 = vmatpush1.msra.mxu0 0.0
    %3543 = vmatprep.subr.mxu0 0.0
    %3544 = vmatpush1.msra.mxu0 0.0
    %3545 = vmatprep.subr.mxu0 0.0
    %3546 = vmatpush1.msra.mxu0 0.0
    %3547 = vmatprep.subr.mxu0 0.0
    %3548 = vmatpush1.msra.mxu0 0.0
    %3549 = vmatprep.subr.mxu0 0.0
    %3550 = vmatpush1.msra.mxu0 0.0
    %3551 = vmatprep.subr.mxu0 0.0
    %3552 = vmatpush1.msra.mxu0 0.0
    %3553 = vmatprep.subr.mxu0 0.0
    %3554 = vmatpush1.msra.mxu0 0.0
    %3555 = vmatprep.mubr.f32.mxu0 0.0
    %3556 = vmatmul.mubr.f32.gmra.mrb[0].mxu0 %v3466
    %v3557 = vpop.f32.mrb[0].mxu0
    %v3558 = vadd.f32 0.0, %v3557
    %v3559 = vpop.f32.mrb[0].mxu0
    %3560 = vdwg.mxu0
    %v3561 = vrcp.pop 128.0
    %v3562 = vmul.f32 %v3558, %v3561
    %3563 = vmatprep.subr.mxu0 0.0
    %3564 = vmatpush1.msra.mxu0 %v3475
    %3565 = vmatprep.subr.mxu0 0.0
    %3566 = vmatpush1.msra.mxu0 %v3476
    %3567 = vmatprep.subr.mxu0 0.0
    %3568 = vmatpush1.msra.mxu0 %v3477
    %3569 = vmatprep.subr.mxu0 0.0
    %3570 = vmatpush1.msra.mxu0 %v3478
    %3571 = vmatprep.subr.mxu0 0.0
    %3572 = vmatpush1.msra.mxu0 %v3479
    %3573 = vmatprep.subr.mxu0 0.0
    %3574 = vmatpush1.msra.mxu0 %v3480
    %3575 = vmatprep.subr.mxu0 0.0
    %3576 = vmatpush1.msra.mxu0 %v3481
    %3577 = vmatprep.subr.mxu0 0.0
    %3578 = vmatpush1.msra.mxu0 %v3482
    %3579 = vmatprep.subr.mxu0 0.0
    %3580 = vmatpush1.msra.mxu0 %v3483
    %3581 = vmatprep.subr.mxu0 0.0
    %3582 = vmatpush1.msra.mxu0 %v3484
    %3583 = vmatprep.subr.mxu0 0.0
    %3584 = vmatpush1.msra.mxu0 %v3485
    %3585 = vmatprep.subr.mxu0 0.0
    %3586 = vmatpush1.msra.mxu0 %v3486
    %3587 = vmatprep.subr.mxu0 0.0
    %3588 = vmatpush1.msra.mxu0 %v3487
    %3589 = vmatprep.subr.mxu0 0.0
    %3590 = vmatpush1.msra.mxu0 %v3488
    %3591 = vmatprep.subr.mxu0 0.0
    %3592 = vmatpush1.msra.mxu0 %v3489
    %3593 = vmatprep.subr.mxu0 0.0
    %3594 = vmatpush1.msra.mxu0 %v3490
    %3595 = vmatprep.subr.mxu0 0.0
    %3596 = vmatpush1.msra.mxu0 0.0
    %3597 = vmatprep.subr.mxu0 0.0
    %3598 = vmatpush1.msra.mxu0 0.0
    %3599 = vmatprep.subr.mxu0 0.0
    %3600 = vmatpush1.msra.mxu0 0.0
    %3601 = vmatprep.subr.mxu0 0.0
    %3602 = vmatpush1.msra.mxu0 0.0
    %3603 = vmatprep.subr.mxu0 0.0
    %3604 = vmatpush1.msra.mxu0 0.0
    %3605 = vmatprep.subr.mxu0 0.0
    %3606 = vmatpush1.msra.mxu0 0.0
    %3607 = vmatprep.subr.mxu0 0.0
    %3608 = vmatpush1.msra.mxu0 0.0
    %3609 = vmatprep.subr.mxu0 0.0
    %3610 = vmatpush1.msra.mxu0 0.0
    %3611 = vmatprep.subr.mxu0 0.0
    %3612 = vmatpush1.msra.mxu0 0.0
    %3613 = vmatprep.subr.mxu0 0.0
    %3614 = vmatpush1.msra.mxu0 0.0
    %3615 = vmatprep.subr.mxu0 0.0
    %3616 = vmatpush1.msra.mxu0 0.0
    %3617 = vmatprep.subr.mxu0 0.0
    %3618 = vmatpush1.msra.mxu0 0.0
    %3619 = vmatprep.subr.mxu0 0.0
    %3620 = vmatpush1.msra.mxu0 0.0
    %3621 = vmatprep.subr.mxu0 0.0
    %3622 = vmatpush1.msra.mxu0 0.0
    %3623 = vmatprep.subr.mxu0 0.0
    %3624 = vmatpush1.msra.mxu0 0.0
    %3625 = vmatprep.subr.mxu0 0.0
    %3626 = vmatpush1.msra.mxu0 0.0
    %3627 = vmatprep.mubr.f32.mxu0 0.0
    %3628 = vmatmul.mubr.f32.gmra.mrb[0].mxu0 %v3474
    %v3629 = vpop.f32.mrb[0].mxu0
    %v3630 = vadd.f32 0.0, %v3629
    %v3631 = vpop.f32.mrb[0].mxu0
    %3632 = vdwg.mxu0
    %v3633 = vmul.f32 %v3630, %v3561
    %v3634 = vmul.f32 %v3562, %v3562
    %v3635 = vsub.f32 %v3633, %v3634
    %v3636 = vld [vmem:[%s9] sm:$0x1]
    %v3637 = vadd.f32 %v3635, 1e-05
    %v3638 = vrsqrt.pop %v3637
    %v3639 = vmul.f32 %v3636, %v3638
    %v3640 = vld [vmem:[%s10] sm:$0x1]
    %v3641 = vmul.f32 %v3562, %v3639
    %v3642 = vsub.f32 %v3640, %v3641
    %v3644 = vsel %vm731, %v3639, 0
    %3646 = vmatprep.subr.mxu0 0.0
    %3647 = vmatpush1.msra.mxu0 %v65
    %3648 = vmatprep.subr.mxu0 0.0
    %3649 = vmatpush1.msra.mxu0 %v66
    %3650 = vmatprep.subr.mxu0 0.0
    %3651 = vmatpush1.msra.mxu0 0.0
    %3652 = vmatprep.subr.mxu0 0.0
    %3653 = vmatpush1.msra.mxu0 0.0
    %3654 = vmatprep.subr.mxu0 0.0
    %3655 = vmatpush1.msra.mxu0 0.0
    %3656 = vmatprep.subr.mxu0 0.0
    %3657 = vmatpush1.msra.mxu0 0.0
    %3658 = vmatprep.subr.mxu0 0.0
    %3659 = vmatpush1.msra.mxu0 0.0
    %3660 = vmatprep.subr.mxu0 0.0
    %3661 = vmatpush1.msra.mxu0 0.0
    %3662 = vmatprep.subr.mxu0 0.0
    %3663 = vmatpush1.msra.mxu0 0.0
    %3664 = vmatprep.subr.mxu0 0.0
    %3665 = vmatpush1.msra.mxu0 0.0
    %3666 = vmatprep.subr.mxu0 0.0
    %3667 = vmatpush1.msra.mxu0 0.0
    %3668 = vmatprep.subr.mxu0 0.0
    %3669 = vmatpush1.msra.mxu0 0.0
    %3670 = vmatprep.subr.mxu0 0.0
    %3671 = vmatpush1.msra.mxu0 0.0
    %3672 = vmatprep.subr.mxu0 0.0
    %3673 = vmatpush1.msra.mxu0 0.0
    %3674 = vmatprep.subr.mxu0 0.0
    %3675 = vmatpush1.msra.mxu0 0.0
    %3676 = vmatprep.subr.mxu0 0.0
    %3677 = vmatpush1.msra.mxu0 0.0
    %3678 = vmatprep.subr.mxu0 0.0
    %3679 = vmatpush1.msra.mxu0 0.0
    %3680 = vmatprep.subr.mxu0 0.0
    %3681 = vmatpush1.msra.mxu0 0.0
    %3682 = vmatprep.subr.mxu0 0.0
    %3683 = vmatpush1.msra.mxu0 0.0
    %3684 = vmatprep.subr.mxu0 0.0
    %3685 = vmatpush1.msra.mxu0 0.0
    %3686 = vmatprep.subr.mxu0 0.0
    %3687 = vmatpush1.msra.mxu0 0.0
    %3688 = vmatprep.subr.mxu0 0.0
    %3689 = vmatpush1.msra.mxu0 0.0
    %3690 = vmatprep.subr.mxu0 0.0
    %3691 = vmatpush1.msra.mxu0 0.0
    %3692 = vmatprep.subr.mxu0 0.0
    %3693 = vmatpush1.msra.mxu0 0.0
    %3694 = vmatprep.subr.mxu0 0.0
    %3695 = vmatpush1.msra.mxu0 0.0
    %3696 = vmatprep.subr.mxu0 0.0
    %3697 = vmatpush1.msra.mxu0 0.0
    %3698 = vmatprep.subr.mxu0 0.0
    %3699 = vmatpush1.msra.mxu0 0.0
    %3700 = vmatprep.subr.mxu0 0.0
    %3701 = vmatpush1.msra.mxu0 0.0
    %3702 = vmatprep.subr.mxu0 0.0
    %3703 = vmatpush1.msra.mxu0 0.0
    %3704 = vmatprep.subr.mxu0 0.0
    %3705 = vmatpush1.msra.mxu0 0.0
    %3706 = vmatprep.subr.mxu0 0.0
    %3707 = vmatpush1.msra.mxu0 0.0
    %3708 = vmatprep.subr.mxu0 0.0
    %3709 = vmatpush1.msra.mxu0 0.0
    %3710 = vmatprep.mubr.f32.mxu0 0.0
    %3711 = vmatmul.mubr.f32.gmra.mrb[0].mxu0 %v3644
    %v3712 = vpop.f32.mrb[0].mxu0
    %v3713 = vadd.f32 0.0, %v3712
    %v3714 = vpop.f32.mrb[0].mxu0
    %3715 = vdwg.mxu0
    %v3717 = vsel %vm731, %v3642, 0
    %3719 = vmatprep.subr.mxu0 0.0
    %3720 = vmatpush1.msra.mxu0 %v65
    %3721 = vmatprep.subr.mxu0 0.0
    %3722 = vmatpush1.msra.mxu0 %v66
    %3723 = vmatprep.subr.mxu0 0.0
    %3724 = vmatpush1.msra.mxu0 0.0
    %3725 = vmatprep.subr.mxu0 0.0
    %3726 = vmatpush1.msra.mxu0 0.0
    %3727 = vmatprep.subr.mxu0 0.0
    %3728 = vmatpush1.msra.mxu0 0.0
    %3729 = vmatprep.subr.mxu0 0.0
    %3730 = vmatpush1.msra.mxu0 0.0
    %3731 = vmatprep.subr.mxu0 0.0
    %3732 = vmatpush1.msra.mxu0 0.0
    %3733 = vmatprep.subr.mxu0 0.0
    %3734 = vmatpush1.msra.mxu0 0.0
    %3735 = vmatprep.subr.mxu0 0.0
    %3736 = vmatpush1.msra.mxu0 0.0
    %3737 = vmatprep.subr.mxu0 0.0
    %3738 = vmatpush1.msra.mxu0 0.0
    %3739 = vmatprep.subr.mxu0 0.0
    %3740 = vmatpush1.msra.mxu0 0.0
    %3741 = vmatprep.subr.mxu0 0.0
    %3742 = vmatpush1.msra.mxu0 0.0
    %3743 = vmatprep.subr.mxu0 0.0
    %3744 = vmatpush1.msra.mxu0 0.0
    %3745 = vmatprep.subr.mxu0 0.0
    %3746 = vmatpush1.msra.mxu0 0.0
    %3747 = vmatprep.subr.mxu0 0.0
    %3748 = vmatpush1.msra.mxu0 0.0
    %3749 = vmatprep.subr.mxu0 0.0
    %3750 = vmatpush1.msra.mxu0 0.0
    %3751 = vmatprep.subr.mxu0 0.0
    %3752 = vmatpush1.msra.mxu0 0.0
    %3753 = vmatprep.subr.mxu0 0.0
    %3754 = vmatpush1.msra.mxu0 0.0
    %3755 = vmatprep.subr.mxu0 0.0
    %3756 = vmatpush1.msra.mxu0 0.0
    %3757 = vmatprep.subr.mxu0 0.0
    %3758 = vmatpush1.msra.mxu0 0.0
    %3759 = vmatprep.subr.mxu0 0.0
    %3760 = vmatpush1.msra.mxu0 0.0
    %3761 = vmatprep.subr.mxu0 0.0
    %3762 = vmatpush1.msra.mxu0 0.0
    %3763 = vmatprep.subr.mxu0 0.0
    %3764 = vmatpush1.msra.mxu0 0.0
    %3765 = vmatprep.subr.mxu0 0.0
    %3766 = vmatpush1.msra.mxu0 0.0
    %3767 = vmatprep.subr.mxu0 0.0
    %3768 = vmatpush1.msra.mxu0 0.0
    %3769 = vmatprep.subr.mxu0 0.0
    %3770 = vmatpush1.msra.mxu0 0.0
    %3771 = vmatprep.subr.mxu0 0.0
    %3772 = vmatpush1.msra.mxu0 0.0
    %3773 = vmatprep.subr.mxu0 0.0
    %3774 = vmatpush1.msra.mxu0 0.0
    %3775 = vmatprep.subr.mxu0 0.0
    %3776 = vmatpush1.msra.mxu0 0.0
    %3777 = vmatprep.subr.mxu0 0.0
    %3778 = vmatpush1.msra.mxu0 0.0
    %3779 = vmatprep.subr.mxu0 0.0
    %3780 = vmatpush1.msra.mxu0 0.0
    %3781 = vmatprep.subr.mxu0 0.0
    %3782 = vmatpush1.msra.mxu0 0.0
    %3783 = vmatprep.mubr.f32.mxu0 0.0
    %3784 = vmatmul.mubr.f32.gmra.mrb[0].mxu0 %v3717
    %v3785 = vpop.f32.mrb[0].mxu0
    %v3786 = vadd.f32 0.0, %v3785
    %v3787 = vpop.f32.mrb[0].mxu0
    %3788 = vdwg.mxu0
    %v3789 = vlaneseq
    %v3790 = vshrl.u32 %v3789, 7
    %v3791 = vsub.s32 0, %v3790
    %v3792 = vrot.slane %v3713, %v3791
    %v3793 = vmul.f32 %v3085, %v3792
    %v3794 = vlaneseq
    %v3795 = vshrl.u32 %v3794, 7
    %v3796 = vsub.s32 0, %v3795
    %v3797 = vrot.slane %v3786, %v3796
    %v3798 = vadd.f32 %v3793, %v3797
    %v3799 = vmax.f32 %v3798, 0.0
    %v3800 = vmul.f32 %v3459, %v3792
    %v3801 = vadd.f32 %v3800, %v3797
    %v3802 = vmax.f32 %v3801, 0.0
    %3804 = vrot.lane.b32.xlu0 %v3799, 64
    %v3805 = vpop.permute.xlu0 %3804
    %v3807 = vmax.f32 %v3799, %v3805
    %3809 = vrot.lane.b32.xlu0 %v3802, 64
    %v3810 = vpop.permute.xlu0 %3809
    %v3812 = vmax.f32 %v3802, %v3810
    %v3813 = vmax.f32 %v3807, %v3812
    %v3814 = vld [vmem:[%s13] sm:$0xff]
    %v3815 = vld [vmem:[%s13 + $0x8] sm:$0xff]
    %v3816 = vld [vmem:[%s13 + $0x10] sm:$0xff]
    %v3817 = vld [vmem:[%s13 + $0x18] sm:$0xff]
    %v3818 = vld [vmem:[%s13 + $0x20] sm:$0xff]
    %v3819 = vld [vmem:[%s13 + $0x28] sm:$0xff]
    %v3820 = vld [vmem:[%s13 + $0x30] sm:$0xff]
    %v3821 = vld [vmem:[%s13 + $0x38] sm:$0xff]
    %v3822 = vld [vmem:[%s13 + $0x40] sm:$0xff]
    %v3823 = vld [vmem:[%s13 + $0x48] sm:$0xff]
    %v3824 = vld [vmem:[%s13 + $0x50] sm:$0xff]
    %v3825 = vld [vmem:[%s13 + $0x58] sm:$0xff]
    %v3826 = vld [vmem:[%s13 + $0x60] sm:$0xff]
    %v3827 = vld [vmem:[%s13 + $0x68] sm:$0xff]
    %v3828 = vld [vmem:[%s13 + $0x70] sm:$0xff]
    %v3829 = vld [vmem:[%s13 + $0x78] sm:$0xff]
    %v3831 = vrot.slane %v3813, 2
    %vm3832 = vcmask 523264
    %v3833 = vsel %vm3832, %v3831, 0
    %3835 = vmatprep.subr.mxu0 0.0
    %3836 = vmatpush1.msra.mxu0 %v3822
    %3837 = vmatprep.subr.mxu0 0.0
    %3838 = vmatpush1.msra.mxu0 %v3823
    %3839 = vmatprep.subr.mxu0 0.0
    %3840 = vmatpush1.msra.mxu0 %v3824
    %3841 = vmatprep.subr.mxu0 0.0
    %3842 = vmatpush1.msra.mxu0 %v3825
    %3843 = vmatprep.subr.mxu0 0.0
    %3844 = vmatpush1.msra.mxu0 %v3826
    %3845 = vmatprep.subr.mxu0 0.0
    %3846 = vmatpush1.msra.mxu0 %v3827
    %3847 = vmatprep.subr.mxu0 0.0
    %3848 = vmatpush1.msra.mxu0 %v3828
    %3849 = vmatprep.subr.mxu0 0.0
    %3850 = vmatpush1.msra.mxu0 %v3829
    %3851 = vmatprep.subr.mxu0 0.0
    %3852 = vmatpush1.msra.mxu0 0.0
    %3853 = vmatprep.subr.mxu0 0.0
    %3854 = vmatpush1.msra.mxu0 0.0
    %3855 = vmatprep.subr.mxu0 0.0
    %3856 = vmatpush1.msra.mxu0 0.0
    %3857 = vmatprep.subr.mxu0 0.0
    %3858 = vmatpush1.msra.mxu0 0.0
    %3859 = vmatprep.subr.mxu0 0.0
    %3860 = vmatpush1.msra.mxu0 0.0
    %3861 = vmatprep.subr.mxu0 0.0
    %3862 = vmatpush1.msra.mxu0 0.0
    %3863 = vmatprep.subr.mxu0 0.0
    %3864 = vmatpush1.msra.mxu0 0.0
    %3865 = vmatprep.subr.mxu0 0.0
    %3866 = vmatpush1.msra.mxu0 0.0
    %3867 = vmatprep.subr.mxu0 0.0
    %3868 = vmatpush1.msra.mxu0 0.0
    %3869 = vmatprep.subr.mxu0 0.0
    %3870 = vmatpush1.msra.mxu0 0.0
    %3871 = vmatprep.subr.mxu0 0.0
    %3872 = vmatpush1.msra.mxu0 0.0
    %3873 = vmatprep.subr.mxu0 0.0
    %3874 = vmatpush1.msra.mxu0 0.0
    %3875 = vmatprep.subr.mxu0 0.0
    %3876 = vmatpush1.msra.mxu0 0.0
    %3877 = vmatprep.subr.mxu0 0.0
    %3878 = vmatpush1.msra.mxu0 0.0
    %3879 = vmatprep.subr.mxu0 0.0
    %3880 = vmatpush1.msra.mxu0 0.0
    %3881 = vmatprep.subr.mxu0 0.0
    %3882 = vmatpush1.msra.mxu0 0.0
    %3883 = vmatprep.subr.mxu0 0.0
    %3884 = vmatpush1.msra.mxu0 0.0
    %3885 = vmatprep.subr.mxu0 0.0
    %3886 = vmatpush1.msra.mxu0 0.0
    %3887 = vmatprep.subr.mxu0 0.0
    %3888 = vmatpush1.msra.mxu0 0.0
    %3889 = vmatprep.subr.mxu0 0.0
    %3890 = vmatpush1.msra.mxu0 0.0
    %3891 = vmatprep.subr.mxu0 0.0
    %3892 = vmatpush1.msra.mxu0 0.0
    %3893 = vmatprep.subr.mxu0 0.0
    %3894 = vmatpush1.msra.mxu0 0.0
    %3895 = vmatprep.subr.mxu0 0.0
    %3896 = vmatpush1.msra.mxu0 0.0
    %3897 = vmatprep.subr.mxu0 0.0
    %3898 = vmatpush1.msra.mxu0 0.0
    %3899 = vmatprep.mubr.f32.mxu0 0.0
    %3900 = vmatmul.mubr.f32.gmra.mrb[0].mxu0 %v3833
    %v3901 = vpop.f32.mrb[0].mxu0
    %v3902 = vadd.f32 0.0, %v3901
    %v3903 = vpop.f32.mrb[0].mxu0
    %3904 = vdwg.mxu0
    %v3905 = vsel %vm3832, %v3813, 0
    %3907 = vmatprep.subr.mxu0 0.0
    %3908 = vmatpush1.msra.mxu0 %v3814
    %3909 = vmatprep.subr.mxu0 0.0
    %3910 = vmatpush1.msra.mxu0 %v3815
    %3911 = vmatprep.subr.mxu0 0.0
    %3912 = vmatpush1.msra.mxu0 %v3816
    %3913 = vmatprep.subr.mxu0 0.0
    %3914 = vmatpush1.msra.mxu0 %v3817
    %3915 = vmatprep.subr.mxu0 0.0
    %3916 = vmatpush1.msra.mxu0 %v3818
    %3917 = vmatprep.subr.mxu0 0.0
    %3918 = vmatpush1.msra.mxu0 %v3819
    %3919 = vmatprep.subr.mxu0 0.0
    %3920 = vmatpush1.msra.mxu0 %v3820
    %3921 = vmatprep.subr.mxu0 0.0
    %3922 = vmatpush1.msra.mxu0 %v3821
    %3923 = vmatprep.subr.mxu0 0.0
    %3924 = vmatpush1.msra.mxu0 0.0
    %3925 = vmatprep.subr.mxu0 0.0
    %3926 = vmatpush1.msra.mxu0 0.0
    %3927 = vmatprep.subr.mxu0 0.0
    %3928 = vmatpush1.msra.mxu0 0.0
    %3929 = vmatprep.subr.mxu0 0.0
    %3930 = vmatpush1.msra.mxu0 0.0
    %3931 = vmatprep.subr.mxu0 0.0
    %3932 = vmatpush1.msra.mxu0 0.0
    %3933 = vmatprep.subr.mxu0 0.0
    %3934 = vmatpush1.msra.mxu0 0.0
    %3935 = vmatprep.subr.mxu0 0.0
    %3936 = vmatpush1.msra.mxu0 0.0
    %3937 = vmatprep.subr.mxu0 0.0
    %3938 = vmatpush1.msra.mxu0 0.0
    %3939 = vmatprep.subr.mxu0 0.0
    %3940 = vmatpush1.msra.mxu0 0.0
    %3941 = vmatprep.subr.mxu0 0.0
    %3942 = vmatpush1.msra.mxu0 0.0
    %3943 = vmatprep.subr.mxu0 0.0
    %3944 = vmatpush1.msra.mxu0 0.0
    %3945 = vmatprep.subr.mxu0 0.0
    %3946 = vmatpush1.msra.mxu0 0.0
    %3947 = vmatprep.subr.mxu0 0.0
    %3948 = vmatpush1.msra.mxu0 0.0
    %3949 = vmatprep.subr.mxu0 0.0
    %3950 = vmatpush1.msra.mxu0 0.0
    %3951 = vmatprep.subr.mxu0 0.0
    %3952 = vmatpush1.msra.mxu0 0.0
    %3953 = vmatprep.subr.mxu0 0.0
    %3954 = vmatpush1.msra.mxu0 0.0
    %3955 = vmatprep.subr.mxu0 0.0
    %3956 = vmatpush1.msra.mxu0 0.0
    %3957 = vmatprep.subr.mxu0 0.0
    %3958 = vmatpush1.msra.mxu0 0.0
    %3959 = vmatprep.subr.mxu0 0.0
    %3960 = vmatpush1.msra.mxu0 0.0
    %3961 = vmatprep.subr.mxu0 0.0
    %3962 = vmatpush1.msra.mxu0 0.0
    %3963 = vmatprep.subr.mxu0 0.0
    %3964 = vmatpush1.msra.mxu0 0.0
    %3965 = vmatprep.subr.mxu0 0.0
    %3966 = vmatpush1.msra.mxu0 0.0
    %3967 = vmatprep.subr.mxu0 0.0
    %3968 = vmatpush1.msra.mxu0 0.0
    %3969 = vmatprep.subr.mxu0 0.0
    %3970 = vmatpush1.msra.mxu0 0.0
    %3971 = vmatprep.mubr.f32.mxu0 0.0
    %3972 = vmatmul.mubr.f32.gmra.mrb[0].mxu0 %v3905
    %v3973 = vpop.f32.mrb[0].mxu0
    %v3974 = vadd.f32 %v3902, %v3973
    %v3975 = vpop.f32.mrb[0].mxu0
    %3976 = vdwg.mxu0
    %v3977 = vld [vmem:[%s13 + $0x80] sm:$0xff]
    %v3978 = vld [vmem:[%s13 + $0x88] sm:$0xff]
    %v3979 = vld [vmem:[%s13 + $0x90] sm:$0xff]
    %v3980 = vld [vmem:[%s13 + $0x98] sm:$0xff]
    %v3981 = vld [vmem:[%s13 + $0xa0] sm:$0xff]
    %v3982 = vld [vmem:[%s13 + $0xa8] sm:$0xff]
    %v3983 = vld [vmem:[%s13 + $0xb0] sm:$0xff]
    %v3984 = vld [vmem:[%s13 + $0xb8] sm:$0xff]
    %v3985 = vrot.slane %v3813, 4
    %v3986 = vsel %vm3832, %v3985, 0
    %3988 = vmatprep.subr.mxu0 0.0
    %3989 = vmatpush1.msra.mxu0 %v3977
    %3990 = vmatprep.subr.mxu0 0.0
    %3991 = vmatpush1.msra.mxu0 %v3978
    %3992 = vmatprep.subr.mxu0 0.0
    %3993 = vmatpush1.msra.mxu0 %v3979
    %3994 = vmatprep.subr.mxu0 0.0
    %3995 = vmatpush1.msra.mxu0 %v3980
    %3996 = vmatprep.subr.mxu0 0.0
    %3997 = vmatpush1.msra.mxu0 %v3981
    %3998 = vmatprep.subr.mxu0 0.0
    %3999 = vmatpush1.msra.mxu0 %v3982
    %4000 = vmatprep.subr.mxu0 0.0
    %4001 = vmatpush1.msra.mxu0 %v3983
    %4002 = vmatprep.subr.mxu0 0.0
    %4003 = vmatpush1.msra.mxu0 %v3984
    %4004 = vmatprep.subr.mxu0 0.0
    %4005 = vmatpush1.msra.mxu0 0.0
    %4006 = vmatprep.subr.mxu0 0.0
    %4007 = vmatpush1.msra.mxu0 0.0
    %4008 = vmatprep.subr.mxu0 0.0
    %4009 = vmatpush1.msra.mxu0 0.0
    %4010 = vmatprep.subr.mxu0 0.0
    %4011 = vmatpush1.msra.mxu0 0.0
    %4012 = vmatprep.subr.mxu0 0.0
    %4013 = vmatpush1.msra.mxu0 0.0
    %4014 = vmatprep.subr.mxu0 0.0
    %4015 = vmatpush1.msra.mxu0 0.0
    %4016 = vmatprep.subr.mxu0 0.0
    %4017 = vmatpush1.msra.mxu0 0.0
    %4018 = vmatprep.subr.mxu0 0.0
    %4019 = vmatpush1.msra.mxu0 0.0
    %4020 = vmatprep.subr.mxu0 0.0
    %4021 = vmatpush1.msra.mxu0 0.0
    %4022 = vmatprep.subr.mxu0 0.0
    %4023 = vmatpush1.msra.mxu0 0.0
    %4024 = vmatprep.subr.mxu0 0.0
    %4025 = vmatpush1.msra.mxu0 0.0
    %4026 = vmatprep.subr.mxu0 0.0
    %4027 = vmatpush1.msra.mxu0 0.0
    %4028 = vmatprep.subr.mxu0 0.0
    %4029 = vmatpush1.msra.mxu0 0.0
    %4030 = vmatprep.subr.mxu0 0.0
    %4031 = vmatpush1.msra.mxu0 0.0
    %4032 = vmatprep.subr.mxu0 0.0
    %4033 = vmatpush1.msra.mxu0 0.0
    %4034 = vmatprep.subr.mxu0 0.0
    %4035 = vmatpush1.msra.mxu0 0.0
    %4036 = vmatprep.subr.mxu0 0.0
    %4037 = vmatpush1.msra.mxu0 0.0
    %4038 = vmatprep.subr.mxu0 0.0
    %4039 = vmatpush1.msra.mxu0 0.0
    %4040 = vmatprep.subr.mxu0 0.0
    %4041 = vmatpush1.msra.mxu0 0.0
    %4042 = vmatprep.subr.mxu0 0.0
    %4043 = vmatpush1.msra.mxu0 0.0
    %4044 = vmatprep.subr.mxu0 0.0
    %4045 = vmatpush1.msra.mxu0 0.0
    %4046 = vmatprep.subr.mxu0 0.0
    %4047 = vmatpush1.msra.mxu0 0.0
    %4048 = vmatprep.subr.mxu0 0.0
    %4049 = vmatpush1.msra.mxu0 0.0
    %4050 = vmatprep.subr.mxu0 0.0
    %4051 = vmatpush1.msra.mxu0 0.0
    %4052 = vmatprep.mubr.f32.mxu0 0.0
    %4053 = vmatmul.mubr.f32.gmra.mrb[0].mxu0 %v3986
    %v4054 = vpop.f32.mrb[0].mxu0
    %v4055 = vadd.f32 0.0, %v4054
    %v4056 = vpop.f32.mrb[0].mxu0
    %4057 = vdwg.mxu0
    %v4058 = vadd.f32 %v3974, %v4055
    %v4059 = vld [vmem:[%s13 + $0xc0] sm:$0xff]
    %v4060 = vld [vmem:[%s13 + $0xc8] sm:$0xff]
    %v4061 = vld [vmem:[%s13 + $0xd0] sm:$0xff]
    %v4062 = vld [vmem:[%s13 + $0xd8] sm:$0xff]
    %v4063 = vld [vmem:[%s13 + $0xe0] sm:$0xff]
    %v4064 = vld [vmem:[%s13 + $0xe8] sm:$0xff]
    %v4065 = vld [vmem:[%s13 + $0xf0] sm:$0xff]
    %v4066 = vld [vmem:[%s13 + $0xf8] sm:$0xff]
    %v4067 = vrot.slane %v3813, 6
    %v4068 = vsel %vm3832, %v4067, 0
    %4070 = vmatprep.subr.mxu0 0.0
    %4071 = vmatpush1.msra.mxu0 %v4059
    %4072 = vmatprep.subr.mxu0 0.0
    %4073 = vmatpush1.msra.mxu0 %v4060
    %4074 = vmatprep.subr.mxu0 0.0
    %4075 = vmatpush1.msra.mxu0 %v4061
    %4076 = vmatprep.subr.mxu0 0.0
    %4077 = vmatpush1.msra.mxu0 %v4062
    %4078 = vmatprep.subr.mxu0 0.0
    %4079 = vmatpush1.msra.mxu0 %v4063
    %4080 = vmatprep.subr.mxu0 0.0
    %4081 = vmatpush1.msra.mxu0 %v4064
    %4082 = vmatprep.subr.mxu0 0.0
    %4083 = vmatpush1.msra.mxu0 %v4065
    %4084 = vmatprep.subr.mxu0 0.0
    %4085 = vmatpush1.msra.mxu0 %v4066
    %4086 = vmatprep.subr.mxu0 0.0
    %4087 = vmatpush1.msra.mxu0 0.0
    %4088 = vmatprep.subr.mxu0 0.0
    %4089 = vmatpush1.msra.mxu0 0.0
    %4090 = vmatprep.subr.mxu0 0.0
    %4091 = vmatpush1.msra.mxu0 0.0
    %4092 = vmatprep.subr.mxu0 0.0
    %4093 = vmatpush1.msra.mxu0 0.0
    %4094 = vmatprep.subr.mxu0 0.0
    %4095 = vmatpush1.msra.mxu0 0.0
    %4096 = vmatprep.subr.mxu0 0.0
    %4097 = vmatpush1.msra.mxu0 0.0
    %4098 = vmatprep.subr.mxu0 0.0
    %4099 = vmatpush1.msra.mxu0 0.0
    %4100 = vmatprep.subr.mxu0 0.0
    %4101 = vmatpush1.msra.mxu0 0.0
    %4102 = vmatprep.subr.mxu0 0.0
    %4103 = vmatpush1.msra.mxu0 0.0
    %4104 = vmatprep.subr.mxu0 0.0
    %4105 = vmatpush1.msra.mxu0 0.0
    %4106 = vmatprep.subr.mxu0 0.0
    %4107 = vmatpush1.msra.mxu0 0.0
    %4108 = vmatprep.subr.mxu0 0.0
    %4109 = vmatpush1.msra.mxu0 0.0
    %4110 = vmatprep.subr.mxu0 0.0
    %4111 = vmatpush1.msra.mxu0 0.0
    %4112 = vmatprep.subr.mxu0 0.0
    %4113 = vmatpush1.msra.mxu0 0.0
    %4114 = vmatprep.subr.mxu0 0.0
    %4115 = vmatpush1.msra.mxu0 0.0
    %4116 = vmatprep.subr.mxu0 0.0
    %4117 = vmatpush1.msra.mxu0 0.0
    %4118 = vmatprep.subr.mxu0 0.0
    %4119 = vmatpush1.msra.mxu0 0.0
    %4120 = vmatprep.subr.mxu0 0.0
    %4121 = vmatpush1.msra.mxu0 0.0
    %4122 = vmatprep.subr.mxu0 0.0
    %4123 = vmatpush1.msra.mxu0 0.0
    %4124 = vmatprep.subr.mxu0 0.0
    %4125 = vmatpush1.msra.mxu0 0.0
    %4126 = vmatprep.subr.mxu0 0.0
    %4127 = vmatpush1.msra.mxu0 0.0
    %4128 = vmatprep.subr.mxu0 0.0
    %4129 = vmatpush1.msra.mxu0 0.0
    %4130 = vmatprep.subr.mxu0 0.0
    %4131 = vmatpush1.msra.mxu0 0.0
    %4132 = vmatprep.subr.mxu0 0.0
    %4133 = vmatpush1.msra.mxu0 0.0
    %4134 = vmatprep.mubr.f32.mxu0 0.0
    %4135 = vmatmul.mubr.f32.gmra.mrb[0].mxu0 %v4068
    %v4136 = vpop.f32.mrb[0].mxu0
    %v4137 = vadd.f32 0.0, %v4136
    %v4138 = vpop.f32.mrb[0].mxu0
    %4139 = vdwg.mxu0
    %v4140 = vadd.f32 %v4058, %v4137
    %v4141 = vld [vmem:[%s14] sm:$0x1]
    %v4143 = vlaneseq
    %v4144 = vshrl.u32 %v4143, 7
    %v4145 = vsub.s32 0, %v4144
    %v4146 = vrot.slane %v4141, %v4145
    %v4148 = vadd.f32 %v4140, %v4146
    %v4149 = vmax.f32 %v4148, 0.0
    %v4150 = vld [vmem:[%s15] sm:$0xff]
    %v4151 = vld [vmem:[%s15 + $0x8] sm:$0xff]
    %v4152 = vld [vmem:[%s15 + $0x10] sm:$0xff]
    %v4153 = vld [vmem:[%s15 + $0x18] sm:$0xff]
    %v4154 = vld [vmem:[%s15 + $0x20] sm:$0xff]
    %v4155 = vld [vmem:[%s15 + $0x28] sm:$0xff]
    %v4156 = vld [vmem:[%s15 + $0x30] sm:$0xff]
    %v4157 = vld [vmem:[%s15 + $0x38] sm:$0xff]
    %v4158 = vld [vmem:[%s15 + $0x40] sm:$0xff]
    %v4159 = vld [vmem:[%s15 + $0x48] sm:$0xff]
    %v4160 = vld [vmem:[%s15 + $0x50] sm:$0xff]
    %v4161 = vld [vmem:[%s15 + $0x58] sm:$0xff]
    %v4162 = vld [vmem:[%s15 + $0x60] sm:$0xff]
    %v4163 = vld [vmem:[%s15 + $0x68] sm:$0xff]
    %v4164 = vld [vmem:[%s15 + $0x70] sm:$0xff]
    %v4165 = vld [vmem:[%s16] sm:$0x1]
    %v4167 = vlaneseq
    %v4168 = vshrl.u32 %v4167, 7
    %v4169 = vsub.s32 0, %v4168
    %v4170 = vrot.slane %v4165, %v4169
    %vm4172 = vcmask 982016
    %v4174 = vsel %vm4172, %v4149, 0
    %4176 = vmatprep.subr.mxu0 0.0
    %4177 = vmatpush1.msra.mxu0 %v4150
    %4178 = vmatprep.subr.mxu0 0.0
    %4179 = vmatpush1.msra.mxu0 %v4151
    %4180 = vmatprep.subr.mxu0 0.0
    %4181 = vmatpush1.msra.mxu0 %v4152
    %4182 = vmatprep.subr.mxu0 0.0
    %4183 = vmatpush1.msra.mxu0 %v4153
    %4184 = vmatprep.subr.mxu0 0.0
    %4185 = vmatpush1.msra.mxu0 %v4154
    %4186 = vmatprep.subr.mxu0 0.0
    %4187 = vmatpush1.msra.mxu0 %v4155
    %4188 = vmatprep.subr.mxu0 0.0
    %4189 = vmatpush1.msra.mxu0 %v4156
    %4190 = vmatprep.subr.mxu0 0.0
    %4191 = vmatpush1.msra.mxu0 %v4157
    %4192 = vmatprep.subr.mxu0 0.0
    %4193 = vmatpush1.msra.mxu0 %v4158
    %4194 = vmatprep.subr.mxu0 0.0
    %4195 = vmatpush1.msra.mxu0 %v4159
    %4196 = vmatprep.subr.mxu0 0.0
    %4197 = vmatpush1.msra.mxu0 %v4160
    %4198 = vmatprep.subr.mxu0 0.0
    %4199 = vmatpush1.msra.mxu0 %v4161
    %4200 = vmatprep.subr.mxu0 0.0
    %4201 = vmatpush1.msra.mxu0 %v4162
    %4202 = vmatprep.subr.mxu0 0.0
    %4203 = vmatpush1.msra.mxu0 %v4163
    %4204 = vmatprep.subr.mxu0 0.0
    %4205 = vmatpush1.msra.mxu0 %v4164
    %4206 = vmatprep.subr.mxu0 0.0
    %4207 = vmatpush1.msra.mxu0 0.0
    %4208 = vmatprep.subr.mxu0 0.0
    %4209 = vmatpush1.msra.mxu0 0.0
    %4210 = vmatprep.subr.mxu0 0.0
    %4211 = vmatpush1.msra.mxu0 0.0
    %4212 = vmatprep.subr.mxu0 0.0
    %4213 = vmatpush1.msra.mxu0 0.0
    %4214 = vmatprep.subr.mxu0 0.0
    %4215 = vmatpush1.msra.mxu0 0.0
    %4216 = vmatprep.subr.mxu0 0.0
    %4217 = vmatpush1.msra.mxu0 0.0
    %4218 = vmatprep.subr.mxu0 0.0
    %4219 = vmatpush1.msra.mxu0 0.0
    %4220 = vmatprep.subr.mxu0 0.0
    %4221 = vmatpush1.msra.mxu0 0.0
    %4222 = vmatprep.subr.mxu0 0.0
    %4223 = vmatpush1.msra.mxu0 0.0
    %4224 = vmatprep.subr.mxu0 0.0
    %4225 = vmatpush1.msra.mxu0 0.0
    %4226 = vmatprep.subr.mxu0 0.0
    %4227 = vmatpush1.msra.mxu0 0.0
    %4228 = vmatprep.subr.mxu0 0.0
    %4229 = vmatpush1.msra.mxu0 0.0
    %4230 = vmatprep.subr.mxu0 0.0
    %4231 = vmatpush1.msra.mxu0 0.0
    %4232 = vmatprep.subr.mxu0 0.0
    %4233 = vmatpush1.msra.mxu0 0.0
    %4234 = vmatprep.subr.mxu0 0.0
    %4235 = vmatpush1.msra.mxu0 0.0
    %4236 = vmatprep.subr.mxu0 0.0
    %4237 = vmatpush1.msra.mxu0 0.0
    %4238 = vmatprep.subr.mxu0 0.0
    %4239 = vmatpush1.msra.mxu0 0.0
    %4240 = vmatprep.mubr.f32.mxu0 0.0
    %4241 = vmatmul.mubr.f32.gmra.mrb[0].mxu0 %v4174
    %v4242 = vpop.f32.mrb[0].mxu0
    %v4243 = vadd.f32 %v4170, %v4242
    %v4244 = vpop.f32.mrb[0].mxu0
    %4245 = vdwg.mxu0
    %v4246 = vmax.f32 %v4243, 0.0
    %v4247 = vld [vmem:[%s17] sm:$0xff]
    %v4248 = vld [vmem:[%s17 + $0x8] sm:$0xff]
    %v4249 = vld [vmem:[%s17 + $0x10] sm:$0xff]
    %v4250 = vld [vmem:[%s17 + $0x18] sm:$0xff]
    %v4251 = vld [vmem:[%s17 + $0x20] sm:$0xff]
    %v4252 = vld [vmem:[%s17 + $0x28] sm:$0xff]
    %v4253 = vld [vmem:[%s17 + $0x30] sm:$0xff]
    %v4254 = vld [vmem:[%s17 + $0x38] sm:$0xff]
    %v4255 = vld [vmem:[%s17 + $0x40] sm:$0xff]
    %v4256 = vld [vmem:[%s17 + $0x48] sm:$0xff]
    %v4257 = vld [vmem:[%s17 + $0x50] sm:$0xf]
    %v4258 = vld [vmem:[%s18] sm:$0x1]
    %v4260 = vlaneseq
    %v4261 = vshrl.u32 %v4260, 7
    %v4262 = vsub.s32 0, %v4261
    %v4263 = vrot.slane %v4258, %v4262
    %vm4265 = vcmask 687104
    %v4267 = vsel %vm4265, %v4246, 0
    %v4270 = vsel %vm178, %v4257, 0
    %4272 = vmatprep.subr.mxu0 0.0
    %4273 = vmatpush1.msra.mxu0 %v4247
    %4274 = vmatprep.subr.mxu0 0.0
    %4275 = vmatpush1.msra.mxu0 %v4248
    %4276 = vmatprep.subr.mxu0 0.0
    %4277 = vmatpush1.msra.mxu0 %v4249
    %4278 = vmatprep.subr.mxu0 0.0
    %4279 = vmatpush1.msra.mxu0 %v4250
    %4280 = vmatprep.subr.mxu0 0.0
    %4281 = vmatpush1.msra.mxu0 %v4251
    %4282 = vmatprep.subr.mxu0 0.0
    %4283 = vmatpush1.msra.mxu0 %v4252
    %4284 = vmatprep.subr.mxu0 0.0
    %4285 = vmatpush1.msra.mxu0 %v4253
    %4286 = vmatprep.subr.mxu0 0.0
    %4287 = vmatpush1.msra.mxu0 %v4254
    %4288 = vmatprep.subr.mxu0 0.0
    %4289 = vmatpush1.msra.mxu0 %v4255
    %4290 = vmatprep.subr.mxu0 0.0
    %4291 = vmatpush1.msra.mxu0 %v4256
    %4292 = vmatprep.subr.mxu0 0.0
    %4293 = vmatpush1.msra.mxu0 %v4270
    %4294 = vmatprep.subr.mxu0 0.0
    %4295 = vmatpush1.msra.mxu0 0.0
    %4296 = vmatprep.subr.mxu0 0.0
    %4297 = vmatpush1.msra.mxu0 0.0
    %4298 = vmatprep.subr.mxu0 0.0
    %4299 = vmatpush1.msra.mxu0 0.0
    %4300 = vmatprep.subr.mxu0 0.0
    %4301 = vmatpush1.msra.mxu0 0.0
    %4302 = vmatprep.subr.mxu0 0.0
    %4303 = vmatpush1.msra.mxu0 0.0
    %4304 = vmatprep.subr.mxu0 0.0
    %4305 = vmatpush1.msra.mxu0 0.0
    %4306 = vmatprep.subr.mxu0 0.0
    %4307 = vmatpush1.msra.mxu0 0.0
    %4308 = vmatprep.subr.mxu0 0.0
    %4309 = vmatpush1.msra.mxu0 0.0
    %4310 = vmatprep.subr.mxu0 0.0
    %4311 = vmatpush1.msra.mxu0 0.0
    %4312 = vmatprep.subr.mxu0 0.0
    %4313 = vmatpush1.msra.mxu0 0.0
    %4314 = vmatprep.subr.mxu0 0.0
    %4315 = vmatpush1.msra.mxu0 0.0
    %4316 = vmatprep.subr.mxu0 0.0
    %4317 = vmatpush1.msra.mxu0 0.0
    %4318 = vmatprep.subr.mxu0 0.0
    %4319 = vmatpush1.msra.mxu0 0.0
    %4320 = vmatprep.subr.mxu0 0.0
    %4321 = vmatpush1.msra.mxu0 0.0
    %4322 = vmatprep.subr.mxu0 0.0
    %4323 = vmatpush1.msra.mxu0 0.0
    %4324 = vmatprep.subr.mxu0 0.0
    %4325 = vmatpush1.msra.mxu0 0.0
    %4326 = vmatprep.subr.mxu0 0.0
    %4327 = vmatpush1.msra.mxu0 0.0
    %4328 = vmatprep.subr.mxu0 0.0
    %4329 = vmatpush1.msra.mxu0 0.0
    %4330 = vmatprep.subr.mxu0 0.0
    %4331 = vmatpush1.msra.mxu0 0.0
    %4332 = vmatprep.subr.mxu0 0.0
    %4333 = vmatpush1.msra.mxu0 0.0
    %4334 = vmatprep.subr.mxu0 0.0
    %4335 = vmatpush1.msra.mxu0 0.0
    %4336 = vmatprep.mubr.f32.mxu0 0.0
    %4337 = vmatmul.mubr.f32.gmra.mrb[0].mxu0 %v4267
    %v4338 = vpop.f32.mrb[0].mxu0
    %v4339 = vadd.f32 %v4263, %v4338
    %v4340 = vpop.f32.mrb[0].mxu0
    %4341 = vdwg.mxu0
    %v4342 = vmax.f32 %v4339, 0.0
    %4343 = vst [vmem:[#allocation2] sm:$0x3] %v4342
    // Predicated region
    $region78: #{lenet_forward.1} parent=1 // pred_check
      _
    $region79: #{lenet_forward.1} parent=1 // pred_check_branch
      %4345 = sbr.rel (0) target = $region81
    $region80: #{lenet_forward.1} parent=1 // pred_region
      %s4347 = ssub.s32 32, 32
      %4348 = vsyncadd [#allocation3], %s4347
      %s4350 = sshll.u32 [#allocation2], 4
      %s4351 = int_to_ptr.vmem [resolvable:$true] %s4350
      %4353 = dma.vmem_to_hbm [thread:$0]  %s4351, 32, %s19, [#allocation3]
    $region81: #{lenet_forward.1} parent=1 // pred_fallthru
      _
    // Predicated region
    $region82: #{lenet_forward.1} parent=1 // pred_check
      _
    $region83: #{lenet_forward.1} parent=1 // pred_check_branch
      %4355 = sbr.rel (0) target = $region85
    $region84: #{lenet_forward.1} parent=1 // pred_region
      %4356 = dma.done [#allocation3], 32
    $region85: #{lenet_forward.1} parent=1 // pred_fallthru
      _
    %4357 = vsyncpa [#allocation3], 1

</llo_original>
